<compile_context>
chip_gen: v5e
topology: v5e:2x2
jax: 0.10.0
libtpu: 0.0.40
codegen_flags: <defaults>
</compile_context>

<pallas_src>
import numpy as np

import jax
import jax.numpy as jnp
from jax.experimental import pallas as pl
from jax.experimental.pallas import tpu as pltpu

# ------------------------- model hyper-parameters ---------------------------
IN_C = 32                       # channels of the single in_feature ("res4")
BOT_C = 16                      # bottleneck channels
OUT_C = 64                      # res5 output channels
POOLER_RES = 8                  # ROI pooler output resolution
RES5_HW = POOLER_RES // 2       # spatial size after block0 stride-2 -> 4
HW = RES5_HW * RES5_HW          # rows per ROI inside res5 -> 16
FEAT_STRIDE = 16                # feature stride -> pooler scale 1/16
NUM_CLASSES = 4
N_CLS = NUM_CLASSES + 1         # 5 class logits
N_BOX = 4 * NUM_CLASSES         # 16 box deltas
PRED_PAD = 128                  # merged predictor output, padded lane-dense

GUARD = 8                       # guard rows for the conv3x3 shift buffer
SHIFTS = tuple(dy * RES5_HW + dx for dy in (-1, 0, 1) for dx in (-1, 0, 1))

# ---------------------- weight / scale-bias slab layout ----------------------
# (name, rows in weight slab, valid lane width)
_LAYERS = (
    ("b0_a", IN_C, BOT_C + OUT_C),     # block0 conv1(16) | shortcut(64) fused
    ("b0_2", 9 * BOT_C, BOT_C),
    ("b0_3", BOT_C, OUT_C),
    ("b1_1", OUT_C, BOT_C),
    ("b1_2", 9 * BOT_C, BOT_C),
    ("b1_3", BOT_C, OUT_C),
    ("b2_1", OUT_C, BOT_C),
    ("b2_2", 9 * BOT_C, BOT_C),
    ("b2_3", BOT_C, OUT_C),
    ("pred", OUT_C, PRED_PAD),         # (cls|bbox|0)/HW  (mean pool folded in)
)
W_OFF, W_ROWS, W_WIDTH, SB_OFF = {}, {}, {}, {}
_r = _s = 0
for _name, _nr, _w in _LAYERS:
    W_OFF[_name], W_ROWS[_name], W_WIDTH[_name] = _r, _nr, _w
    SB_OFF[_name] = _s
    _r += _nr
    _s += 1 if _name == "pred" else 2
W_SLAB_ROWS = _r                 # 704
SB_SLAB_ROWS = _s                # 19


# ------------------------------ fused kernel --------------------------------
def _make_kernel(rows):
    """Kernel for one grid step of `rows = t_roi * HW` activation rows."""
    t_roi = rows // HW

    def kernel(x_ref, mask_ref, w_ref, sb_ref, out_ref, buf_ref):
        # Zero only the guard rows (tiny: 2 vregs).  Needed because the 9-tap
        # boundary mask is applied as a multiply; 0 * uninitialised-NaN != 0.
        buf_ref[0:GUARD, :] = jnp.zeros((GUARD, BOT_C), jnp.float32)
        buf_ref[GUARD + rows:GUARD + rows + GUARD, :] = jnp.zeros(
            (GUARD, BOT_C), jnp.float32)

        def mm(x, name, relu=False):
            """bf16 MXU matmul against a static weight-slab slice, frozen-BN
            scale/bias (+ ReLU) epilogue, f32 accumulation."""
            r0, nr, w = W_OFF[name], W_ROWS[name], W_WIDTH[name]
            acc = jnp.dot(x.astype(jnp.bfloat16), w_ref[r0:r0 + nr, 0:w],
                          preferred_element_type=jnp.float32)
            s0 = SB_OFF[name]
            y = acc * sb_ref[s0:s0 + 1, 0:w] + sb_ref[s0 + 1:s0 + 2, 0:w]
            return jnp.maximum(y, 0.0) if relu else y

        def conv3x3(y, name):
            """3x3 / stride 1 / pad 1 conv: one aligned f32 store, 9 shifted
            in-VMEM reads packed (in vregs) into a (rows, 9*BOT_C) slab, one
            constant-mask multiply, one K=144 MXU matmul."""
            buf_ref[GUARD:GUARD + rows, :] = y
            taps = [buf_ref[GUARD + s:GUARD + s + rows, :] for s in SHIFTS]
            slab = jnp.concatenate(taps, axis=1) * mask_ref[...]
            return mm(slab, name, relu=True)

        x0 = x_ref[...]                                   # (rows, IN_C) bf16

        # ---- block0 (its stride-2 is folded into the pooler sampling). The
        # conv1 and shortcut 1x1s share one K=32 matmul; split by lane slice.
        z = mm(x0, "b0_a")
        y = jnp.maximum(z[:, 0:BOT_C], 0.0)               # conv1 (+ReLU)
        sc = z[:, BOT_C:BOT_C + OUT_C]                    # shortcut (no ReLU)
        y = conv3x3(y, "b0_2")
        y = mm(y, "b0_3")
        x1 = jnp.maximum(y + sc, 0.0)

        # ---- block1 ----
        y = mm(x1, "b1_1", relu=True)
        y = conv3x3(y, "b1_2")
        y = mm(y, "b1_3")
        x2 = jnp.maximum(y + x1, 0.0)

        # ---- block2 ----
        y = mm(x2, "b2_1", relu=True)
        y = conv3x3(y, "b2_2")
        y = mm(y, "b2_3")
        x3 = jnp.maximum(y + x2, 0.0)                     # (rows, OUT_C)

        # ---- mean pool folded into the merged predictor: Wp carries 1/HW, so
        # one M=rows MXU matmul then a per-ROI row-sum (XLU), then + bias.
        r0 = W_OFF["pred"]
        p = jnp.dot(x3.astype(jnp.bfloat16), w_ref[r0:r0 + OUT_C, :],
                    preferred_element_type=jnp.float32)   # (rows, 128)
        pooled = jnp.sum(p.reshape(t_roi, HW, PRED_PAD), axis=1)
        b0 = SB_OFF["pred"]
        out_ref[0, :, :] = pooled + sb_ref[b0:b0 + 1, :]

    return kernel


def _build_tap_mask(rows):
    """Constant {0,1} (rows, 9*BOT_C) boundary mask for the 3x3 taps."""
    r = np.arange(rows)
    yy = (r % HW) // RES5_HW
    xx = r % RES5_HW
    cols = []
    for dy in (-1, 0, 1):
        for dx in (-1, 0, 1):
            valid = ((yy + dy >= 0) & (yy + dy < RES5_HW) &
                     (xx + dx >= 0) & (xx + dx < RES5_HW))
            cols.append(np.repeat(valid[:, None], BOT_C, axis=1))
    return jnp.asarray(np.concatenate(cols, axis=1), jnp.float32)


def _run_fused(x_rows, w_slab, sb_slab, t_roi):
    rows_tile = t_roi * HW
    num_tiles = x_rows.shape[0] // rows_tile
    mask = _build_tap_mask(rows_tile)

    out = pl.pallas_call(
        _make_kernel(rows_tile),
        out_shape=jax.ShapeDtypeStruct((num_tiles, t_roi, PRED_PAD),
                                       jnp.float32),
        grid=(num_tiles,),
        in_specs=[
            pl.BlockSpec((rows_tile, IN_C), lambda i: (i, 0)),
            pl.BlockSpec((rows_tile, 9 * BOT_C), lambda i: (0, 0)),
            pl.BlockSpec((W_SLAB_ROWS, PRED_PAD), lambda i: (0, 0)),
            pl.BlockSpec((SB_SLAB_ROWS, PRED_PAD), lambda i: (0, 0)),
        ],
        out_specs=pl.BlockSpec((1, t_roi, PRED_PAD), lambda i: (i, 0, 0)),
        scratch_shapes=[
            pltpu.VMEM((rows_tile + 2 * GUARD, BOT_C), jnp.float32),
        ],
        compiler_params=pltpu.CompilerParams(
            dimension_semantics=("parallel",)),
    )(x_rows, mask, w_slab, sb_slab)
    return out.reshape(num_tiles * t_roi, PRED_PAD)


# ------------------------------ weight packing -------------------------------
def _pad_lanes(w):
    return jnp.pad(w, ((0, 0), (0, PRED_PAD - w.shape[1])))


def _pack_weights(params):
    """Pack all weights into one bf16 slab and all scale/bias + predictor bias
    into one f32 slab (lane-padded to 128), matching the layout constants."""
    b0, b1, b2 = params["block0"], params["block1"], params["block2"]
    w_pred = jnp.concatenate([params["w_cls"], params["w_bbox"]], axis=1)
    b_pred = jnp.concatenate([params["b_cls"], params["b_bbox"]])

    w_pieces = [
        jnp.concatenate([b0["w1"], b0["w_sc"]], axis=1),   # fused (32, 80)
        b0["w2"], b0["w3"],
        b1["w1"], b1["w2"], b1["w3"],
        b2["w1"], b2["w2"], b2["w3"],
        w_pred / HW,                                       # mean pool folded in
    ]
    w_slab = jnp.concatenate([_pad_lanes(w) for w in w_pieces],
                             axis=0).astype(jnp.bfloat16)

    def sb(scale, bias):
        return _pad_lanes(jnp.stack([scale, bias]))

    sb_pieces = [
        sb(jnp.concatenate([b0["s1"], b0["s_sc"]]),
           jnp.concatenate([b0["b1"], b0["b_sc"]])),
        sb(b0["s2"], b0["b2"]), sb(b0["s3"], b0["b3"]),
        sb(b1["s1"], b1["b1"]), sb(b1["s2"], b1["b2"]), sb(b1["s3"], b1["b3"]),
        sb(b2["s1"], b2["b1"]), sb(b2["s2"], b2["b2"]), sb(b2["s3"], b2["b3"]),
        _pad_lanes(b_pred.reshape(1, -1)),
    ]
    sb_slab = jnp.concatenate(sb_pieces, axis=0).astype(jnp.float32)
    return w_slab, sb_slab


# ------------------------------- JAX glue ------------------------------------
def roi_align(feat_nhwc, boxes, batch_idx, out_size, spatial_scale,
              sub_stride=1):
    """Aligned ROIAlign, one bilinear sample per bin (at the bin centre).

    `sub_stride=2` keeps only the even bins of the out_size grid, which folds
    block0's stride-2 (stride_in_1x1) 1x1 convs into the pooler sampling; it is
    numerically identical because the odd bins are never read by the res5 head.
    """
    # TODO(synk): full ROIAlignV2 averages sampling_ratio^2 samples per bin and
    # zeroes fully out-of-bound samples; here we use 1 centre sample + clamping.
    _, Hf, Wf, _ = feat_nhwc.shape
    x1 = boxes[:, 0] * spatial_scale - 0.5
    y1 = boxes[:, 1] * spatial_scale - 0.5
    x2 = boxes[:, 2] * spatial_scale - 0.5
    y2 = boxes[:, 3] * spatial_scale - 0.5
    bin_w = (x2 - x1) / out_size
    bin_h = (y2 - y1) / out_size
    ix = jnp.arange(out_size, dtype=jnp.float32)
    sx = x1[:, None] + (ix[None, :] + 0.5) * bin_w[:, None]   # (R, P)
    sy = y1[:, None] + (ix[None, :] + 0.5) * bin_h[:, None]   # (R, P)
    if sub_stride > 1:
        sx = sx[:, ::sub_stride]
        sy = sy[:, ::sub_stride]

    def sample_one(r_feat, ys, xs):
        y = jnp.clip(ys, 0.0, Hf - 1.0)
        x = jnp.clip(xs, 0.0, Wf - 1.0)
        y0 = jnp.floor(y).astype(jnp.int32)
        x0 = jnp.floor(x).astype(jnp.int32)
        y1i = jnp.minimum(y0 + 1, Hf - 1)
        x1i = jnp.minimum(x0 + 1, Wf - 1)
        ly = (y - y0.astype(jnp.float32))[:, None, None]
        lx = (x - x0.astype(jnp.float32))[None, :, None]
        v00 = r_feat[y0[:, None], x0[None, :]]
        v01 = r_feat[y0[:, None], x1i[None, :]]
        v10 = r_feat[y1i[:, None], x0[None, :]]
        v11 = r_feat[y1i[:, None], x1i[None, :]]
        return (v00 * (1 - ly) * (1 - lx) + v01 * (1 - ly) * lx
                + v10 * ly * (1 - lx) + v11 * ly * lx)

    per_roi_feat = feat_nhwc[batch_idx]                  # (R, Hf, Wf, C)
    return jax.vmap(sample_one)(per_roi_feat, sy, sx)    # (R, P', P', C)


def _pick_t_roi(num_rois):
    """>=128 activation rows per grid step; 256 once there are enough ROIs to
    still keep >=2 grid steps (so both v7x TensorCores get work)."""
    return 16 if num_rois >= 32 else 8


def res5_roi_heads_forward(features_nchw, boxes, batch_idx, params):
    """Res5ROIHeads.forward (inference): pooler -> res5 -> mean -> predictor.

    Returns (pred_class_logits, pred_proposal_deltas).
    TODO(synk): FastRCNNOutputs softmax + box decoding + NMS post-processing
    and training-time proposal sampling/losses are not implemented.
    """
    feat_nhwc = jnp.transpose(features_nchw, (0, 2, 3, 1))
    pooled = roi_align(feat_nhwc, boxes, batch_idx, POOLER_RES,
                       1.0 / FEAT_STRIDE, sub_stride=2)   # (R, 4, 4, IN_C)
    R = pooled.shape[0]
    t_roi = _pick_t_roi(R)
    # bf16 on the host: halves the only per-step HBM input DMA.
    x_rows = pooled.reshape(R * HW, IN_C).astype(jnp.bfloat16)

    pad_r = (-R) % t_roi
    if pad_r:
        x_rows = jnp.concatenate(
            [x_rows, jnp.zeros((pad_r * HW, IN_C), x_rows.dtype)], axis=0)

    w_slab, sb_slab = _pack_weights(params)
    pred = _run_fused(x_rows, w_slab, sb_slab, t_roi)[:R]   # (R, 128)
    cls_logits = pred[:, :N_CLS]
    deltas = pred[:, N_CLS:N_CLS + N_BOX]
    return cls_logits, deltas


# --------------------- pure-JAX reference (for validation) -------------------
def reference_forward(features_nchw, boxes, batch_idx, params):
    feat = jnp.transpose(features_nchw, (0, 2, 3, 1))
    x = roi_align(feat, boxes, batch_idx, POOLER_RES, 1.0 / FEAT_STRIDE,
                  sub_stride=2)
    R = x.shape[0]

    def mm(h, w, s, b, relu=False):
        y = jnp.dot(h.astype(jnp.bfloat16), w.astype(jnp.bfloat16),
                    preferred_element_type=jnp.float32)
        y = y * s[None, :] + b[None, :]
        return jnp.maximum(y, 0.0) if relu else y

    def im2col3x3(x4):
        Rr, H, W, C = x4.shape
        xp = jnp.pad(x4, ((0, 0), (1, 1), (1, 1), (0, 0)))
        pats = [xp[:, dy:dy + H, dx:dx + W, :]
                for dy in range(3) for dx in range(3)]
        return jnp.concatenate(pats, axis=-1).reshape(Rr * H * W, 9 * C)

    h = x.reshape(R * HW, IN_C)
    for bidx in range(3):
        blk = params[f"block{bidx}"]
        sc = mm(h, blk["w_sc"], blk["s_sc"], blk["b_sc"]) if bidx == 0 else h
        y = mm(h, blk["w1"], blk["s1"], blk["b1"], relu=True)
        y = im2col3x3(y.reshape(R, RES5_HW, RES5_HW, BOT_C))
        y = mm(y, blk["w2"], blk["s2"], blk["b2"], relu=True)
        y = mm(y, blk["w3"], blk["s3"], blk["b3"])
        h = jnp.maximum(y + sc, 0.0)
    pooled = h.reshape(R, HW, OUT_C).mean(axis=1)
    cls = (jnp.dot(pooled.astype(jnp.bfloat16),
                   params["w_cls"].astype(jnp.bfloat16),
                   preferred_element_type=jnp.float32) + params["b_cls"][None])
    dl = (jnp.dot(pooled.astype(jnp.bfloat16),
                  params["w_bbox"].astype(jnp.bfloat16),
                  preferred_element_type=jnp.float32) + params["b_bbox"][None])
    return cls, dl


# --------------------------- deterministic params ----------------------------
def init_params(key):
    keys = iter(jax.random.split(key, 64))

    def w(shape, s=0.05):
        return jax.random.normal(next(keys), shape, jnp.float32) * s

    def bn(n):
        scale = 1.0 + 0.1 * jax.random.normal(next(keys), (n,), jnp.float32)
        bias = 0.1 * jax.random.normal(next(keys), (n,), jnp.float32)
        return scale, bias

    params = {}
    cin = IN_C
    for b in range(3):
        blk = {}
        blk["w1"] = w((cin, BOT_C))
        blk["s1"], blk["b1"] = bn(BOT_C)
        blk["w2"] = w((9 * BOT_C, BOT_C))
        blk["s2"], blk["b2"] = bn(BOT_C)
        blk["w3"] = w((BOT_C, OUT_C))
        blk["s3"], blk["b3"] = bn(OUT_C)
        if b == 0:
            blk["w_sc"] = w((cin, OUT_C))
            blk["s_sc"], blk["b_sc"] = bn(OUT_C)
        params[f"block{b}"] = blk
        cin = OUT_C
    params["w_cls"] = w((OUT_C, N_CLS), s=0.01)
    params["b_cls"] = jnp.zeros((N_CLS,), jnp.float32)
    params["w_bbox"] = w((OUT_C, N_BOX), s=0.001)
    params["b_bbox"] = jnp.zeros((N_BOX,), jnp.float32)
    return params


# ----------------------------------- main -------------------------------------
if __name__ == "__main__":
    key = jax.random.PRNGKey(0)
    kf, kb, kp = jax.random.split(key, 3)

    # feature map from the single in_feature: NCHW
    N, Hf, Wf = 2, 16, 16
    features = jax.random.normal(kf, (N, IN_C, Hf, Wf), jnp.float32)

    # 4 proposal boxes per image in image coordinates (image ~ 256x256)
    R_PER = 4
    raw = jax.random.uniform(kb, (N * R_PER, 4), jnp.float32)
    bx1 = raw[:, 0] * 128.0
    by1 = raw[:, 1] * 128.0
    bx2 = jnp.minimum(bx1 + 32.0 + raw[:, 2] * 96.0, 255.0)
    by2 = jnp.minimum(by1 + 32.0 + raw[:, 3] * 96.0, 255.0)
    boxes = jnp.stack([bx1, by1, bx2, by2], axis=-1)          # (8, 4)
    batch_idx = jnp.repeat(jnp.arange(N), R_PER)              # (8,)

    params = init_params(kp)

    fwd = jax.jit(res5_roi_heads_forward)
    cls_logits, deltas = fwd(features, boxes, batch_idx, params)
    jax.block_until_ready((cls_logits, deltas))

    assert cls_logits.shape == (N * R_PER, N_CLS)
    assert deltas.shape == (N * R_PER, N_BOX)
    assert bool(jnp.all(jnp.isfinite(cls_logits)))
    assert bool(jnp.all(jnp.isfinite(deltas)))

    # validate against a pure-JAX reference of the same forward
    ref_cls, ref_dl = jax.jit(reference_forward)(features, boxes, batch_idx,
                                                 params)
    assert bool(jnp.allclose(cls_logits, ref_cls, rtol=5e-2, atol=1e-3))
    assert bool(jnp.allclose(deltas, ref_dl, rtol=5e-2, atol=1e-3))

    print("KERNEL_OK")
</pallas_src>

<mosaic_0001>
module attributes {stable_mosaic.version = 11 : i64} {
  func.func @kernel(%arg0: i32, %arg1: memref<128x32xbf16, #tpu.memory_space<vmem>>, %arg2: memref<128x144xf32, #tpu.memory_space<vmem>>, %arg3: memref<704x128xbf16, #tpu.memory_space<vmem>>, %arg4: memref<19x128xf32, #tpu.memory_space<vmem>>, %arg5: memref<1x8x128xf32, #tpu.memory_space<vmem>>, %arg6: memref<144x16xf32, #tpu.memory_space<vmem>>) attributes {dimension_semantics = [#tpu.dimension_semantics<parallel>], iteration_bounds = array<i64: 1>, scalar_prefetch = 0 : i64, scratch_operands = 1 : i64, tpu.core_type = #tpu.core_type<tc>, window_params = [{transform_indices = @transform_0, window_bounds = array<i64: 128, 32>}, {pipeline_mode = #tpu.pipeline_mode<synchronous>, transform_indices = @transform_1, window_bounds = array<i64: 128, 144>}, {pipeline_mode = #tpu.pipeline_mode<synchronous>, transform_indices = @transform_2, window_bounds = array<i64: 704, 128>}, {pipeline_mode = #tpu.pipeline_mode<synchronous>, transform_indices = @transform_3, window_bounds = array<i64: 19, 128>}, {transform_indices = @transform_4, window_bounds = array<i64: 1, 8, 128>}]} {
    %cst = arith.constant 0.000000e+00 : f32
    %0 = vector.broadcast %cst : f32 to vector<8x16xf32>
    %c0 = arith.constant 0 : index
    %c0_0 = arith.constant 0 : index
    %1 = vector.load %arg6[%c0, %c0_0] : memref<144x16xf32, #tpu.memory_space<vmem>>, vector<8x16xf32>
    tpu.vector_store %arg6[%c0, %c0_0], %0 {strides = array<i32>} : memref<144x16xf32, #tpu.memory_space<vmem>>, vector<8x16xf32>,
    %cst_1 = arith.constant 0.000000e+00 : f32
    %2 = vector.broadcast %cst_1 : f32 to vector<8x16xf32>
    %c136 = arith.constant 136 : index
    %c0_2 = arith.constant 0 : index
    %3 = vector.load %arg6[%c136, %c0_2] : memref<144x16xf32, #tpu.memory_space<vmem>>, vector<8x16xf32>
    tpu.vector_store %arg6[%c136, %c0_2], %2 {strides = array<i32>} : memref<144x16xf32, #tpu.memory_space<vmem>>, vector<8x16xf32>,
    %c0_3 = arith.constant 0 : index
    %c0_4 = arith.constant 0 : index
    %4 = vector.load %arg1[%c0_3, %c0_4] : memref<128x32xbf16, #tpu.memory_space<vmem>>, vector<128x32xbf16>
    %c0_5 = arith.constant 0 : index
    %c0_6 = arith.constant 0 : index
    %5 = vector.load %arg3[%c0_5, %c0_6] : memref<704x128xbf16, #tpu.memory_space<vmem>>, vector<32x80xbf16>
    %cst_7 = arith.constant dense<0.000000e+00> : vector<128x80xf32>
    %6 = tpu.matmul %4, %5, %cst_7 {dimension_numbers = #tpu.dot_dimension_numbers<[1], [0], [0], [1], [0, 0, 1, 1], [], []>} : vector<128x32xbf16>, vector<32x80xbf16>, vector<128x80xf32> -> vector<128x80xf32>
    %c0_8 = arith.constant 0 : index
    %c0_9 = arith.constant 0 : index
    %7 = vector.load %arg4[%c0_8, %c0_9] : memref<19x128xf32, #tpu.memory_space<vmem>>, vector<1x80xf32>
    %8 = vector.broadcast %7 : vector<1x80xf32> to vector<128x80xf32>
    %9 = arith.mulf %6, %8 : vector<128x80xf32>
    %c1 = arith.constant 1 : index
    %c0_10 = arith.constant 0 : index
    %10 = vector.load %arg4[%c1, %c0_10] : memref<19x128xf32, #tpu.memory_space<vmem>>, vector<1x80xf32>
    %11 = vector.broadcast %10 : vector<1x80xf32> to vector<128x80xf32>
    %12 = arith.addf %9, %11 : vector<128x80xf32>
    %13 = vector.extract_strided_slice %12 {offsets = [0, 0], sizes = [128, 16], strides = [1, 1]} : vector<128x80xf32> to vector<128x16xf32>
    %cst_11 = arith.constant 0.000000e+00 : f32
    %14 = vector.broadcast %cst_11 : f32 to vector<128x16xf32>
    %15 = arith.maximumf %13, %14 : vector<128x16xf32>
    %16 = vector.extract_strided_slice %12 {offsets = [0, 16], sizes = [128, 64], strides = [1, 1]} : vector<128x80xf32> to vector<128x64xf32>
    %c8 = arith.constant 8 : index
    %c0_12 = arith.constant 0 : index
    %17 = vector.load %arg6[%c8, %c0_12] : memref<144x16xf32, #tpu.memory_space<vmem>>, vector<128x16xf32>
    tpu.vector_store %arg6[%c8, %c0_12], %15 {strides = array<i32>} : memref<144x16xf32, #tpu.memory_space<vmem>>, vector<128x16xf32>,
    %c3 = arith.constant 3 : index
    %c0_13 = arith.constant 0 : index
    %18 = vector.load %arg6[%c3, %c0_13] : memref<144x16xf32, #tpu.memory_space<vmem>>, vector<128x16xf32>
    %c4 = arith.constant 4 : index
    %c0_14 = arith.constant 0 : index
    %19 = vector.load %arg6[%c4, %c0_14] : memref<144x16xf32, #tpu.memory_space<vmem>>, vector<128x16xf32>
    %c5 = arith.constant 5 : index
    %c0_15 = arith.constant 0 : index
    %20 = vector.load %arg6[%c5, %c0_15] : memref<144x16xf32, #tpu.memory_space<vmem>>, vector<128x16xf32>
    %c7 = arith.constant 7 : index
    %c0_16 = arith.constant 0 : index
    %21 = vector.load %arg6[%c7, %c0_16] : memref<144x16xf32, #tpu.memory_space<vmem>>, vector<128x16xf32>
    %c8_17 = arith.constant 8 : index
    %c0_18 = arith.constant 0 : index
    %22 = vector.load %arg6[%c8_17, %c0_18] : memref<144x16xf32, #tpu.memory_space<vmem>>, vector<128x16xf32>
    %c9 = arith.constant 9 : index
    %c0_19 = arith.constant 0 : index
    %23 = vector.load %arg6[%c9, %c0_19] : memref<144x16xf32, #tpu.memory_space<vmem>>, vector<128x16xf32>
    %c11 = arith.constant 11 : index
    %c0_20 = arith.constant 0 : index
    %24 = vector.load %arg6[%c11, %c0_20] : memref<144x16xf32, #tpu.memory_space<vmem>>, vector<128x16xf32>
    %c12 = arith.constant 12 : index
    %c0_21 = arith.constant 0 : index
    %25 = vector.load %arg6[%c12, %c0_21] : memref<144x16xf32, #tpu.memory_space<vmem>>, vector<128x16xf32>
    %c13 = arith.constant 13 : index
    %c0_22 = arith.constant 0 : index
    %26 = vector.load %arg6[%c13, %c0_22] : memref<144x16xf32, #tpu.memory_space<vmem>>, vector<128x16xf32>
    %27 = tpu.concatenate %18, %19, %20, %21, %22, %23, %24, %25, %26 in 1 : vector<128x16xf32>, vector<128x16xf32>, vector<128x16xf32>, vector<128x16xf32>, vector<128x16xf32>, vector<128x16xf32>, vector<128x16xf32>, vector<128x16xf32>, vector<128x16xf32> -> vector<128x144xf32>
    %c0_23 = arith.constant 0 : index
    %c0_24 = arith.constant 0 : index
    %28 = vector.load %arg2[%c0_23, %c0_24] : memref<128x144xf32, #tpu.memory_space<vmem>>, vector<128x144xf32>
    %29 = arith.mulf %27, %28 : vector<128x144xf32>
    %30 = arith.truncf %29 : vector<128x144xf32> to vector<128x144xbf16>
    %c32 = arith.constant 32 : index
    %c0_25 = arith.constant 0 : index
    %31 = vector.load %arg3[%c32, %c0_25] : memref<704x128xbf16, #tpu.memory_space<vmem>>, vector<144x16xbf16>
    %cst_26 = arith.constant dense<0.000000e+00> : vector<128x16xf32>
    %32 = tpu.matmul %30, %31, %cst_26 {dimension_numbers = #tpu.dot_dimension_numbers<[1], [0], [0], [1], [0, 0, 1, 1], [], []>} : vector<128x144xbf16>, vector<144x16xbf16>, vector<128x16xf32> -> vector<128x16xf32>
    %c2 = arith.constant 2 : index
    %c0_27 = arith.constant 0 : index
    %33 = vector.load %arg4[%c2, %c0_27] : memref<19x128xf32, #tpu.memory_space<vmem>>, vector<1x16xf32>
    %34 = vector.broadcast %33 : vector<1x16xf32> to vector<128x16xf32>
    %35 = arith.mulf %32, %34 : vector<128x16xf32>
    %c3_28 = arith.constant 3 : index
    %c0_29 = arith.constant 0 : index
    %36 = vector.load %arg4[%c3_28, %c0_29] : memref<19x128xf32, #tpu.memory_space<vmem>>, vector<1x16xf32>
    %37 = vector.broadcast %36 : vector<1x16xf32> to vector<128x16xf32>
    %38 = arith.addf %35, %37 : vector<128x16xf32>
    %cst_30 = arith.constant 0.000000e+00 : f32
    %39 = vector.broadcast %cst_30 : f32 to vector<128x16xf32>
    %40 = arith.maximumf %38, %39 : vector<128x16xf32>
    %41 = arith.truncf %40 : vector<128x16xf32> to vector<128x16xbf16>
    %c176 = arith.constant 176 : index
    %c0_31 = arith.constant 0 : index
    %42 = vector.load %arg3[%c176, %c0_31] : memref<704x128xbf16, #tpu.memory_space<vmem>>, vector<16x64xbf16>
    %cst_32 = arith.constant dense<0.000000e+00> : vector<128x64xf32>
    %43 = tpu.matmul %41, %42, %cst_32 {dimension_numbers = #tpu.dot_dimension_numbers<[1], [0], [0], [1], [0, 0, 1, 1], [], []>} : vector<128x16xbf16>, vector<16x64xbf16>, vector<128x64xf32> -> vector<128x64xf32>
    %c4_33 = arith.constant 4 : index
    %c0_34 = arith.constant 0 : index
    %44 = vector.load %arg4[%c4_33, %c0_34] : memref<19x128xf32, #tpu.memory_space<vmem>>, vector<1x64xf32>
    %45 = vector.broadcast %44 : vector<1x64xf32> to vector<128x64xf32>
    %46 = arith.mulf %43, %45 : vector<128x64xf32>
    %c5_35 = arith.constant 5 : index
    %c0_36 = arith.constant 0 : index
    %47 = vector.load %arg4[%c5_35, %c0_36] : memref<19x128xf32, #tpu.memory_space<vmem>>, vector<1x64xf32>
    %48 = vector.broadcast %47 : vector<1x64xf32> to vector<128x64xf32>
    %49 = arith.addf %46, %48 : vector<128x64xf32>
    %50 = arith.addf %49, %16 : vector<128x64xf32>
    %cst_37 = arith.constant 0.000000e+00 : f32
    %51 = vector.broadcast %cst_37 : f32 to vector<128x64xf32>
    %52 = arith.maximumf %50, %51 : vector<128x64xf32>
    %53 = arith.truncf %52 : vector<128x64xf32> to vector<128x64xbf16>
    %c192 = arith.constant 192 : index
    %c0_38 = arith.constant 0 : index
    %54 = vector.load %arg3[%c192, %c0_38] : memref<704x128xbf16, #tpu.memory_space<vmem>>, vector<64x16xbf16>
    %cst_39 = arith.constant dense<0.000000e+00> : vector<128x16xf32>
    %55 = tpu.matmul %53, %54, %cst_39 {dimension_numbers = #tpu.dot_dimension_numbers<[1], [0], [0], [1], [0, 0, 1, 1], [], []>} : vector<128x64xbf16>, vector<64x16xbf16>, vector<128x16xf32> -> vector<128x16xf32>
    %c6 = arith.constant 6 : index
    %c0_40 = arith.constant 0 : index
    %56 = vector.load %arg4[%c6, %c0_40] : memref<19x128xf32, #tpu.memory_space<vmem>>, vector<1x16xf32>
    %57 = vector.broadcast %56 : vector<1x16xf32> to vector<128x16xf32>
    %58 = arith.mulf %55, %57 : vector<128x16xf32>
    %c7_41 = arith.constant 7 : index
    %c0_42 = arith.constant 0 : index
    %59 = vector.load %arg4[%c7_41, %c0_42] : memref<19x128xf32, #tpu.memory_space<vmem>>, vector<1x16xf32>
    %60 = vector.broadcast %59 : vector<1x16xf32> to vector<128x16xf32>
    %61 = arith.addf %58, %60 : vector<128x16xf32>
    %cst_43 = arith.constant 0.000000e+00 : f32
    %62 = vector.broadcast %cst_43 : f32 to vector<128x16xf32>
    %63 = arith.maximumf %61, %62 : vector<128x16xf32>
    %c8_44 = arith.constant 8 : index
    %c0_45 = arith.constant 0 : index
    %64 = vector.load %arg6[%c8_44, %c0_45] : memref<144x16xf32, #tpu.memory_space<vmem>>, vector<128x16xf32>
    tpu.vector_store %arg6[%c8_44, %c0_45], %63 {strides = array<i32>} : memref<144x16xf32, #tpu.memory_space<vmem>>, vector<128x16xf32>,
    %c3_46 = arith.constant 3 : index
    %c0_47 = arith.constant 0 : index
    %65 = vector.load %arg6[%c3_46, %c0_47] : memref<144x16xf32, #tpu.memory_space<vmem>>, vector<128x16xf32>
    %c4_48 = arith.constant 4 : index
    %c0_49 = arith.constant 0 : index
    %66 = vector.load %arg6[%c4_48, %c0_49] : memref<144x16xf32, #tpu.memory_space<vmem>>, vector<128x16xf32>
    %c5_50 = arith.constant 5 : index
    %c0_51 = arith.constant 0 : index
    %67 = vector.load %arg6[%c5_50, %c0_51] : memref<144x16xf32, #tpu.memory_space<vmem>>, vector<128x16xf32>
    %c7_52 = arith.constant 7 : index
    %c0_53 = arith.constant 0 : index
    %68 = vector.load %arg6[%c7_52, %c0_53] : memref<144x16xf32, #tpu.memory_space<vmem>>, vector<128x16xf32>
    %c8_54 = arith.constant 8 : index
    %c0_55 = arith.constant 0 : index
    %69 = vector.load %arg6[%c8_54, %c0_55] : memref<144x16xf32, #tpu.memory_space<vmem>>, vector<128x16xf32>
    %c9_56 = arith.constant 9 : index
    %c0_57 = arith.constant 0 : index
    %70 = vector.load %arg6[%c9_56, %c0_57] : memref<144x16xf32, #tpu.memory_space<vmem>>, vector<128x16xf32>
    %c11_58 = arith.constant 11 : index
    %c0_59 = arith.constant 0 : index
    %71 = vector.load %arg6[%c11_58, %c0_59] : memref<144x16xf32, #tpu.memory_space<vmem>>, vector<128x16xf32>
    %c12_60 = arith.constant 12 : index
    %c0_61 = arith.constant 0 : index
    %72 = vector.load %arg6[%c12_60, %c0_61] : memref<144x16xf32, #tpu.memory_space<vmem>>, vector<128x16xf32>
    %c13_62 = arith.constant 13 : index
    %c0_63 = arith.constant 0 : index
    %73 = vector.load %arg6[%c13_62, %c0_63] : memref<144x16xf32, #tpu.memory_space<vmem>>, vector<128x16xf32>
    %74 = tpu.concatenate %65, %66, %67, %68, %69, %70, %71, %72, %73 in 1 : vector<128x16xf32>, vector<128x16xf32>, vector<128x16xf32>, vector<128x16xf32>, vector<128x16xf32>, vector<128x16xf32>, vector<128x16xf32>, vector<128x16xf32>, vector<128x16xf32> -> vector<128x144xf32>
    %c0_64 = arith.constant 0 : index
    %c0_65 = arith.constant 0 : index
    %75 = vector.load %arg2[%c0_64, %c0_65] : memref<128x144xf32, #tpu.memory_space<vmem>>, vector<128x144xf32>
    %76 = arith.mulf %74, %75 : vector<128x144xf32>
    %77 = arith.truncf %76 : vector<128x144xf32> to vector<128x144xbf16>
    %c256 = arith.constant 256 : index
    %c0_66 = arith.constant 0 : index
    %78 = vector.load %arg3[%c256, %c0_66] : memref<704x128xbf16, #tpu.memory_space<vmem>>, vector<144x16xbf16>
    %cst_67 = arith.constant dense<0.000000e+00> : vector<128x16xf32>
    %79 = tpu.matmul %77, %78, %cst_67 {dimension_numbers = #tpu.dot_dimension_numbers<[1], [0], [0], [1], [0, 0, 1, 1], [], []>} : vector<128x144xbf16>, vector<144x16xbf16>, vector<128x16xf32> -> vector<128x16xf32>
    %c8_68 = arith.constant 8 : index
    %c0_69 = arith.constant 0 : index
    %80 = vector.load %arg4[%c8_68, %c0_69] : memref<19x128xf32, #tpu.memory_space<vmem>>, vector<1x16xf32>
    %81 = vector.broadcast %80 : vector<1x16xf32> to vector<128x16xf32>
    %82 = arith.mulf %79, %81 : vector<128x16xf32>
    %c9_70 = arith.constant 9 : index
    %c0_71 = arith.constant 0 : index
    %83 = vector.load %arg4[%c9_70, %c0_71] : memref<19x128xf32, #tpu.memory_space<vmem>>, vector<1x16xf32>
    %84 = vector.broadcast %83 : vector<1x16xf32> to vector<128x16xf32>
    %85 = arith.addf %82, %84 : vector<128x16xf32>
    %cst_72 = arith.constant 0.000000e+00 : f32
    %86 = vector.broadcast %cst_72 : f32 to vector<128x16xf32>
    %87 = arith.maximumf %85, %86 : vector<128x16xf32>
    %88 = arith.truncf %87 : vector<128x16xf32> to vector<128x16xbf16>
    %c400 = arith.constant 400 : index
    %c0_73 = arith.constant 0 : index
    %89 = vector.load %arg3[%c400, %c0_73] : memref<704x128xbf16, #tpu.memory_space<vmem>>, vector<16x64xbf16>
    %cst_74 = arith.constant dense<0.000000e+00> : vector<128x64xf32>
    %90 = tpu.matmul %88, %89, %cst_74 {dimension_numbers = #tpu.dot_dimension_numbers<[1], [0], [0], [1], [0, 0, 1, 1], [], []>} : vector<128x16xbf16>, vector<16x64xbf16>, vector<128x64xf32> -> vector<128x64xf32>
    %c10 = arith.constant 10 : index
    %c0_75 = arith.constant 0 : index
    %91 = vector.load %arg4[%c10, %c0_75] : memref<19x128xf32, #tpu.memory_space<vmem>>, vector<1x64xf32>
    %92 = vector.broadcast %91 : vector<1x64xf32> to vector<128x64xf32>
    %93 = arith.mulf %90, %92 : vector<128x64xf32>
    %c11_76 = arith.constant 11 : index
    %c0_77 = arith.constant 0 : index
    %94 = vector.load %arg4[%c11_76, %c0_77] : memref<19x128xf32, #tpu.memory_space<vmem>>, vector<1x64xf32>
    %95 = vector.broadcast %94 : vector<1x64xf32> to vector<128x64xf32>
    %96 = arith.addf %93, %95 : vector<128x64xf32>
    %97 = arith.addf %96, %52 : vector<128x64xf32>
    %cst_78 = arith.constant 0.000000e+00 : f32
    %98 = vector.broadcast %cst_78 : f32 to vector<128x64xf32>
    %99 = arith.maximumf %97, %98 : vector<128x64xf32>
    %100 = arith.truncf %99 : vector<128x64xf32> to vector<128x64xbf16>
    %c416 = arith.constant 416 : index
    %c0_79 = arith.constant 0 : index
    %101 = vector.load %arg3[%c416, %c0_79] : memref<704x128xbf16, #tpu.memory_space<vmem>>, vector<64x16xbf16>
    %cst_80 = arith.constant dense<0.000000e+00> : vector<128x16xf32>
    %102 = tpu.matmul %100, %101, %cst_80 {dimension_numbers = #tpu.dot_dimension_numbers<[1], [0], [0], [1], [0, 0, 1, 1], [], []>} : vector<128x64xbf16>, vector<64x16xbf16>, vector<128x16xf32> -> vector<128x16xf32>
    %c12_81 = arith.constant 12 : index
    %c0_82 = arith.constant 0 : index
    %103 = vector.load %arg4[%c12_81, %c0_82] : memref<19x128xf32, #tpu.memory_space<vmem>>, vector<1x16xf32>
    %104 = vector.broadcast %103 : vector<1x16xf32> to vector<128x16xf32>
    %105 = arith.mulf %102, %104 : vector<128x16xf32>
    %c13_83 = arith.constant 13 : index
    %c0_84 = arith.constant 0 : index
    %106 = vector.load %arg4[%c13_83, %c0_84] : memref<19x128xf32, #tpu.memory_space<vmem>>, vector<1x16xf32>
    %107 = vector.broadcast %106 : vector<1x16xf32> to vector<128x16xf32>
    %108 = arith.addf %105, %107 : vector<128x16xf32>
    %cst_85 = arith.constant 0.000000e+00 : f32
    %109 = vector.broadcast %cst_85 : f32 to vector<128x16xf32>
    %110 = arith.maximumf %108, %109 : vector<128x16xf32>
    %c8_86 = arith.constant 8 : index
    %c0_87 = arith.constant 0 : index
    %111 = vector.load %arg6[%c8_86, %c0_87] : memref<144x16xf32, #tpu.memory_space<vmem>>, vector<128x16xf32>
    tpu.vector_store %arg6[%c8_86, %c0_87], %110 {strides = array<i32>} : memref<144x16xf32, #tpu.memory_space<vmem>>, vector<128x16xf32>,
    %c3_88 = arith.constant 3 : index
    %c0_89 = arith.constant 0 : index
    %112 = vector.load %arg6[%c3_88, %c0_89] : memref<144x16xf32, #tpu.memory_space<vmem>>, vector<128x16xf32>
    %c4_90 = arith.constant 4 : index
    %c0_91 = arith.constant 0 : index
    %113 = vector.load %arg6[%c4_90, %c0_91] : memref<144x16xf32, #tpu.memory_space<vmem>>, vector<128x16xf32>
    %c5_92 = arith.constant 5 : index
    %c0_93 = arith.constant 0 : index
    %114 = vector.load %arg6[%c5_92, %c0_93] : memref<144x16xf32, #tpu.memory_space<vmem>>, vector<128x16xf32>
    %c7_94 = arith.constant 7 : index
    %c0_95 = arith.constant 0 : index
    %115 = vector.load %arg6[%c7_94, %c0_95] : memref<144x16xf32, #tpu.memory_space<vmem>>, vector<128x16xf32>
    %c8_96 = arith.constant 8 : index
    %c0_97 = arith.constant 0 : index
    %116 = vector.load %arg6[%c8_96, %c0_97] : memref<144x16xf32, #tpu.memory_space<vmem>>, vector<128x16xf32>
    %c9_98 = arith.constant 9 : index
    %c0_99 = arith.constant 0 : index
    %117 = vector.load %arg6[%c9_98, %c0_99] : memref<144x16xf32, #tpu.memory_space<vmem>>, vector<128x16xf32>
    %c11_100 = arith.constant 11 : index
    %c0_101 = arith.constant 0 : index
    %118 = vector.load %arg6[%c11_100, %c0_101] : memref<144x16xf32, #tpu.memory_space<vmem>>, vector<128x16xf32>
    %c12_102 = arith.constant 12 : index
    %c0_103 = arith.constant 0 : index
    %119 = vector.load %arg6[%c12_102, %c0_103] : memref<144x16xf32, #tpu.memory_space<vmem>>, vector<128x16xf32>
    %c13_104 = arith.constant 13 : index
    %c0_105 = arith.constant 0 : index
    %120 = vector.load %arg6[%c13_104, %c0_105] : memref<144x16xf32, #tpu.memory_space<vmem>>, vector<128x16xf32>
    %121 = tpu.concatenate %112, %113, %114, %115, %116, %117, %118, %119, %120 in 1 : vector<128x16xf32>, vector<128x16xf32>, vector<128x16xf32>, vector<128x16xf32>, vector<128x16xf32>, vector<128x16xf32>, vector<128x16xf32>, vector<128x16xf32>, vector<128x16xf32> -> vector<128x144xf32>
    %c0_106 = arith.constant 0 : index
    %c0_107 = arith.constant 0 : index
    %122 = vector.load %arg2[%c0_106, %c0_107] : memref<128x144xf32, #tpu.memory_space<vmem>>, vector<128x144xf32>
    %123 = arith.mulf %121, %122 : vector<128x144xf32>
    %124 = arith.truncf %123 : vector<128x144xf32> to vector<128x144xbf16>
    %c480 = arith.constant 480 : index
    %c0_108 = arith.constant 0 : index
    %125 = vector.load %arg3[%c480, %c0_108] : memref<704x128xbf16, #tpu.memory_space<vmem>>, vector<144x16xbf16>
    %cst_109 = arith.constant dense<0.000000e+00> : vector<128x16xf32>
    %126 = tpu.matmul %124, %125, %cst_109 {dimension_numbers = #tpu.dot_dimension_numbers<[1], [0], [0], [1], [0, 0, 1, 1], [], []>} : vector<128x144xbf16>, vector<144x16xbf16>, vector<128x16xf32> -> vector<128x16xf32>
    %c14 = arith.constant 14 : index
    %c0_110 = arith.constant 0 : index
    %127 = vector.load %arg4[%c14, %c0_110] : memref<19x128xf32, #tpu.memory_space<vmem>>, vector<1x16xf32>
    %128 = vector.broadcast %127 : vector<1x16xf32> to vector<128x16xf32>
    %129 = arith.mulf %126, %128 : vector<128x16xf32>
    %c15 = arith.constant 15 : index
    %c0_111 = arith.constant 0 : index
    %130 = vector.load %arg4[%c15, %c0_111] : memref<19x128xf32, #tpu.memory_space<vmem>>, vector<1x16xf32>
    %131 = vector.broadcast %130 : vector<1x16xf32> to vector<128x16xf32>
    %132 = arith.addf %129, %131 : vector<128x16xf32>
    %cst_112 = arith.constant 0.000000e+00 : f32
    %133 = vector.broadcast %cst_112 : f32 to vector<128x16xf32>
    %134 = arith.maximumf %132, %133 : vector<128x16xf32>
    %135 = arith.truncf %134 : vector<128x16xf32> to vector<128x16xbf16>
    %c624 = arith.constant 624 : index
    %c0_113 = arith.constant 0 : index
    %136 = vector.load %arg3[%c624, %c0_113] : memref<704x128xbf16, #tpu.memory_space<vmem>>, vector<16x64xbf16>
    %cst_114 = arith.constant dense<0.000000e+00> : vector<128x64xf32>
    %137 = tpu.matmul %135, %136, %cst_114 {dimension_numbers = #tpu.dot_dimension_numbers<[1], [0], [0], [1], [0, 0, 1, 1], [], []>} : vector<128x16xbf16>, vector<16x64xbf16>, vector<128x64xf32> -> vector<128x64xf32>
    %c16 = arith.constant 16 : index
    %c0_115 = arith.constant 0 : index
    %138 = vector.load %arg4[%c16, %c0_115] : memref<19x128xf32, #tpu.memory_space<vmem>>, vector<1x64xf32>
    %139 = vector.broadcast %138 : vector<1x64xf32> to vector<128x64xf32>
    %140 = arith.mulf %137, %139 : vector<128x64xf32>
    %c17 = arith.constant 17 : index
    %c0_116 = arith.constant 0 : index
    %141 = vector.load %arg4[%c17, %c0_116] : memref<19x128xf32, #tpu.memory_space<vmem>>, vector<1x64xf32>
    %142 = vector.broadcast %141 : vector<1x64xf32> to vector<128x64xf32>
    %143 = arith.addf %140, %142 : vector<128x64xf32>
    %144 = arith.addf %143, %99 : vector<128x64xf32>
    %cst_117 = arith.constant 0.000000e+00 : f32
    %145 = vector.broadcast %cst_117 : f32 to vector<128x64xf32>
    %146 = arith.maximumf %144, %145 : vector<128x64xf32>
    %147 = arith.truncf %146 : vector<128x64xf32> to vector<128x64xbf16>
    %c640 = arith.constant 640 : index
    %c0_118 = arith.constant 0 : index
    %148 = vector.load %arg3[%c640, %c0_118] : memref<704x128xbf16, #tpu.memory_space<vmem>>, vector<64x128xbf16>
    %cst_119 = arith.constant dense<0.000000e+00> : vector<128x128xf32>
    %149 = tpu.matmul %147, %148, %cst_119 {dimension_numbers = #tpu.dot_dimension_numbers<[1], [0], [0], [1], [0, 0, 1, 1], [], []>} : vector<128x64xbf16>, vector<64x128xbf16>, vector<128x128xf32> -> vector<128x128xf32>
    %150 = vector.shape_cast %149 : vector<128x128xf32> to vector<8x16x128xf32>
    %cst_120 = arith.constant dense<0.000000e+00> : vector<8x128xf32>
    %151 = vector.multi_reduction <add>, %150, %cst_120 [1] : vector<8x16x128xf32> to vector<8x128xf32>
    %c18 = arith.constant 18 : index
    %c0_121 = arith.constant 0 : index
    %152 = vector.load %arg4[%c18, %c0_121] : memref<19x128xf32, #tpu.memory_space<vmem>>, vector<1x128xf32>
    %153 = vector.broadcast %152 : vector<1x128xf32> to vector<8x128xf32>
    %154 = arith.addf %151, %153 : vector<8x128xf32>
    %c0_122 = arith.constant 0 : index
    %c0_123 = arith.constant 0 : index
    %c0_124 = arith.constant 0 : index
    %155 = vector.load %arg5[%c0_122, %c0_123, %c0_124] : memref<1x8x128xf32, #tpu.memory_space<vmem>>, vector<1x8x128xf32>
    %156 = vector.shape_cast %155 : vector<1x8x128xf32> to vector<8x128xf32>
    %157 = vector.shape_cast %154 : vector<8x128xf32> to vector<1x8x128xf32>
    tpu.vector_store %arg5[%c0_122, %c0_123, %c0_124], %157 {strides = array<i32>} : memref<1x8x128xf32, #tpu.memory_space<vmem>>, vector<1x8x128xf32>,
    return
  }
  func.func @transform_0(%arg0: i32) -> (i32, i32) {
    %c0_i32 = arith.constant 0 : i32
    %c0_i32_0 = arith.constant 0 : i32
    return %arg0, %c0_i32 : i32, i32
  }
  func.func @transform_1(%arg0: i32) -> (i32, i32) {
    %c0_i32 = arith.constant 0 : i32
    %c0_i32_0 = arith.constant 0 : i32
    %c0_i32_1 = arith.constant 0 : i32
    return %c0_i32, %c0_i32_0 : i32, i32
  }
  func.func @transform_2(%arg0: i32) -> (i32, i32) {
    %c0_i32 = arith.constant 0 : i32
    %c0_i32_0 = arith.constant 0 : i32
    %c0_i32_1 = arith.constant 0 : i32
    return %c0_i32, %c0_i32_0 : i32, i32
  }
  func.func @transform_3(%arg0: i32) -> (i32, i32) {
    %c0_i32 = arith.constant 0 : i32
    %c0_i32_0 = arith.constant 0 : i32
    %c0_i32_1 = arith.constant 0 : i32
    return %c0_i32, %c0_i32_0 : i32, i32
  }
  func.func @transform_4(%arg0: i32) -> (i32, i32, i32) {
    %c0_i32 = arith.constant 0 : i32
    %c0_i32_0 = arith.constant 0 : i32
    %c0_i32_1 = arith.constant 0 : i32
    return %arg0, %c0_i32, %c0_i32_0 : i32, i32, i32
  }
}

</mosaic_0001>

<llo_original>
// kernel: res5_roi_heads_forward.1
$region0: #{res5_roi_heads_forward.1}
  #allocation0 [shape = 'u32[]', space=smem, size = 0x4, offset = 0x4, fixed_abs, tag = 'smem constant byte address 0x4 - core index']
  #allocation1 [shape = 'u32[72,128]{1,0:T(1,128)}', space=vmem, size = 0x9000, scoped, tag = 'internal scratch']
  #allocation2 [shape = 'f32[144,16]{1,0:T(8,128)}', space=vmem, size = 0x12000, scoped, tag = 'scratch operand']
  %s0 = inlined_call_operand.vmem [shape: bf16[128,32], index: 0, kind: input, shape index: {}]
  %s1 = inlined_call_operand.vmem [shape: f32[128,144], index: 1, kind: input, shape index: {}]
  %s2 = inlined_call_operand.vmem [shape: bf16[704,128], index: 2, kind: input, shape index: {}]
  %s3 = inlined_call_operand.vmem [shape: f32[19,128], index: 3, kind: input, shape index: {}]
  %s4 = inlined_call_operand.vmem [shape: f32[1,8,128], index: 4, kind: output, shape index: {}]
  %s5 = sld [smem:[#allocation0]]
  $region26: #{res5_roi_heads_forward.1} parent=0
    _
  %s7 = ssub.s32 1, %s5
  %s8 = scalar_select 0, %s7, %s5
  // Predicated region
  $region2: #{res5_roi_heads_forward.1} parent=0 // pred_check
    _
  $region3: #{res5_roi_heads_forward.1} parent=0 // pred_check_branch
    %10 = sbr.rel (0) target = $region5
  $region4: #{res5_roi_heads_forward.1} parent=0 // pred_region
    _
  $region5: #{res5_roi_heads_forward.1} parent=0 // pred_fallthru
    _
  // Predicated region
  $region6: #{res5_roi_heads_forward.1} parent=0 // pred_check
    _
  $region7: #{res5_roi_heads_forward.1} parent=0 // pred_check_branch
    %12 = sbr.rel (0) target = $region9
  $region8: #{res5_roi_heads_forward.1} parent=0 // pred_region
    _
  $region9: #{res5_roi_heads_forward.1} parent=0 // pred_fallthru
    _
  // Predicated region
  $region10: #{res5_roi_heads_forward.1} parent=0 // pred_check
    _
  $region11: #{res5_roi_heads_forward.1} parent=0 // pred_check_branch
    %14 = sbr.rel (0) target = $region13
  $region12: #{res5_roi_heads_forward.1} parent=0 // pred_region
    _
  $region13: #{res5_roi_heads_forward.1} parent=0 // pred_fallthru
    _
  // Predicated region
  $region14: #{res5_roi_heads_forward.1} parent=0 // pred_check
    _
  $region15: #{res5_roi_heads_forward.1} parent=0 // pred_check_branch
    %16 = sbr.rel (0) target = $region17
  $region16: #{res5_roi_heads_forward.1} parent=0 // pred_region
    _
  $region17: #{res5_roi_heads_forward.1} parent=0 // pred_fallthru
    _
  %vm18 = vcmask 130048
  %19 = vst.msk [vmem:[#allocation2] sm:$0xff] %vm18, 0.0
  %20 = vst.msk [vmem:[#allocation2 + $0x88] sm:$0xff] %vm18, 0.0
  %v21 = vld [vmem:[%s0] sm:$0xf]
  %v22 = vld [vmem:[%s0 + $0x4] sm:$0xf]
  %v23 = vld [vmem:[%s0 + $0x8] sm:$0xf]
  %v24 = vld [vmem:[%s0 + $0xc] sm:$0xf]
  %v25 = vld [vmem:[%s0 + $0x10] sm:$0xf]
  %v26 = vld [vmem:[%s0 + $0x14] sm:$0xf]
  %v27 = vld [vmem:[%s0 + $0x18] sm:$0xf]
  %v28 = vld [vmem:[%s0 + $0x1c] sm:$0xf]
  %v29 = vld [vmem:[%s0 + $0x20] sm:$0xf]
  %v30 = vld [vmem:[%s0 + $0x24] sm:$0xf]
  %v31 = vld [vmem:[%s0 + $0x28] sm:$0xf]
  %v32 = vld [vmem:[%s0 + $0x2c] sm:$0xf]
  %v33 = vld [vmem:[%s0 + $0x30] sm:$0xf]
  %v34 = vld [vmem:[%s0 + $0x34] sm:$0xf]
  %v35 = vld [vmem:[%s0 + $0x38] sm:$0xf]
  %v36 = vld [vmem:[%s0 + $0x3c] sm:$0xf]
  %v37 = vld [vmem:[%s2] sm:$0xf]
  %v38 = vld [vmem:[%s2 + $0x4] sm:$0xf]
  %v39 = vld [vmem:[%s2 + $0x8] sm:$0xf]
  %v40 = vld [vmem:[%s2 + $0xc] sm:$0xf]
  %v57 = vunpack.c.l.b16 %v21
  %v58 = vunpack.c.l.b16 %v22
  %v59 = vunpack.c.l.b16 %v23
  %v60 = vunpack.c.l.b16 %v24
  %v61 = vunpack.c.l.b16 %v25
  %v62 = vunpack.c.l.b16 %v26
  %v63 = vunpack.c.l.b16 %v27
  %v64 = vunpack.c.l.b16 %v28
  %v65 = vunpack.c.l.b16 %v29
  %v66 = vunpack.c.l.b16 %v30
  %v67 = vunpack.c.l.b16 %v31
  %v68 = vunpack.c.l.b16 %v32
  %v69 = vunpack.c.l.b16 %v33
  %v70 = vunpack.c.l.b16 %v34
  %v71 = vunpack.c.l.b16 %v35
  %v72 = vunpack.c.l.b16 %v36
  %v73 = vpack.c.b16 %v58, %v57
  %v74 = vpack.c.b16 %v60, %v59
  %v75 = vpack.c.b16 %v62, %v61
  %v76 = vpack.c.b16 %v64, %v63
  %v77 = vpack.c.b16 %v66, %v65
  %v78 = vpack.c.b16 %v68, %v67
  %v79 = vpack.c.b16 %v70, %v69
  %v80 = vpack.c.b16 %v72, %v71
  %v85 = vunpack.c.l.b16 %v37
  %v86 = vunpack.c.l.b16 %v38
  %v87 = vunpack.c.l.b16 %v39
  %v88 = vunpack.c.l.b16 %v40
  %v89 = vpack.c.b16 %v86, %v85
  %v90 = vpack.c.b16 %v88, %v87
  %vm93 = vcmask 261120
  %v95 = vsel %vm93, %v73, 0
  %v98 = vsel %vm93, %v74, 0
  %v101 = vsel %vm93, %v75, 0
  %v104 = vsel %vm93, %v76, 0
  %v107 = vsel %vm93, %v77, 0
  %v110 = vsel %vm93, %v78, 0
  %v113 = vsel %vm93, %v79, 0
  %v116 = vsel %vm93, %v80, 0
  %118 = vmatpush.bf16.msra.mxu0 0
  %119 = vmatpush.bf16.msra.mxu0 0
  %120 = vmatpush.bf16.msra.mxu0 0
  %121 = vmatpush.bf16.msra.mxu0 0
  %122 = vmatpush.bf16.msra.mxu0 0
  %123 = vmatpush.bf16.msra.mxu0 0
  %124 = vmatpush.bf16.msra.mxu0 %v90
  %125 = vmatpush.bf16.msra.mxu0 %v89
  %126 = vmatmul.bf16.gmra.mxu0 %v95
  %v127 = vpop.f32.mrf.mxu0
  %v128 = vadd.f32 0.0, %v127
  %v129 = vpop.f32.mrf.mxu0
  %v130 = vadd.f32 0.0, %v129
  %131 = vmatmul.bf16.gmra.mxu0 %v98
  %v132 = vpop.f32.mrf.mxu0
  %v133 = vadd.f32 0.0, %v132
  %v134 = vpop.f32.mrf.mxu0
  %v135 = vadd.f32 0.0, %v134
  %136 = vmatmul.bf16.gmra.mxu0 %v101
  %v137 = vpop.f32.mrf.mxu0
  %v138 = vadd.f32 0.0, %v137
  %v139 = vpop.f32.mrf.mxu0
  %v140 = vadd.f32 0.0, %v139
  %141 = vmatmul.bf16.gmra.mxu0 %v104
  %v142 = vpop.f32.mrf.mxu0
  %v143 = vadd.f32 0.0, %v142
  %v144 = vpop.f32.mrf.mxu0
  %v145 = vadd.f32 0.0, %v144
  %146 = vmatmul.bf16.gmra.mxu0 %v107
  %v147 = vpop.f32.mrf.mxu0
  %v148 = vadd.f32 0.0, %v147
  %v149 = vpop.f32.mrf.mxu0
  %v150 = vadd.f32 0.0, %v149
  %151 = vmatmul.bf16.gmra.mxu0 %v110
  %v152 = vpop.f32.mrf.mxu0
  %v153 = vadd.f32 0.0, %v152
  %v154 = vpop.f32.mrf.mxu0
  %v155 = vadd.f32 0.0, %v154
  %156 = vmatmul.bf16.gmra.mxu0 %v113
  %v157 = vpop.f32.mrf.mxu0
  %v158 = vadd.f32 0.0, %v157
  %v159 = vpop.f32.mrf.mxu0
  %v160 = vadd.f32 0.0, %v159
  %161 = vmatmul.bf16.gmra.mxu0 %v116
  %v162 = vpop.f32.mrf.mxu0
  %v163 = vadd.f32 0.0, %v162
  %v164 = vpop.f32.mrf.mxu0
  %v165 = vadd.f32 0.0, %v164
  %166 = vdwg.mxu0
  %v167 = vld [vmem:[%s3] sm:$0x1]
  %v168 = vperm.slane %v167, 0
  %v169 = vmul.f32 %v128, %v168
  %v170 = vmul.f32 %v130, %v168
  %v171 = vmul.f32 %v133, %v168
  %v172 = vmul.f32 %v135, %v168
  %v173 = vmul.f32 %v138, %v168
  %v174 = vmul.f32 %v140, %v168
  %v175 = vmul.f32 %v143, %v168
  %v176 = vmul.f32 %v145, %v168
  %v177 = vmul.f32 %v148, %v168
  %v178 = vmul.f32 %v150, %v168
  %v179 = vmul.f32 %v153, %v168
  %v180 = vmul.f32 %v155, %v168
  %v181 = vmul.f32 %v158, %v168
  %v182 = vmul.f32 %v160, %v168
  %v183 = vmul.f32 %v163, %v168
  %v184 = vmul.f32 %v165, %v168
  %v185 = vld [vmem:[%s3 + $0x1] sm:$0x1]
  %v186 = vperm.slane %v185, 0
  %v187 = vadd.f32 %v169, %v186
  %v188 = vadd.f32 %v170, %v186
  %v189 = vadd.f32 %v171, %v186
  %v190 = vadd.f32 %v172, %v186
  %v191 = vadd.f32 %v173, %v186
  %v192 = vadd.f32 %v174, %v186
  %v193 = vadd.f32 %v175, %v186
  %v194 = vadd.f32 %v176, %v186
  %v195 = vadd.f32 %v177, %v186
  %v196 = vadd.f32 %v178, %v186
  %v197 = vadd.f32 %v179, %v186
  %v198 = vadd.f32 %v180, %v186
  %v199 = vadd.f32 %v181, %v186
  %v200 = vadd.f32 %v182, %v186
  %v201 = vadd.f32 %v183, %v186
  %v202 = vadd.f32 %v184, %v186
  %v203 = vmax.f32 %v187, 0.0
  %v204 = vmax.f32 %v188, 0.0
  %v205 = vmax.f32 %v189, 0.0
  %v206 = vmax.f32 %v190, 0.0
  %v207 = vmax.f32 %v191, 0.0
  %v208 = vmax.f32 %v192, 0.0
  %v209 = vmax.f32 %v193, 0.0
  %v210 = vmax.f32 %v194, 0.0
  %v211 = vmax.f32 %v195, 0.0
  %v212 = vmax.f32 %v196, 0.0
  %v213 = vmax.f32 %v197, 0.0
  %v214 = vmax.f32 %v198, 0.0
  %v215 = vmax.f32 %v199, 0.0
  %v216 = vmax.f32 %v200, 0.0
  %v217 = vmax.f32 %v201, 0.0
  %v218 = vmax.f32 %v202, 0.0
  %219 = vst.msk [vmem:[#allocation2 + $0x8] sm:$0xff] %vm18, %v203
  %220 = vst.msk [vmem:[#allocation2 + $0x10] sm:$0xff] %vm18, %v204
  %221 = vst.msk [vmem:[#allocation2 + $0x18] sm:$0xff] %vm18, %v205
  %222 = vst.msk [vmem:[#allocation2 + $0x20] sm:$0xff] %vm18, %v206
  %223 = vst.msk [vmem:[#allocation2 + $0x28] sm:$0xff] %vm18, %v207
  %224 = vst.msk [vmem:[#allocation2 + $0x30] sm:$0xff] %vm18, %v208
  %225 = vst.msk [vmem:[#allocation2 + $0x38] sm:$0xff] %vm18, %v209
  %226 = vst.msk [vmem:[#allocation2 + $0x40] sm:$0xff] %vm18, %v210
  %227 = vst.msk [vmem:[#allocation2 + $0x48] sm:$0xff] %vm18, %v211
  %228 = vst.msk [vmem:[#allocation2 + $0x50] sm:$0xff] %vm18, %v212
  %229 = vst.msk [vmem:[#allocation2 + $0x58] sm:$0xff] %vm18, %v213
  %230 = vst.msk [vmem:[#allocation2 + $0x60] sm:$0xff] %vm18, %v214
  %231 = vst.msk [vmem:[#allocation2 + $0x68] sm:$0xff] %vm18, %v215
  %232 = vst.msk [vmem:[#allocation2 + $0x70] sm:$0xff] %vm18, %v216
  %233 = vst.msk [vmem:[#allocation2 + $0x78] sm:$0xff] %vm18, %v217
  %234 = vst.msk [vmem:[#allocation2 + $0x80] sm:$0xff] %vm18, %v218
  %v235 = vld [vmem:[#allocation2 + $0x3] sm:$0xff]
  %v236 = vld [vmem:[#allocation2 + $0xb] sm:$0xff]
  %v237 = vld [vmem:[#allocation2 + $0x13] sm:$0xff]
  %v238 = vld [vmem:[#allocation2 + $0x1b] sm:$0xff]
  %v239 = vld [vmem:[#allocation2 + $0x23] sm:$0xff]
  %v240 = vld [vmem:[#allocation2 + $0x2b] sm:$0xff]
  %v241 = vld [vmem:[#allocation2 + $0x33] sm:$0xff]
  %v242 = vld [vmem:[#allocation2 + $0x3b] sm:$0xff]
  %v243 = vld [vmem:[#allocation2 + $0x43] sm:$0xff]
  %v244 = vld [vmem:[#allocation2 + $0x4b] sm:$0xff]
  %v245 = vld [vmem:[#allocation2 + $0x53] sm:$0xff]
  %v246 = vld [vmem:[#allocation2 + $0x5b] sm:$0xff]
  %v247 = vld [vmem:[#allocation2 + $0x63] sm:$0xff]
  %v248 = vld [vmem:[#allocation2 + $0x6b] sm:$0xff]
  %v249 = vld [vmem:[#allocation2 + $0x73] sm:$0xff]
  %v250 = vld [vmem:[#allocation2 + $0x7b] sm:$0xff]
  %v251 = vld [vmem:[#allocation2 + $0x4] sm:$0xff]
  %v252 = vld [vmem:[#allocation2 + $0xc] sm:$0xff]
  %v253 = vld [vmem:[#allocation2 + $0x14] sm:$0xff]
  %v254 = vld [vmem:[#allocation2 + $0x1c] sm:$0xff]
  %v255 = vld [vmem:[#allocation2 + $0x24] sm:$0xff]
  %v256 = vld [vmem:[#allocation2 + $0x2c] sm:$0xff]
  %v257 = vld [vmem:[#allocation2 + $0x34] sm:$0xff]
  %v258 = vld [vmem:[#allocation2 + $0x3c] sm:$0xff]
  %v259 = vld [vmem:[#allocation2 + $0x44] sm:$0xff]
  %v260 = vld [vmem:[#allocation2 + $0x4c] sm:$0xff]
  %v261 = vld [vmem:[#allocation2 + $0x54] sm:$0xff]
  %v262 = vld [vmem:[#allocation2 + $0x5c] sm:$0xff]
  %v263 = vld [vmem:[#allocation2 + $0x64] sm:$0xff]
  %v264 = vld [vmem:[#allocation2 + $0x6c] sm:$0xff]
  %v265 = vld [vmem:[#allocation2 + $0x74] sm:$0xff]
  %v266 = vld [vmem:[#allocation2 + $0x7c] sm:$0xff]
  %v267 = vld [vmem:[#allocation2 + $0x5] sm:$0xff]
  %v268 = vld [vmem:[#allocation2 + $0xd] sm:$0xff]
  %v269 = vld [vmem:[#allocation2 + $0x15] sm:$0xff]
  %v270 = vld [vmem:[#allocation2 + $0x1d] sm:$0xff]
  %v271 = vld [vmem:[#allocation2 + $0x25] sm:$0xff]
  %v272 = vld [vmem:[#allocation2 + $0x2d] sm:$0xff]
  %v273 = vld [vmem:[#allocation2 + $0x35] sm:$0xff]
  %v274 = vld [vmem:[#allocation2 + $0x3d] sm:$0xff]
  %v275 = vld [vmem:[#allocation2 + $0x45] sm:$0xff]
  %v276 = vld [vmem:[#allocation2 + $0x4d] sm:$0xff]
  %v277 = vld [vmem:[#allocation2 + $0x55] sm:$0xff]
  %v278 = vld [vmem:[#allocation2 + $0x5d] sm:$0xff]
  %v279 = vld [vmem:[#allocation2 + $0x65] sm:$0xff]
  %v280 = vld [vmem:[#allocation2 + $0x6d] sm:$0xff]
  %v281 = vld [vmem:[#allocation2 + $0x75] sm:$0xff]
  %v282 = vld [vmem:[#allocation2 + $0x7d] sm:$0xff]
  %v283 = vld [vmem:[#allocation2 + $0x7] sm:$0xff]
  %v284 = vld [vmem:[#allocation2 + $0xf] sm:$0xff]
  %v285 = vld [vmem:[#allocation2 + $0x17] sm:$0xff]
  %v286 = vld [vmem:[#allocation2 + $0x1f] sm:$0xff]
  %v287 = vld [vmem:[#allocation2 + $0x27] sm:$0xff]
  %v288 = vld [vmem:[#allocation2 + $0x2f] sm:$0xff]
  %v289 = vld [vmem:[#allocation2 + $0x37] sm:$0xff]
  %v290 = vld [vmem:[#allocation2 + $0x3f] sm:$0xff]
  %v291 = vld [vmem:[#allocation2 + $0x47] sm:$0xff]
  %v292 = vld [vmem:[#allocation2 + $0x4f] sm:$0xff]
  %v293 = vld [vmem:[#allocation2 + $0x57] sm:$0xff]
  %v294 = vld [vmem:[#allocation2 + $0x5f] sm:$0xff]
  %v295 = vld [vmem:[#allocation2 + $0x67] sm:$0xff]
  %v296 = vld [vmem:[#allocation2 + $0x6f] sm:$0xff]
  %v297 = vld [vmem:[#allocation2 + $0x77] sm:$0xff]
  %v298 = vld [vmem:[#allocation2 + $0x7f] sm:$0xff]
  %v299 = vld [vmem:[#allocation2 + $0x8] sm:$0xff]
  %v300 = vld [vmem:[#allocation2 + $0x10] sm:$0xff]
  %v301 = vld [vmem:[#allocation2 + $0x18] sm:$0xff]
  %v302 = vld [vmem:[#allocation2 + $0x20] sm:$0xff]
  %v303 = vld [vmem:[#allocation2 + $0x28] sm:$0xff]
  %v304 = vld [vmem:[#allocation2 + $0x30] sm:$0xff]
  %v305 = vld [vmem:[#allocation2 + $0x38] sm:$0xff]
  %v306 = vld [vmem:[#allocation2 + $0x40] sm:$0xff]
  %v307 = vld [vmem:[#allocation2 + $0x48] sm:$0xff]
  %v308 = vld [vmem:[#allocation2 + $0x50] sm:$0xff]
  %v309 = vld [vmem:[#allocation2 + $0x58] sm:$0xff]
  %v310 = vld [vmem:[#allocation2 + $0x60] sm:$0xff]
  %v311 = vld [vmem:[#allocation2 + $0x68] sm:$0xff]
  %v312 = vld [vmem:[#allocation2 + $0x70] sm:$0xff]
  %v313 = vld [vmem:[#allocation2 + $0x78] sm:$0xff]
  %v314 = vld [vmem:[#allocation2 + $0x80] sm:$0xff]
  %v315 = vld [vmem:[#allocation2 + $0x9] sm:$0xff]
  %v316 = vld [vmem:[#allocation2 + $0x11] sm:$0xff]
  %v317 = vld [vmem:[#allocation2 + $0x19] sm:$0xff]
  %v318 = vld [vmem:[#allocation2 + $0x21] sm:$0xff]
  %v319 = vld [vmem:[#allocation2 + $0x29] sm:$0xff]
  %v320 = vld [vmem:[#allocation2 + $0x31] sm:$0xff]
  %v321 = vld [vmem:[#allocation2 + $0x39] sm:$0xff]
  %v322 = vld [vmem:[#allocation2 + $0x41] sm:$0xff]
  %v323 = vld [vmem:[#allocation2 + $0x49] sm:$0xff]
  %v324 = vld [vmem:[#allocation2 + $0x51] sm:$0xff]
  %v325 = vld [vmem:[#allocation2 + $0x59] sm:$0xff]
  %v326 = vld [vmem:[#allocation2 + $0x61] sm:$0xff]
  %v327 = vld [vmem:[#allocation2 + $0x69] sm:$0xff]
  %v328 = vld [vmem:[#allocation2 + $0x71] sm:$0xff]
  %v329 = vld [vmem:[#allocation2 + $0x79] sm:$0xff]
  %v330 = vld [vmem:[#allocation2 + $0x81] sm:$0xff]
  %v331 = vld [vmem:[#allocation2 + $0x83] sm:$0xff]
  %v332 = vld [vmem:[#allocation2 + $0x84] sm:$0xff]
  %v333 = vld [vmem:[#allocation2 + $0x85] sm:$0xff]
  %350 = vrot.lane.b32.xlu0 %v251, 16
  %v351 = vpop.permute.xlu0 %350
  %352 = vrot.lane.b32.xlu0 %v252, 16
  %v353 = vpop.permute.xlu0 %352
  %354 = vrot.lane.b32.xlu0 %v253, 16
  %v355 = vpop.permute.xlu0 %354
  %356 = vrot.lane.b32.xlu0 %v254, 16
  %v357 = vpop.permute.xlu0 %356
  %358 = vrot.lane.b32.xlu0 %v255, 16
  %v359 = vpop.permute.xlu0 %358
  %360 = vrot.lane.b32.xlu0 %v256, 16
  %v361 = vpop.permute.xlu0 %360
  %362 = vrot.lane.b32.xlu0 %v257, 16
  %v363 = vpop.permute.xlu0 %362
  %364 = vrot.lane.b32.xlu0 %v258, 16
  %v365 = vpop.permute.xlu0 %364
  %366 = vrot.lane.b32.xlu0 %v259, 16
  %v367 = vpop.permute.xlu0 %366
  %368 = vrot.lane.b32.xlu0 %v260, 16
  %v369 = vpop.permute.xlu0 %368
  %370 = vrot.lane.b32.xlu0 %v261, 16
  %v371 = vpop.permute.xlu0 %370
  %372 = vrot.lane.b32.xlu0 %v262, 16
  %v373 = vpop.permute.xlu0 %372
  %374 = vrot.lane.b32.xlu0 %v263, 16
  %v375 = vpop.permute.xlu0 %374
  %376 = vrot.lane.b32.xlu0 %v264, 16
  %v377 = vpop.permute.xlu0 %376
  %378 = vrot.lane.b32.xlu0 %v265, 16
  %v379 = vpop.permute.xlu0 %378
  %380 = vrot.lane.b32.xlu0 %v266, 16
  %v381 = vpop.permute.xlu0 %380
  %414 = vrot.lane.b32.xlu0 %v267, 32
  %v415 = vpop.permute.xlu0 %414
  %416 = vrot.lane.b32.xlu0 %v268, 32
  %v417 = vpop.permute.xlu0 %416
  %418 = vrot.lane.b32.xlu0 %v269, 32
  %v419 = vpop.permute.xlu0 %418
  %420 = vrot.lane.b32.xlu0 %v270, 32
  %v421 = vpop.permute.xlu0 %420
  %422 = vrot.lane.b32.xlu0 %v271, 32
  %v423 = vpop.permute.xlu0 %422
  %424 = vrot.lane.b32.xlu0 %v272, 32
  %v425 = vpop.permute.xlu0 %424
  %426 = vrot.lane.b32.xlu0 %v273, 32
  %v427 = vpop.permute.xlu0 %426
  %428 = vrot.lane.b32.xlu0 %v274, 32
  %v429 = vpop.permute.xlu0 %428
  %430 = vrot.lane.b32.xlu0 %v275, 32
  %v431 = vpop.permute.xlu0 %430
  %432 = vrot.lane.b32.xlu0 %v276, 32
  %v433 = vpop.permute.xlu0 %432
  %434 = vrot.lane.b32.xlu0 %v277, 32
  %v435 = vpop.permute.xlu0 %434
  %436 = vrot.lane.b32.xlu0 %v278, 32
  %v437 = vpop.permute.xlu0 %436
  %438 = vrot.lane.b32.xlu0 %v279, 32
  %v439 = vpop.permute.xlu0 %438
  %440 = vrot.lane.b32.xlu0 %v280, 32
  %v441 = vpop.permute.xlu0 %440
  %442 = vrot.lane.b32.xlu0 %v281, 32
  %v443 = vpop.permute.xlu0 %442
  %444 = vrot.lane.b32.xlu0 %v282, 32
  %v445 = vpop.permute.xlu0 %444
  %478 = vrot.lane.b32.xlu0 %v283, 48
  %v479 = vpop.permute.xlu0 %478
  %480 = vrot.lane.b32.xlu0 %v284, 48
  %v481 = vpop.permute.xlu0 %480
  %482 = vrot.lane.b32.xlu0 %v285, 48
  %v483 = vpop.permute.xlu0 %482
  %484 = vrot.lane.b32.xlu0 %v286, 48
  %v485 = vpop.permute.xlu0 %484
  %486 = vrot.lane.b32.xlu0 %v287, 48
  %v487 = vpop.permute.xlu0 %486
  %488 = vrot.lane.b32.xlu0 %v288, 48
  %v489 = vpop.permute.xlu0 %488
  %490 = vrot.lane.b32.xlu0 %v289, 48
  %v491 = vpop.permute.xlu0 %490
  %492 = vrot.lane.b32.xlu0 %v290, 48
  %v493 = vpop.permute.xlu0 %492
  %494 = vrot.lane.b32.xlu0 %v291, 48
  %v495 = vpop.permute.xlu0 %494
  %496 = vrot.lane.b32.xlu0 %v292, 48
  %v497 = vpop.permute.xlu0 %496
  %498 = vrot.lane.b32.xlu0 %v293, 48
  %v499 = vpop.permute.xlu0 %498
  %500 = vrot.lane.b32.xlu0 %v294, 48
  %v501 = vpop.permute.xlu0 %500
  %502 = vrot.lane.b32.xlu0 %v295, 48
  %v503 = vpop.permute.xlu0 %502
  %504 = vrot.lane.b32.xlu0 %v296, 48
  %v505 = vpop.permute.xlu0 %504
  %506 = vrot.lane.b32.xlu0 %v297, 48
  %v507 = vpop.permute.xlu0 %506
  %508 = vrot.lane.b32.xlu0 %v298, 48
  %v509 = vpop.permute.xlu0 %508
  %542 = vrot.lane.b32.xlu0 %v299, 64
  %v543 = vpop.permute.xlu0 %542
  %544 = vrot.lane.b32.xlu0 %v300, 64
  %v545 = vpop.permute.xlu0 %544
  %546 = vrot.lane.b32.xlu0 %v301, 64
  %v547 = vpop.permute.xlu0 %546
  %548 = vrot.lane.b32.xlu0 %v302, 64
  %v549 = vpop.permute.xlu0 %548
  %550 = vrot.lane.b32.xlu0 %v303, 64
  %v551 = vpop.permute.xlu0 %550
  %552 = vrot.lane.b32.xlu0 %v304, 64
  %v553 = vpop.permute.xlu0 %552
  %554 = vrot.lane.b32.xlu0 %v305, 64
  %v555 = vpop.permute.xlu0 %554
  %556 = vrot.lane.b32.xlu0 %v306, 64
  %v557 = vpop.permute.xlu0 %556
  %558 = vrot.lane.b32.xlu0 %v307, 64
  %v559 = vpop.permute.xlu0 %558
  %560 = vrot.lane.b32.xlu0 %v308, 64
  %v561 = vpop.permute.xlu0 %560
  %562 = vrot.lane.b32.xlu0 %v309, 64
  %v563 = vpop.permute.xlu0 %562
  %564 = vrot.lane.b32.xlu0 %v310, 64
  %v565 = vpop.permute.xlu0 %564
  %566 = vrot.lane.b32.xlu0 %v311, 64
  %v567 = vpop.permute.xlu0 %566
  %568 = vrot.lane.b32.xlu0 %v312, 64
  %v569 = vpop.permute.xlu0 %568
  %570 = vrot.lane.b32.xlu0 %v313, 64
  %v571 = vpop.permute.xlu0 %570
  %572 = vrot.lane.b32.xlu0 %v314, 64
  %v573 = vpop.permute.xlu0 %572
  %606 = vrot.lane.b32.xlu0 %v315, 80
  %v607 = vpop.permute.xlu0 %606
  %608 = vrot.lane.b32.xlu0 %v316, 80
  %v609 = vpop.permute.xlu0 %608
  %610 = vrot.lane.b32.xlu0 %v317, 80
  %v611 = vpop.permute.xlu0 %610
  %612 = vrot.lane.b32.xlu0 %v318, 80
  %v613 = vpop.permute.xlu0 %612
  %614 = vrot.lane.b32.xlu0 %v319, 80
  %v615 = vpop.permute.xlu0 %614
  %616 = vrot.lane.b32.xlu0 %v320, 80
  %v617 = vpop.permute.xlu0 %616
  %618 = vrot.lane.b32.xlu0 %v321, 80
  %v619 = vpop.permute.xlu0 %618
  %620 = vrot.lane.b32.xlu0 %v322, 80
  %v621 = vpop.permute.xlu0 %620
  %622 = vrot.lane.b32.xlu0 %v323, 80
  %v623 = vpop.permute.xlu0 %622
  %624 = vrot.lane.b32.xlu0 %v324, 80
  %v625 = vpop.permute.xlu0 %624
  %626 = vrot.lane.b32.xlu0 %v325, 80
  %v627 = vpop.permute.xlu0 %626
  %628 = vrot.lane.b32.xlu0 %v326, 80
  %v629 = vpop.permute.xlu0 %628
  %630 = vrot.lane.b32.xlu0 %v327, 80
  %v631 = vpop.permute.xlu0 %630
  %632 = vrot.lane.b32.xlu0 %v328, 80
  %v633 = vpop.permute.xlu0 %632
  %634 = vrot.lane.b32.xlu0 %v329, 80
  %v635 = vpop.permute.xlu0 %634
  %636 = vrot.lane.b32.xlu0 %v330, 80
  %v637 = vpop.permute.xlu0 %636
  %670 = vrot.lane.b32.xlu0 %v236, 96
  %v671 = vpop.permute.xlu0 %670
  %672 = vrot.lane.b32.xlu0 %v237, 96
  %v673 = vpop.permute.xlu0 %672
  %674 = vrot.lane.b32.xlu0 %v238, 96
  %v675 = vpop.permute.xlu0 %674
  %676 = vrot.lane.b32.xlu0 %v239, 96
  %v677 = vpop.permute.xlu0 %676
  %678 = vrot.lane.b32.xlu0 %v240, 96
  %v679 = vpop.permute.xlu0 %678
  %680 = vrot.lane.b32.xlu0 %v241, 96
  %v681 = vpop.permute.xlu0 %680
  %682 = vrot.lane.b32.xlu0 %v242, 96
  %v683 = vpop.permute.xlu0 %682
  %684 = vrot.lane.b32.xlu0 %v243, 96
  %v685 = vpop.permute.xlu0 %684
  %686 = vrot.lane.b32.xlu0 %v244, 96
  %v687 = vpop.permute.xlu0 %686
  %688 = vrot.lane.b32.xlu0 %v245, 96
  %v689 = vpop.permute.xlu0 %688
  %690 = vrot.lane.b32.xlu0 %v246, 96
  %v691 = vpop.permute.xlu0 %690
  %692 = vrot.lane.b32.xlu0 %v247, 96
  %v693 = vpop.permute.xlu0 %692
  %694 = vrot.lane.b32.xlu0 %v248, 96
  %v695 = vpop.permute.xlu0 %694
  %696 = vrot.lane.b32.xlu0 %v249, 96
  %v697 = vpop.permute.xlu0 %696
  %698 = vrot.lane.b32.xlu0 %v250, 96
  %v699 = vpop.permute.xlu0 %698
  %700 = vrot.lane.b32.xlu0 %v331, 96
  %v701 = vpop.permute.xlu0 %700
  %719 = vrot.lane.b32.xlu0 %v252, 112
  %v720 = vpop.permute.xlu0 %719
  %721 = vrot.lane.b32.xlu0 %v253, 112
  %v722 = vpop.permute.xlu0 %721
  %723 = vrot.lane.b32.xlu0 %v254, 112
  %v724 = vpop.permute.xlu0 %723
  %725 = vrot.lane.b32.xlu0 %v255, 112
  %v726 = vpop.permute.xlu0 %725
  %727 = vrot.lane.b32.xlu0 %v256, 112
  %v728 = vpop.permute.xlu0 %727
  %729 = vrot.lane.b32.xlu0 %v257, 112
  %v730 = vpop.permute.xlu0 %729
  %731 = vrot.lane.b32.xlu0 %v258, 112
  %v732 = vpop.permute.xlu0 %731
  %733 = vrot.lane.b32.xlu0 %v259, 112
  %v734 = vpop.permute.xlu0 %733
  %735 = vrot.lane.b32.xlu0 %v260, 112
  %v736 = vpop.permute.xlu0 %735
  %737 = vrot.lane.b32.xlu0 %v261, 112
  %v738 = vpop.permute.xlu0 %737
  %739 = vrot.lane.b32.xlu0 %v262, 112
  %v740 = vpop.permute.xlu0 %739
  %741 = vrot.lane.b32.xlu0 %v263, 112
  %v742 = vpop.permute.xlu0 %741
  %743 = vrot.lane.b32.xlu0 %v264, 112
  %v744 = vpop.permute.xlu0 %743
  %745 = vrot.lane.b32.xlu0 %v265, 112
  %v746 = vpop.permute.xlu0 %745
  %747 = vrot.lane.b32.xlu0 %v266, 112
  %v748 = vpop.permute.xlu0 %747
  %749 = vrot.lane.b32.xlu0 %v332, 112
  %v750 = vpop.permute.xlu0 %749
  %v767 = vsel %vm18, %v235, %v351
  %v768 = vsel %vm18, %v236, %v353
  %v769 = vsel %vm18, %v237, %v355
  %v770 = vsel %vm18, %v238, %v357
  %v771 = vsel %vm18, %v239, %v359
  %v772 = vsel %vm18, %v240, %v361
  %v773 = vsel %vm18, %v241, %v363
  %v774 = vsel %vm18, %v242, %v365
  %v775 = vsel %vm18, %v243, %v367
  %v776 = vsel %vm18, %v244, %v369
  %v777 = vsel %vm18, %v245, %v371
  %v778 = vsel %vm18, %v246, %v373
  %v779 = vsel %vm18, %v247, %v375
  %v780 = vsel %vm18, %v248, %v377
  %v781 = vsel %vm18, %v249, %v379
  %v782 = vsel %vm18, %v250, %v381
  %v783 = vsel %vm93, %v767, %v415
  %v784 = vsel %vm93, %v768, %v417
  %v785 = vsel %vm93, %v769, %v419
  %v786 = vsel %vm93, %v770, %v421
  %v787 = vsel %vm93, %v771, %v423
  %v788 = vsel %vm93, %v772, %v425
  %v789 = vsel %vm93, %v773, %v427
  %v790 = vsel %vm93, %v774, %v429
  %v791 = vsel %vm93, %v775, %v431
  %v792 = vsel %vm93, %v776, %v433
  %v793 = vsel %vm93, %v777, %v435
  %v794 = vsel %vm93, %v778, %v437
  %v795 = vsel %vm93, %v779, %v439
  %v796 = vsel %vm93, %v780, %v441
  %v797 = vsel %vm93, %v781, %v443
  %v798 = vsel %vm93, %v782, %v445
  %vm799 = vcmask 392192
  %v800 = vsel %vm799, %v783, %v479
  %v801 = vsel %vm799, %v784, %v481
  %v802 = vsel %vm799, %v785, %v483
  %v803 = vsel %vm799, %v786, %v485
  %v804 = vsel %vm799, %v787, %v487
  %v805 = vsel %vm799, %v788, %v489
  %v806 = vsel %vm799, %v789, %v491
  %v807 = vsel %vm799, %v790, %v493
  %v808 = vsel %vm799, %v791, %v495
  %v809 = vsel %vm799, %v792, %v497
  %v810 = vsel %vm799, %v793, %v499
  %v811 = vsel %vm799, %v794, %v501
  %v812 = vsel %vm799, %v795, %v503
  %v813 = vsel %vm799, %v796, %v505
  %v814 = vsel %vm799, %v797, %v507
  %v815 = vsel %vm799, %v798, %v509
  %vm816 = vcmask 523264
  %v817 = vsel %vm816, %v800, %v543
  %v818 = vsel %vm816, %v801, %v545
  %v819 = vsel %vm816, %v802, %v547
  %v820 = vsel %vm816, %v803, %v549
  %v821 = vsel %vm816, %v804, %v551
  %v822 = vsel %vm816, %v805, %v553
  %v823 = vsel %vm816, %v806, %v555
  %v824 = vsel %vm816, %v807, %v557
  %v825 = vsel %vm816, %v808, %v559
  %v826 = vsel %vm816, %v809, %v561
  %v827 = vsel %vm816, %v810, %v563
  %v828 = vsel %vm816, %v811, %v565
  %v829 = vsel %vm816, %v812, %v567
  %v830 = vsel %vm816, %v813, %v569
  %v831 = vsel %vm816, %v814, %v571
  %v832 = vsel %vm816, %v815, %v573
  %vm833 = vcmask 654336
  %v834 = vsel %vm833, %v817, %v607
  %v835 = vsel %vm833, %v818, %v609
  %v836 = vsel %vm833, %v819, %v611
  %v837 = vsel %vm833, %v820, %v613
  %v838 = vsel %vm833, %v821, %v615
  %v839 = vsel %vm833, %v822, %v617
  %v840 = vsel %vm833, %v823, %v619
  %v841 = vsel %vm833, %v824, %v621
  %v842 = vsel %vm833, %v825, %v623
  %v843 = vsel %vm833, %v826, %v625
  %v844 = vsel %vm833, %v827, %v627
  %v845 = vsel %vm833, %v828, %v629
  %v846 = vsel %vm833, %v829, %v631
  %v847 = vsel %vm833, %v830, %v633
  %v848 = vsel %vm833, %v831, %v635
  %v849 = vsel %vm833, %v832, %v637
  %vm850 = vcmask 785408
  %v851 = vsel %vm850, %v834, %v671
  %v852 = vsel %vm850, %v835, %v673
  %v853 = vsel %vm850, %v836, %v675
  %v854 = vsel %vm850, %v837, %v677
  %v855 = vsel %vm850, %v838, %v679
  %v856 = vsel %vm850, %v839, %v681
  %v857 = vsel %vm850, %v840, %v683
  %v858 = vsel %vm850, %v841, %v685
  %v859 = vsel %vm850, %v842, %v687
  %v860 = vsel %vm850, %v843, %v689
  %v861 = vsel %vm850, %v844, %v691
  %v862 = vsel %vm850, %v845, %v693
  %v863 = vsel %vm850, %v846, %v695
  %v864 = vsel %vm850, %v847, %v697
  %v865 = vsel %vm850, %v848, %v699
  %v866 = vsel %vm850, %v849, %v701
  %vm867 = vcmask 916480
  %v868 = vsel %vm867, %v851, %v720
  %v869 = vsel %vm867, %v852, %v722
  %v870 = vsel %vm867, %v853, %v724
  %v871 = vsel %vm867, %v854, %v726
  %v872 = vsel %vm867, %v855, %v728
  %v873 = vsel %vm867, %v856, %v730
  %v874 = vsel %vm867, %v857, %v732
  %v875 = vsel %vm867, %v858, %v734
  %v876 = vsel %vm867, %v859, %v736
  %v877 = vsel %vm867, %v860, %v738
  %v878 = vsel %vm867, %v861, %v740
  %v879 = vsel %vm867, %v862, %v742
  %v880 = vsel %vm867, %v863, %v744
  %v881 = vsel %vm867, %v864, %v746
  %v882 = vsel %vm867, %v865, %v748
  %v883 = vsel %vm867, %v866, %v750
  %v884 = vld [vmem:[%s1] sm:$0xff]
  %v885 = vld [vmem:[%s1 + $0x8] sm:$0xff]
  %v886 = vld [vmem:[%s1 + $0x10] sm:$0xff]
  %v887 = vld [vmem:[%s1 + $0x18] sm:$0xff]
  %v888 = vld [vmem:[%s1 + $0x20] sm:$0xff]
  %v889 = vld [vmem:[%s1 + $0x28] sm:$0xff]
  %v890 = vld [vmem:[%s1 + $0x30] sm:$0xff]
  %v891 = vld [vmem:[%s1 + $0x38] sm:$0xff]
  %v892 = vld [vmem:[%s1 + $0x40] sm:$0xff]
  %v893 = vld [vmem:[%s1 + $0x48] sm:$0xff]
  %v894 = vld [vmem:[%s1 + $0x50] sm:$0xff]
  %v895 = vld [vmem:[%s1 + $0x58] sm:$0xff]
  %v896 = vld [vmem:[%s1 + $0x60] sm:$0xff]
  %v897 = vld [vmem:[%s1 + $0x68] sm:$0xff]
  %v898 = vld [vmem:[%s1 + $0x70] sm:$0xff]
  %v899 = vld [vmem:[%s1 + $0x78] sm:$0xff]
  %v900 = vld [vmem:[%s1 + $0x80] sm:$0xff]
  %v901 = vld [vmem:[%s1 + $0x88] sm:$0xff]
  %v902 = vld [vmem:[%s1 + $0x90] sm:$0xff]
  %v903 = vld [vmem:[%s1 + $0x98] sm:$0xff]
  %v904 = vld [vmem:[%s1 + $0xa0] sm:$0xff]
  %v905 = vld [vmem:[%s1 + $0xa8] sm:$0xff]
  %v906 = vld [vmem:[%s1 + $0xb0] sm:$0xff]
  %v907 = vld [vmem:[%s1 + $0xb8] sm:$0xff]
  %v908 = vld [vmem:[%s1 + $0xc0] sm:$0xff]
  %v909 = vld [vmem:[%s1 + $0xc8] sm:$0xff]
  %v910 = vld [vmem:[%s1 + $0xd0] sm:$0xff]
  %v911 = vld [vmem:[%s1 + $0xd8] sm:$0xff]
  %v912 = vld [vmem:[%s1 + $0xe0] sm:$0xff]
  %v913 = vld [vmem:[%s1 + $0xe8] sm:$0xff]
  %v914 = vld [vmem:[%s1 + $0xf0] sm:$0xff]
  %v915 = vld [vmem:[%s1 + $0xf8] sm:$0xff]
  %v916 = vmul.f32 %v868, %v884
  %v917 = vmul.f32 %v268, %v885
  %v918 = vmul.f32 %v869, %v886
  %v919 = vmul.f32 %v269, %v887
  %v920 = vmul.f32 %v870, %v888
  %v921 = vmul.f32 %v270, %v889
  %v922 = vmul.f32 %v871, %v890
  %v923 = vmul.f32 %v271, %v891
  %v924 = vmul.f32 %v872, %v892
  %v925 = vmul.f32 %v272, %v893
  %v926 = vmul.f32 %v873, %v894
  %v927 = vmul.f32 %v273, %v895
  %v928 = vmul.f32 %v874, %v896
  %v929 = vmul.f32 %v274, %v897
  %v930 = vmul.f32 %v875, %v898
  %v931 = vmul.f32 %v275, %v899
  %v932 = vmul.f32 %v876, %v900
  %v933 = vmul.f32 %v276, %v901
  %v934 = vmul.f32 %v877, %v902
  %v935 = vmul.f32 %v277, %v903
  %v936 = vmul.f32 %v878, %v904
  %v937 = vmul.f32 %v278, %v905
  %v938 = vmul.f32 %v879, %v906
  %v939 = vmul.f32 %v279, %v907
  %v940 = vmul.f32 %v880, %v908
  %v941 = vmul.f32 %v280, %v909
  %v942 = vmul.f32 %v881, %v910
  %v943 = vmul.f32 %v281, %v911
  %v944 = vmul.f32 %v882, %v912
  %v945 = vmul.f32 %v282, %v913
  %v946 = vmul.f32 %v883, %v914
  %v947 = vmul.f32 %v333, %v915
  %v948 = vpack.c.bf16 %v918, %v916
  %v949 = vpack.c.bf16 %v919, %v917
  %v950 = vpack.c.bf16 %v922, %v920
  %v951 = vpack.c.bf16 %v923, %v921
  %v952 = vpack.c.bf16 %v926, %v924
  %v953 = vpack.c.bf16 %v927, %v925
  %v954 = vpack.c.bf16 %v930, %v928
  %v955 = vpack.c.bf16 %v931, %v929
  %v956 = vpack.c.bf16 %v934, %v932
  %v957 = vpack.c.bf16 %v935, %v933
  %v958 = vpack.c.bf16 %v938, %v936
  %v959 = vpack.c.bf16 %v939, %v937
  %v960 = vpack.c.bf16 %v942, %v940
  %v961 = vpack.c.bf16 %v943, %v941
  %v962 = vpack.c.bf16 %v946, %v944
  %v963 = vpack.c.bf16 %v947, %v945
  %v964 = vld [vmem:[%s2 + $0x10] sm:$0xf]
  %v965 = vld [vmem:[%s2 + $0x14] sm:$0xf]
  %v966 = vld [vmem:[%s2 + $0x18] sm:$0xf]
  %v967 = vld [vmem:[%s2 + $0x1c] sm:$0xf]
  %v968 = vld [vmem:[%s2 + $0x20] sm:$0xf]
  %v969 = vld [vmem:[%s2 + $0x24] sm:$0xf]
  %v970 = vld [vmem:[%s2 + $0x28] sm:$0xf]
  %v971 = vld [vmem:[%s2 + $0x2c] sm:$0xf]
  %v972 = vld [vmem:[%s2 + $0x30] sm:$0xf]
  %v973 = vld [vmem:[%s2 + $0x34] sm:$0xf]
  %v974 = vld [vmem:[%s2 + $0x38] sm:$0xf]
  %v975 = vld [vmem:[%s2 + $0x3c] sm:$0xf]
  %v976 = vld [vmem:[%s2 + $0x40] sm:$0xf]
  %v977 = vld [vmem:[%s2 + $0x44] sm:$0xf]
  %v978 = vld [vmem:[%s2 + $0x48] sm:$0xf]
  %v979 = vld [vmem:[%s2 + $0x4c] sm:$0xf]
  %v980 = vld [vmem:[%s2 + $0x50] sm:$0xf]
  %v981 = vld [vmem:[%s2 + $0x54] sm:$0xf]
  %v1000 = vunpack.c.l.b16 %v964
  %v1001 = vunpack.c.l.b16 %v965
  %v1002 = vunpack.c.l.b16 %v966
  %v1003 = vunpack.c.l.b16 %v967
  %v1004 = vunpack.c.l.b16 %v968
  %v1005 = vunpack.c.l.b16 %v969
  %v1006 = vunpack.c.l.b16 %v970
  %v1007 = vunpack.c.l.b16 %v971
  %v1008 = vunpack.c.l.b16 %v972
  %v1009 = vunpack.c.l.b16 %v973
  %v1010 = vunpack.c.l.b16 %v974
  %v1011 = vunpack.c.l.b16 %v975
  %v1012 = vunpack.c.l.b16 %v976
  %v1013 = vunpack.c.l.b16 %v977
  %v1014 = vunpack.c.l.b16 %v978
  %v1015 = vunpack.c.l.b16 %v979
  %v1016 = vunpack.c.l.b16 %v980
  %v1017 = vunpack.c.l.b16 %v981
  %v1018 = vpack.c.b16 %v1001, %v1000
  %v1019 = vpack.c.b16 %v1003, %v1002
  %v1020 = vpack.c.b16 %v1005, %v1004
  %v1021 = vpack.c.b16 %v1007, %v1006
  %v1022 = vpack.c.b16 %v1009, %v1008
  %v1023 = vpack.c.b16 %v1011, %v1010
  %v1024 = vpack.c.b16 %v1013, %v1012
  %v1025 = vpack.c.b16 %v1015, %v1014
  %v1026 = vpack.c.b16 %v1017, %v1016
  %v1037 = vsel %vm18, %v949, 0
  %v1040 = vsel %vm18, %v951, 0
  %v1043 = vsel %vm18, %v953, 0
  %v1046 = vsel %vm18, %v955, 0
  %v1049 = vsel %vm18, %v957, 0
  %v1052 = vsel %vm18, %v959, 0
  %v1055 = vsel %vm18, %v961, 0
  %v1058 = vsel %vm18, %v963, 0
  %1060 = vmatpush.bf16.msra.mxu0 %v1025
  %1061 = vmatpush.bf16.msra.mxu0 %v1024
  %1062 = vmatpush.bf16.msra.mxu0 %v1023
  %1063 = vmatpush.bf16.msra.mxu0 %v1022
  %1064 = vmatpush.bf16.msra.mxu0 %v1021
  %1065 = vmatpush.bf16.msra.mxu0 %v1020
  %1066 = vmatpush.bf16.msra.mxu0 %v1019
  %1067 = vmatpush.bf16.msra.mxu0 %v1018
  %1068 = vmatmul.bf16.gmra.mxu0 %v948
  %v1069 = vpop.f32.mrf.mxu0
  %v1070 = vadd.f32 0.0, %v1069
  %v1071 = vpop.f32.mrf.mxu0
  %v1072 = vadd.f32 0.0, %v1071
  %1073 = vmatmul.bf16.gmra.mxu0 %v950
  %v1074 = vpop.f32.mrf.mxu0
  %v1075 = vadd.f32 0.0, %v1074
  %v1076 = vpop.f32.mrf.mxu0
  %v1077 = vadd.f32 0.0, %v1076
  %1078 = vmatmul.bf16.gmra.mxu0 %v952
  %v1079 = vpop.f32.mrf.mxu0
  %v1080 = vadd.f32 0.0, %v1079
  %v1081 = vpop.f32.mrf.mxu0
  %v1082 = vadd.f32 0.0, %v1081
  %1083 = vmatmul.bf16.gmra.mxu0 %v954
  %v1084 = vpop.f32.mrf.mxu0
  %v1085 = vadd.f32 0.0, %v1084
  %v1086 = vpop.f32.mrf.mxu0
  %v1087 = vadd.f32 0.0, %v1086
  %1088 = vmatmul.bf16.gmra.mxu0 %v956
  %v1089 = vpop.f32.mrf.mxu0
  %v1090 = vadd.f32 0.0, %v1089
  %v1091 = vpop.f32.mrf.mxu0
  %v1092 = vadd.f32 0.0, %v1091
  %1093 = vmatmul.bf16.gmra.mxu0 %v958
  %v1094 = vpop.f32.mrf.mxu0
  %v1095 = vadd.f32 0.0, %v1094
  %v1096 = vpop.f32.mrf.mxu0
  %v1097 = vadd.f32 0.0, %v1096
  %1098 = vmatmul.bf16.gmra.mxu0 %v960
  %v1099 = vpop.f32.mrf.mxu0
  %v1100 = vadd.f32 0.0, %v1099
  %v1101 = vpop.f32.mrf.mxu0
  %v1102 = vadd.f32 0.0, %v1101
  %1103 = vmatmul.bf16.gmra.mxu0 %v962
  %v1104 = vpop.f32.mrf.mxu0
  %v1105 = vadd.f32 0.0, %v1104
  %v1106 = vpop.f32.mrf.mxu0
  %v1107 = vadd.f32 0.0, %v1106
  %1108 = vdwg.mxu0
  %1109 = vmatpush.bf16.msra.mxu0 0
  %1110 = vmatpush.bf16.msra.mxu0 0
  %1111 = vmatpush.bf16.msra.mxu0 0
  %1112 = vmatpush.bf16.msra.mxu0 0
  %1113 = vmatpush.bf16.msra.mxu0 0
  %1114 = vmatpush.bf16.msra.mxu0 0
  %1115 = vmatpush.bf16.msra.mxu0 0
  %1116 = vmatpush.bf16.msra.mxu0 %v1026
  %1117 = vmatmul.bf16.gmra.mxu0 %v1037
  %v1118 = vpop.f32.mrf.mxu0
  %v1119 = vadd.f32 %v1070, %v1118
  %v1120 = vpop.f32.mrf.mxu0
  %v1121 = vadd.f32 %v1072, %v1120
  %1122 = vmatmul.bf16.gmra.mxu0 %v1040
  %v1123 = vpop.f32.mrf.mxu0
  %v1124 = vadd.f32 %v1075, %v1123
  %v1125 = vpop.f32.mrf.mxu0
  %v1126 = vadd.f32 %v1077, %v1125
  %1127 = vmatmul.bf16.gmra.mxu0 %v1043
  %v1128 = vpop.f32.mrf.mxu0
  %v1129 = vadd.f32 %v1080, %v1128
  %v1130 = vpop.f32.mrf.mxu0
  %v1131 = vadd.f32 %v1082, %v1130
  %1132 = vmatmul.bf16.gmra.mxu0 %v1046
  %v1133 = vpop.f32.mrf.mxu0
  %v1134 = vadd.f32 %v1085, %v1133
  %v1135 = vpop.f32.mrf.mxu0
  %v1136 = vadd.f32 %v1087, %v1135
  %1137 = vmatmul.bf16.gmra.mxu0 %v1049
  %v1138 = vpop.f32.mrf.mxu0
  %v1139 = vadd.f32 %v1090, %v1138
  %v1140 = vpop.f32.mrf.mxu0
  %v1141 = vadd.f32 %v1092, %v1140
  %1142 = vmatmul.bf16.gmra.mxu0 %v1052
  %v1143 = vpop.f32.mrf.mxu0
  %v1144 = vadd.f32 %v1095, %v1143
  %v1145 = vpop.f32.mrf.mxu0
  %v1146 = vadd.f32 %v1097, %v1145
  %1147 = vmatmul.bf16.gmra.mxu0 %v1055
  %v1148 = vpop.f32.mrf.mxu0
  %v1149 = vadd.f32 %v1100, %v1148
  %v1150 = vpop.f32.mrf.mxu0
  %v1151 = vadd.f32 %v1102, %v1150
  %1152 = vmatmul.bf16.gmra.mxu0 %v1058
  %v1153 = vpop.f32.mrf.mxu0
  %v1154 = vadd.f32 %v1105, %v1153
  %v1155 = vpop.f32.mrf.mxu0
  %v1156 = vadd.f32 %v1107, %v1155
  %1157 = vdwg.mxu0
  %v1158 = vld [vmem:[%s3 + $0x2] sm:$0x1]
  %v1159 = vperm.slane %v1158, 0
  %v1160 = vmul.f32 %v1119, %v1159
  %v1161 = vmul.f32 %v1121, %v1159
  %v1162 = vmul.f32 %v1124, %v1159
  %v1163 = vmul.f32 %v1126, %v1159
  %v1164 = vmul.f32 %v1129, %v1159
  %v1165 = vmul.f32 %v1131, %v1159
  %v1166 = vmul.f32 %v1134, %v1159
  %v1167 = vmul.f32 %v1136, %v1159
  %v1168 = vmul.f32 %v1139, %v1159
  %v1169 = vmul.f32 %v1141, %v1159
  %v1170 = vmul.f32 %v1144, %v1159
  %v1171 = vmul.f32 %v1146, %v1159
  %v1172 = vmul.f32 %v1149, %v1159
  %v1173 = vmul.f32 %v1151, %v1159
  %v1174 = vmul.f32 %v1154, %v1159
  %v1175 = vmul.f32 %v1156, %v1159
  %v1176 = vld [vmem:[%s3 + $0x3] sm:$0x1]
  %v1177 = vperm.slane %v1176, 0
  %v1178 = vadd.f32 %v1160, %v1177
  %v1179 = vadd.f32 %v1161, %v1177
  %v1180 = vadd.f32 %v1162, %v1177
  %v1181 = vadd.f32 %v1163, %v1177
  %v1182 = vadd.f32 %v1164, %v1177
  %v1183 = vadd.f32 %v1165, %v1177
  %v1184 = vadd.f32 %v1166, %v1177
  %v1185 = vadd.f32 %v1167, %v1177
  %v1186 = vadd.f32 %v1168, %v1177
  %v1187 = vadd.f32 %v1169, %v1177
  %v1188 = vadd.f32 %v1170, %v1177
  %v1189 = vadd.f32 %v1171, %v1177
  %v1190 = vadd.f32 %v1172, %v1177
  %v1191 = vadd.f32 %v1173, %v1177
  %v1192 = vadd.f32 %v1174, %v1177
  %v1193 = vadd.f32 %v1175, %v1177
  %v1194 = vmax.f32 %v1178, 0.0
  %v1195 = vmax.f32 %v1179, 0.0
  %v1196 = vmax.f32 %v1180, 0.0
  %v1197 = vmax.f32 %v1181, 0.0
  %v1198 = vmax.f32 %v1182, 0.0
  %v1199 = vmax.f32 %v1183, 0.0
  %v1200 = vmax.f32 %v1184, 0.0
  %v1201 = vmax.f32 %v1185, 0.0
  %v1202 = vmax.f32 %v1186, 0.0
  %v1203 = vmax.f32 %v1187, 0.0
  %v1204 = vmax.f32 %v1188, 0.0
  %v1205 = vmax.f32 %v1189, 0.0
  %v1206 = vmax.f32 %v1190, 0.0
  %v1207 = vmax.f32 %v1191, 0.0
  %v1208 = vmax.f32 %v1192, 0.0
  %v1209 = vmax.f32 %v1193, 0.0
  %v1210 = vpack.c.bf16 %v1195, %v1194
  %v1211 = vpack.c.bf16 %v1197, %v1196
  %v1212 = vpack.c.bf16 %v1199, %v1198
  %v1213 = vpack.c.bf16 %v1201, %v1200
  %v1214 = vpack.c.bf16 %v1203, %v1202
  %v1215 = vpack.c.bf16 %v1205, %v1204
  %v1216 = vpack.c.bf16 %v1207, %v1206
  %v1217 = vpack.c.bf16 %v1209, %v1208
  %v1218 = vld [vmem:[%s2 + $0x58] sm:$0xf]
  %v1219 = vld [vmem:[%s2 + $0x5c] sm:$0xf]
  %v1222 = vunpack.c.l.b16 %v1218
  %v1223 = vunpack.c.l.b16 %v1219
  %v1224 = vpack.c.b16 %v1223, %v1222
  %v1227 = vsel %vm18, %v1210, 0
  %v1230 = vsel %vm18, %v1211, 0
  %v1233 = vsel %vm18, %v1212, 0
  %v1236 = vsel %vm18, %v1213, 0
  %v1239 = vsel %vm18, %v1214, 0
  %v1242 = vsel %vm18, %v1215, 0
  %v1245 = vsel %vm18, %v1216, 0
  %v1248 = vsel %vm18, %v1217, 0
  %1250 = vmatpush.bf16.msra.mxu0 0
  %1251 = vmatpush.bf16.msra.mxu0 0
  %1252 = vmatpush.bf16.msra.mxu0 0
  %1253 = vmatpush.bf16.msra.mxu0 0
  %1254 = vmatpush.bf16.msra.mxu0 0
  %1255 = vmatpush.bf16.msra.mxu0 0
  %1256 = vmatpush.bf16.msra.mxu0 0
  %1257 = vmatpush.bf16.msra.mxu0 %v1224
  %1258 = vmatmul.bf16.gmra.mxu0 %v1227
  %v1259 = vpop.f32.mrf.mxu0
  %v1260 = vadd.f32 0.0, %v1259
  %v1261 = vpop.f32.mrf.mxu0
  %v1262 = vadd.f32 0.0, %v1261
  %1263 = vmatmul.bf16.gmra.mxu0 %v1230
  %v1264 = vpop.f32.mrf.mxu0
  %v1265 = vadd.f32 0.0, %v1264
  %v1266 = vpop.f32.mrf.mxu0
  %v1267 = vadd.f32 0.0, %v1266
  %1268 = vmatmul.bf16.gmra.mxu0 %v1233
  %v1269 = vpop.f32.mrf.mxu0
  %v1270 = vadd.f32 0.0, %v1269
  %v1271 = vpop.f32.mrf.mxu0
  %v1272 = vadd.f32 0.0, %v1271
  %1273 = vmatmul.bf16.gmra.mxu0 %v1236
  %v1274 = vpop.f32.mrf.mxu0
  %v1275 = vadd.f32 0.0, %v1274
  %v1276 = vpop.f32.mrf.mxu0
  %v1277 = vadd.f32 0.0, %v1276
  %1278 = vmatmul.bf16.gmra.mxu0 %v1239
  %v1279 = vpop.f32.mrf.mxu0
  %v1280 = vadd.f32 0.0, %v1279
  %v1281 = vpop.f32.mrf.mxu0
  %v1282 = vadd.f32 0.0, %v1281
  %1283 = vmatmul.bf16.gmra.mxu0 %v1242
  %v1284 = vpop.f32.mrf.mxu0
  %v1285 = vadd.f32 0.0, %v1284
  %v1286 = vpop.f32.mrf.mxu0
  %v1287 = vadd.f32 0.0, %v1286
  %1288 = vmatmul.bf16.gmra.mxu0 %v1245
  %v1289 = vpop.f32.mrf.mxu0
  %v1290 = vadd.f32 0.0, %v1289
  %v1291 = vpop.f32.mrf.mxu0
  %v1292 = vadd.f32 0.0, %v1291
  %1293 = vmatmul.bf16.gmra.mxu0 %v1248
  %v1294 = vpop.f32.mrf.mxu0
  %v1295 = vadd.f32 0.0, %v1294
  %v1296 = vpop.f32.mrf.mxu0
  %v1297 = vadd.f32 0.0, %v1296
  %1298 = vdwg.mxu0
  %v1299 = vld [vmem:[%s3 + $0x4] sm:$0x1]
  %v1300 = vperm.slane %v1299, 0
  %v1301 = vmul.f32 %v1260, %v1300
  %v1302 = vmul.f32 %v1262, %v1300
  %v1303 = vmul.f32 %v1265, %v1300
  %v1304 = vmul.f32 %v1267, %v1300
  %v1305 = vmul.f32 %v1270, %v1300
  %v1306 = vmul.f32 %v1272, %v1300
  %v1307 = vmul.f32 %v1275, %v1300
  %v1308 = vmul.f32 %v1277, %v1300
  %v1309 = vmul.f32 %v1280, %v1300
  %v1310 = vmul.f32 %v1282, %v1300
  %v1311 = vmul.f32 %v1285, %v1300
  %v1312 = vmul.f32 %v1287, %v1300
  %v1313 = vmul.f32 %v1290, %v1300
  %v1314 = vmul.f32 %v1292, %v1300
  %v1315 = vmul.f32 %v1295, %v1300
  %v1316 = vmul.f32 %v1297, %v1300
  %v1317 = vld [vmem:[%s3 + $0x5] sm:$0x1]
  %v1318 = vperm.slane %v1317, 0
  %v1319 = vadd.f32 %v1301, %v1318
  %v1320 = vadd.f32 %v1302, %v1318
  %v1321 = vadd.f32 %v1303, %v1318
  %v1322 = vadd.f32 %v1304, %v1318
  %v1323 = vadd.f32 %v1305, %v1318
  %v1324 = vadd.f32 %v1306, %v1318
  %v1325 = vadd.f32 %v1307, %v1318
  %v1326 = vadd.f32 %v1308, %v1318
  %v1327 = vadd.f32 %v1309, %v1318
  %v1328 = vadd.f32 %v1310, %v1318
  %v1329 = vadd.f32 %v1311, %v1318
  %v1330 = vadd.f32 %v1312, %v1318
  %v1331 = vadd.f32 %v1313, %v1318
  %v1332 = vadd.f32 %v1314, %v1318
  %v1333 = vadd.f32 %v1315, %v1318
  %v1334 = vadd.f32 %v1316, %v1318
  %1351 = vrot.lane.b32.xlu0 %v187, 112
  %v1352 = vpop.permute.xlu0 %1351
  %1353 = vrot.lane.b32.xlu0 %v188, 112
  %v1354 = vpop.permute.xlu0 %1353
  %1355 = vrot.lane.b32.xlu0 %v189, 112
  %v1356 = vpop.permute.xlu0 %1355
  %1357 = vrot.lane.b32.xlu0 %v190, 112
  %v1358 = vpop.permute.xlu0 %1357
  %1359 = vrot.lane.b32.xlu0 %v191, 112
  %v1360 = vpop.permute.xlu0 %1359
  %1361 = vrot.lane.b32.xlu0 %v192, 112
  %v1362 = vpop.permute.xlu0 %1361
  %1363 = vrot.lane.b32.xlu0 %v193, 112
  %v1364 = vpop.permute.xlu0 %1363
  %1365 = vrot.lane.b32.xlu0 %v194, 112
  %v1366 = vpop.permute.xlu0 %1365
  %1367 = vrot.lane.b32.xlu0 %v195, 112
  %v1368 = vpop.permute.xlu0 %1367
  %1369 = vrot.lane.b32.xlu0 %v196, 112
  %v1370 = vpop.permute.xlu0 %1369
  %1371 = vrot.lane.b32.xlu0 %v197, 112
  %v1372 = vpop.permute.xlu0 %1371
  %1373 = vrot.lane.b32.xlu0 %v198, 112
  %v1374 = vpop.permute.xlu0 %1373
  %1375 = vrot.lane.b32.xlu0 %v199, 112
  %v1376 = vpop.permute.xlu0 %1375
  %1377 = vrot.lane.b32.xlu0 %v200, 112
  %v1378 = vpop.permute.xlu0 %1377
  %1379 = vrot.lane.b32.xlu0 %v201, 112
  %v1380 = vpop.permute.xlu0 %1379
  %1381 = vrot.lane.b32.xlu0 %v202, 112
  %v1382 = vpop.permute.xlu0 %1381
  %v1399 = vadd.f32 %v1319, %v1352
  %v1400 = vadd.f32 %v1320, %v1354
  %v1401 = vadd.f32 %v1321, %v1356
  %v1402 = vadd.f32 %v1322, %v1358
  %v1403 = vadd.f32 %v1323, %v1360
  %v1404 = vadd.f32 %v1324, %v1362
  %v1405 = vadd.f32 %v1325, %v1364
  %v1406 = vadd.f32 %v1326, %v1366
  %v1407 = vadd.f32 %v1327, %v1368
  %v1408 = vadd.f32 %v1328, %v1370
  %v1409 = vadd.f32 %v1329, %v1372
  %v1410 = vadd.f32 %v1330, %v1374
  %v1411 = vadd.f32 %v1331, %v1376
  %v1412 = vadd.f32 %v1332, %v1378
  %v1413 = vadd.f32 %v1333, %v1380
  %v1414 = vadd.f32 %v1334, %v1382
  %v1415 = vmax.f32 %v1399, 0.0
  %v1416 = vmax.f32 %v1400, 0.0
  %v1417 = vmax.f32 %v1401, 0.0
  %v1418 = vmax.f32 %v1402, 0.0
  %v1419 = vmax.f32 %v1403, 0.0
  %v1420 = vmax.f32 %v1404, 0.0
  %v1421 = vmax.f32 %v1405, 0.0
  %v1422 = vmax.f32 %v1406, 0.0
  %v1423 = vmax.f32 %v1407, 0.0
  %v1424 = vmax.f32 %v1408, 0.0
  %v1425 = vmax.f32 %v1409, 0.0
  %v1426 = vmax.f32 %v1410, 0.0
  %v1427 = vmax.f32 %v1411, 0.0
  %v1428 = vmax.f32 %v1412, 0.0
  %v1429 = vmax.f32 %v1413, 0.0
  %v1430 = vmax.f32 %v1414, 0.0
  %v1431 = vpack.c.bf16 %v1416, %v1415
  %v1432 = vpack.c.bf16 %v1418, %v1417
  %v1433 = vpack.c.bf16 %v1420, %v1419
  %v1434 = vpack.c.bf16 %v1422, %v1421
  %v1435 = vpack.c.bf16 %v1424, %v1423
  %v1436 = vpack.c.bf16 %v1426, %v1425
  %v1437 = vpack.c.bf16 %v1428, %v1427
  %v1438 = vpack.c.bf16 %v1430, %v1429
  %v1439 = vld [vmem:[%s2 + $0x60] sm:$0xf]
  %v1440 = vld [vmem:[%s2 + $0x64] sm:$0xf]
  %v1441 = vld [vmem:[%s2 + $0x68] sm:$0xf]
  %v1442 = vld [vmem:[%s2 + $0x6c] sm:$0xf]
  %v1443 = vld [vmem:[%s2 + $0x70] sm:$0xf]
  %v1444 = vld [vmem:[%s2 + $0x74] sm:$0xf]
  %v1445 = vld [vmem:[%s2 + $0x78] sm:$0xf]
  %v1446 = vld [vmem:[%s2 + $0x7c] sm:$0xf]
  %v1455 = vunpack.c.l.b16 %v1439
  %v1456 = vunpack.c.l.b16 %v1440
  %v1457 = vunpack.c.l.b16 %v1441
  %v1458 = vunpack.c.l.b16 %v1442
  %v1459 = vunpack.c.l.b16 %v1443
  %v1460 = vunpack.c.l.b16 %v1444
  %v1461 = vunpack.c.l.b16 %v1445
  %v1462 = vunpack.c.l.b16 %v1446
  %v1463 = vpack.c.b16 %v1456, %v1455
  %v1464 = vpack.c.b16 %v1458, %v1457
  %v1465 = vpack.c.b16 %v1460, %v1459
  %v1466 = vpack.c.b16 %v1462, %v1461
  %v1472 = vsel %vm816, %v1431, 0
  %v1475 = vsel %vm816, %v1432, 0
  %v1478 = vsel %vm816, %v1433, 0
  %v1481 = vsel %vm816, %v1434, 0
  %v1484 = vsel %vm816, %v1435, 0
  %v1487 = vsel %vm816, %v1436, 0
  %v1490 = vsel %vm816, %v1437, 0
  %v1493 = vsel %vm816, %v1438, 0
  %1495 = vmatpush.bf16.msra.mxu0 0
  %1496 = vmatpush.bf16.msra.mxu0 0
  %1497 = vmatpush.bf16.msra.mxu0 0
  %1498 = vmatpush.bf16.msra.mxu0 0
  %1499 = vmatpush.bf16.msra.mxu0 %v1466
  %1500 = vmatpush.bf16.msra.mxu0 %v1465
  %1501 = vmatpush.bf16.msra.mxu0 %v1464
  %1502 = vmatpush.bf16.msra.mxu0 %v1463
  %1503 = vmatmul.bf16.gmra.mxu0 %v1472
  %v1504 = vpop.f32.mrf.mxu0
  %v1505 = vadd.f32 0.0, %v1504
  %v1506 = vpop.f32.mrf.mxu0
  %v1507 = vadd.f32 0.0, %v1506
  %1508 = vmatmul.bf16.gmra.mxu0 %v1475
  %v1509 = vpop.f32.mrf.mxu0
  %v1510 = vadd.f32 0.0, %v1509
  %v1511 = vpop.f32.mrf.mxu0
  %v1512 = vadd.f32 0.0, %v1511
  %1513 = vmatmul.bf16.gmra.mxu0 %v1478
  %v1514 = vpop.f32.mrf.mxu0
  %v1515 = vadd.f32 0.0, %v1514
  %v1516 = vpop.f32.mrf.mxu0
  %v1517 = vadd.f32 0.0, %v1516
  %1518 = vmatmul.bf16.gmra.mxu0 %v1481
  %v1519 = vpop.f32.mrf.mxu0
  %v1520 = vadd.f32 0.0, %v1519
  %v1521 = vpop.f32.mrf.mxu0
  %v1522 = vadd.f32 0.0, %v1521
  %1523 = vmatmul.bf16.gmra.mxu0 %v1484
  %v1524 = vpop.f32.mrf.mxu0
  %v1525 = vadd.f32 0.0, %v1524
  %v1526 = vpop.f32.mrf.mxu0
  %v1527 = vadd.f32 0.0, %v1526
  %1528 = vmatmul.bf16.gmra.mxu0 %v1487
  %v1529 = vpop.f32.mrf.mxu0
  %v1530 = vadd.f32 0.0, %v1529
  %v1531 = vpop.f32.mrf.mxu0
  %v1532 = vadd.f32 0.0, %v1531
  %1533 = vmatmul.bf16.gmra.mxu0 %v1490
  %v1534 = vpop.f32.mrf.mxu0
  %v1535 = vadd.f32 0.0, %v1534
  %v1536 = vpop.f32.mrf.mxu0
  %v1537 = vadd.f32 0.0, %v1536
  %1538 = vmatmul.bf16.gmra.mxu0 %v1493
  %v1539 = vpop.f32.mrf.mxu0
  %v1540 = vadd.f32 0.0, %v1539
  %v1541 = vpop.f32.mrf.mxu0
  %v1542 = vadd.f32 0.0, %v1541
  %1543 = vdwg.mxu0
  %v1544 = vld [vmem:[%s3 + $0x6] sm:$0x1]
  %v1545 = vperm.slane %v1544, 0
  %v1546 = vmul.f32 %v1505, %v1545
  %v1547 = vmul.f32 %v1507, %v1545
  %v1548 = vmul.f32 %v1510, %v1545
  %v1549 = vmul.f32 %v1512, %v1545
  %v1550 = vmul.f32 %v1515, %v1545
  %v1551 = vmul.f32 %v1517, %v1545
  %v1552 = vmul.f32 %v1520, %v1545
  %v1553 = vmul.f32 %v1522, %v1545
  %v1554 = vmul.f32 %v1525, %v1545
  %v1555 = vmul.f32 %v1527, %v1545
  %v1556 = vmul.f32 %v1530, %v1545
  %v1557 = vmul.f32 %v1532, %v1545
  %v1558 = vmul.f32 %v1535, %v1545
  %v1559 = vmul.f32 %v1537, %v1545
  %v1560 = vmul.f32 %v1540, %v1545
  %v1561 = vmul.f32 %v1542, %v1545
  %v1562 = vld [vmem:[%s3 + $0x7] sm:$0x1]
  %v1563 = vperm.slane %v1562, 0
  %v1564 = vadd.f32 %v1546, %v1563
  %v1565 = vadd.f32 %v1547, %v1563
  %v1566 = vadd.f32 %v1548, %v1563
  %v1567 = vadd.f32 %v1549, %v1563
  %v1568 = vadd.f32 %v1550, %v1563
  %v1569 = vadd.f32 %v1551, %v1563
  %v1570 = vadd.f32 %v1552, %v1563
  %v1571 = vadd.f32 %v1553, %v1563
  %v1572 = vadd.f32 %v1554, %v1563
  %v1573 = vadd.f32 %v1555, %v1563
  %v1574 = vadd.f32 %v1556, %v1563
  %v1575 = vadd.f32 %v1557, %v1563
  %v1576 = vadd.f32 %v1558, %v1563
  %v1577 = vadd.f32 %v1559, %v1563
  %v1578 = vadd.f32 %v1560, %v1563
  %v1579 = vadd.f32 %v1561, %v1563
  %v1580 = vmax.f32 %v1564, 0.0
  %v1581 = vmax.f32 %v1565, 0.0
  %v1582 = vmax.f32 %v1566, 0.0
  %v1583 = vmax.f32 %v1567, 0.0
  %v1584 = vmax.f32 %v1568, 0.0
  %v1585 = vmax.f32 %v1569, 0.0
  %v1586 = vmax.f32 %v1570, 0.0
  %v1587 = vmax.f32 %v1571, 0.0
  %v1588 = vmax.f32 %v1572, 0.0
  %v1589 = vmax.f32 %v1573, 0.0
  %v1590 = vmax.f32 %v1574, 0.0
  %v1591 = vmax.f32 %v1575, 0.0
  %v1592 = vmax.f32 %v1576, 0.0
  %v1593 = vmax.f32 %v1577, 0.0
  %v1594 = vmax.f32 %v1578, 0.0
  %v1595 = vmax.f32 %v1579, 0.0
  %1596 = vst.msk [vmem:[#allocation2 + $0x8] sm:$0xff] %vm18, %v1580
  %1597 = vst.msk [vmem:[#allocation2 + $0x10] sm:$0xff] %vm18, %v1581
  %1598 = vst.msk [vmem:[#allocation2 + $0x18] sm:$0xff] %vm18, %v1582
  %1599 = vst.msk [vmem:[#allocation2 + $0x20] sm:$0xff] %vm18, %v1583
  %1600 = vst.msk [vmem:[#allocation2 + $0x28] sm:$0xff] %vm18, %v1584
  %1601 = vst.msk [vmem:[#allocation2 + $0x30] sm:$0xff] %vm18, %v1585
  %1602 = vst.msk [vmem:[#allocation2 + $0x38] sm:$0xff] %vm18, %v1586
  %1603 = vst.msk [vmem:[#allocation2 + $0x40] sm:$0xff] %vm18, %v1587
  %1604 = vst.msk [vmem:[#allocation2 + $0x48] sm:$0xff] %vm18, %v1588
  %1605 = vst.msk [vmem:[#allocation2 + $0x50] sm:$0xff] %vm18, %v1589
  %1606 = vst.msk [vmem:[#allocation2 + $0x58] sm:$0xff] %vm18, %v1590
  %1607 = vst.msk [vmem:[#allocation2 + $0x60] sm:$0xff] %vm18, %v1591
  %1608 = vst.msk [vmem:[#allocation2 + $0x68] sm:$0xff] %vm18, %v1592
  %1609 = vst.msk [vmem:[#allocation2 + $0x70] sm:$0xff] %vm18, %v1593
  %1610 = vst.msk [vmem:[#allocation2 + $0x78] sm:$0xff] %vm18, %v1594
  %1611 = vst.msk [vmem:[#allocation2 + $0x80] sm:$0xff] %vm18, %v1595
  %v1612 = vld [vmem:[#allocation2 + $0x3] sm:$0xff]
  %v1613 = vld [vmem:[#allocation2 + $0xb] sm:$0xff]
  %v1614 = vld [vmem:[#allocation2 + $0x13] sm:$0xff]
  %v1615 = vld [vmem:[#allocation2 + $0x1b] sm:$0xff]
  %v1616 = vld [vmem:[#allocation2 + $0x23] sm:$0xff]
  %v1617 = vld [vmem:[#allocation2 + $0x2b] sm:$0xff]
  %v1618 = vld [vmem:[#allocation2 + $0x33] sm:$0xff]
  %v1619 = vld [vmem:[#allocation2 + $0x3b] sm:$0xff]
  %v1620 = vld [vmem:[#allocation2 + $0x43] sm:$0xff]
  %v1621 = vld [vmem:[#allocation2 + $0x4b] sm:$0xff]
  %v1622 = vld [vmem:[#allocation2 + $0x53] sm:$0xff]
  %v1623 = vld [vmem:[#allocation2 + $0x5b] sm:$0xff]
  %v1624 = vld [vmem:[#allocation2 + $0x63] sm:$0xff]
  %v1625 = vld [vmem:[#allocation2 + $0x6b] sm:$0xff]
  %v1626 = vld [vmem:[#allocation2 + $0x73] sm:$0xff]
  %v1627 = vld [vmem:[#allocation2 + $0x7b] sm:$0xff]
  %v1628 = vld [vmem:[#allocation2 + $0x4] sm:$0xff]
  %v1629 = vld [vmem:[#allocation2 + $0xc] sm:$0xff]
  %v1630 = vld [vmem:[#allocation2 + $0x14] sm:$0xff]
  %v1631 = vld [vmem:[#allocation2 + $0x1c] sm:$0xff]
  %v1632 = vld [vmem:[#allocation2 + $0x24] sm:$0xff]
  %v1633 = vld [vmem:[#allocation2 + $0x2c] sm:$0xff]
  %v1634 = vld [vmem:[#allocation2 + $0x34] sm:$0xff]
  %v1635 = vld [vmem:[#allocation2 + $0x3c] sm:$0xff]
  %v1636 = vld [vmem:[#allocation2 + $0x44] sm:$0xff]
  %v1637 = vld [vmem:[#allocation2 + $0x4c] sm:$0xff]
  %v1638 = vld [vmem:[#allocation2 + $0x54] sm:$0xff]
  %v1639 = vld [vmem:[#allocation2 + $0x5c] sm:$0xff]
  %v1640 = vld [vmem:[#allocation2 + $0x64] sm:$0xff]
  %v1641 = vld [vmem:[#allocation2 + $0x6c] sm:$0xff]
  %v1642 = vld [vmem:[#allocation2 + $0x74] sm:$0xff]
  %v1643 = vld [vmem:[#allocation2 + $0x7c] sm:$0xff]
  %v1644 = vld [vmem:[#allocation2 + $0x5] sm:$0xff]
  %v1645 = vld [vmem:[#allocation2 + $0xd] sm:$0xff]
  %v1646 = vld [vmem:[#allocation2 + $0x15] sm:$0xff]
  %v1647 = vld [vmem:[#allocation2 + $0x1d] sm:$0xff]
  %v1648 = vld [vmem:[#allocation2 + $0x25] sm:$0xff]
  %v1649 = vld [vmem:[#allocation2 + $0x2d] sm:$0xff]
  %v1650 = vld [vmem:[#allocation2 + $0x35] sm:$0xff]
  %v1651 = vld [vmem:[#allocation2 + $0x3d] sm:$0xff]
  %v1652 = vld [vmem:[#allocation2 + $0x45] sm:$0xff]
  %v1653 = vld [vmem:[#allocation2 + $0x4d] sm:$0xff]
  %v1654 = vld [vmem:[#allocation2 + $0x55] sm:$0xff]
  %v1655 = vld [vmem:[#allocation2 + $0x5d] sm:$0xff]
  %v1656 = vld [vmem:[#allocation2 + $0x65] sm:$0xff]
  %v1657 = vld [vmem:[#allocation2 + $0x6d] sm:$0xff]
  %v1658 = vld [vmem:[#allocation2 + $0x75] sm:$0xff]
  %v1659 = vld [vmem:[#allocation2 + $0x7d] sm:$0xff]
  %v1660 = vld [vmem:[#allocation2 + $0x7] sm:$0xff]
  %v1661 = vld [vmem:[#allocation2 + $0xf] sm:$0xff]
  %v1662 = vld [vmem:[#allocation2 + $0x17] sm:$0xff]
  %v1663 = vld [vmem:[#allocation2 + $0x1f] sm:$0xff]
  %v1664 = vld [vmem:[#allocation2 + $0x27] sm:$0xff]
  %v1665 = vld [vmem:[#allocation2 + $0x2f] sm:$0xff]
  %v1666 = vld [vmem:[#allocation2 + $0x37] sm:$0xff]
  %v1667 = vld [vmem:[#allocation2 + $0x3f] sm:$0xff]
  %v1668 = vld [vmem:[#allocation2 + $0x47] sm:$0xff]
  %v1669 = vld [vmem:[#allocation2 + $0x4f] sm:$0xff]
  %v1670 = vld [vmem:[#allocation2 + $0x57] sm:$0xff]
  %v1671 = vld [vmem:[#allocation2 + $0x5f] sm:$0xff]
  %v1672 = vld [vmem:[#allocation2 + $0x67] sm:$0xff]
  %v1673 = vld [vmem:[#allocation2 + $0x6f] sm:$0xff]
  %v1674 = vld [vmem:[#allocation2 + $0x77] sm:$0xff]
  %v1675 = vld [vmem:[#allocation2 + $0x7f] sm:$0xff]
  %v1676 = vld [vmem:[#allocation2 + $0x8] sm:$0xff]
  %v1677 = vld [vmem:[#allocation2 + $0x10] sm:$0xff]
  %v1678 = vld [vmem:[#allocation2 + $0x18] sm:$0xff]
  %v1679 = vld [vmem:[#allocation2 + $0x20] sm:$0xff]
  %v1680 = vld [vmem:[#allocation2 + $0x28] sm:$0xff]
  %v1681 = vld [vmem:[#allocation2 + $0x30] sm:$0xff]
  %v1682 = vld [vmem:[#allocation2 + $0x38] sm:$0xff]
  %v1683 = vld [vmem:[#allocation2 + $0x40] sm:$0xff]
  %v1684 = vld [vmem:[#allocation2 + $0x48] sm:$0xff]
  %v1685 = vld [vmem:[#allocation2 + $0x50] sm:$0xff]
  %v1686 = vld [vmem:[#allocation2 + $0x58] sm:$0xff]
  %v1687 = vld [vmem:[#allocation2 + $0x60] sm:$0xff]
  %v1688 = vld [vmem:[#allocation2 + $0x68] sm:$0xff]
  %v1689 = vld [vmem:[#allocation2 + $0x70] sm:$0xff]
  %v1690 = vld [vmem:[#allocation2 + $0x78] sm:$0xff]
  %v1691 = vld [vmem:[#allocation2 + $0x80] sm:$0xff]
  %v1692 = vld [vmem:[#allocation2 + $0x9] sm:$0xff]
  %v1693 = vld [vmem:[#allocation2 + $0x11] sm:$0xff]
  %v1694 = vld [vmem:[#allocation2 + $0x19] sm:$0xff]
  %v1695 = vld [vmem:[#allocation2 + $0x21] sm:$0xff]
  %v1696 = vld [vmem:[#allocation2 + $0x29] sm:$0xff]
  %v1697 = vld [vmem:[#allocation2 + $0x31] sm:$0xff]
  %v1698 = vld [vmem:[#allocation2 + $0x39] sm:$0xff]
  %v1699 = vld [vmem:[#allocation2 + $0x41] sm:$0xff]
  %v1700 = vld [vmem:[#allocation2 + $0x49] sm:$0xff]
  %v1701 = vld [vmem:[#allocation2 + $0x51] sm:$0xff]
  %v1702 = vld [vmem:[#allocation2 + $0x59] sm:$0xff]
  %v1703 = vld [vmem:[#allocation2 + $0x61] sm:$0xff]
  %v1704 = vld [vmem:[#allocation2 + $0x69] sm:$0xff]
  %v1705 = vld [vmem:[#allocation2 + $0x71] sm:$0xff]
  %v1706 = vld [vmem:[#allocation2 + $0x79] sm:$0xff]
  %v1707 = vld [vmem:[#allocation2 + $0x81] sm:$0xff]
  %v1708 = vld [vmem:[#allocation2 + $0x83] sm:$0xff]
  %v1709 = vld [vmem:[#allocation2 + $0x84] sm:$0xff]
  %v1710 = vld [vmem:[#allocation2 + $0x85] sm:$0xff]
  %1727 = vrot.lane.b32.xlu0 %v1628, 16
  %v1728 = vpop.permute.xlu0 %1727
  %1729 = vrot.lane.b32.xlu0 %v1629, 16
  %v1730 = vpop.permute.xlu0 %1729
  %1731 = vrot.lane.b32.xlu0 %v1630, 16
  %v1732 = vpop.permute.xlu0 %1731
  %1733 = vrot.lane.b32.xlu0 %v1631, 16
  %v1734 = vpop.permute.xlu0 %1733
  %1735 = vrot.lane.b32.xlu0 %v1632, 16
  %v1736 = vpop.permute.xlu0 %1735
  %1737 = vrot.lane.b32.xlu0 %v1633, 16
  %v1738 = vpop.permute.xlu0 %1737
  %1739 = vrot.lane.b32.xlu0 %v1634, 16
  %v1740 = vpop.permute.xlu0 %1739
  %1741 = vrot.lane.b32.xlu0 %v1635, 16
  %v1742 = vpop.permute.xlu0 %1741
  %1743 = vrot.lane.b32.xlu0 %v1636, 16
  %v1744 = vpop.permute.xlu0 %1743
  %1745 = vrot.lane.b32.xlu0 %v1637, 16
  %v1746 = vpop.permute.xlu0 %1745
  %1747 = vrot.lane.b32.xlu0 %v1638, 16
  %v1748 = vpop.permute.xlu0 %1747
  %1749 = vrot.lane.b32.xlu0 %v1639, 16
  %v1750 = vpop.permute.xlu0 %1749
  %1751 = vrot.lane.b32.xlu0 %v1640, 16
  %v1752 = vpop.permute.xlu0 %1751
  %1753 = vrot.lane.b32.xlu0 %v1641, 16
  %v1754 = vpop.permute.xlu0 %1753
  %1755 = vrot.lane.b32.xlu0 %v1642, 16
  %v1756 = vpop.permute.xlu0 %1755
  %1757 = vrot.lane.b32.xlu0 %v1643, 16
  %v1758 = vpop.permute.xlu0 %1757
  %1791 = vrot.lane.b32.xlu0 %v1644, 32
  %v1792 = vpop.permute.xlu0 %1791
  %1793 = vrot.lane.b32.xlu0 %v1645, 32
  %v1794 = vpop.permute.xlu0 %1793
  %1795 = vrot.lane.b32.xlu0 %v1646, 32
  %v1796 = vpop.permute.xlu0 %1795
  %1797 = vrot.lane.b32.xlu0 %v1647, 32
  %v1798 = vpop.permute.xlu0 %1797
  %1799 = vrot.lane.b32.xlu0 %v1648, 32
  %v1800 = vpop.permute.xlu0 %1799
  %1801 = vrot.lane.b32.xlu0 %v1649, 32
  %v1802 = vpop.permute.xlu0 %1801
  %1803 = vrot.lane.b32.xlu0 %v1650, 32
  %v1804 = vpop.permute.xlu0 %1803
  %1805 = vrot.lane.b32.xlu0 %v1651, 32
  %v1806 = vpop.permute.xlu0 %1805
  %1807 = vrot.lane.b32.xlu0 %v1652, 32
  %v1808 = vpop.permute.xlu0 %1807
  %1809 = vrot.lane.b32.xlu0 %v1653, 32
  %v1810 = vpop.permute.xlu0 %1809
  %1811 = vrot.lane.b32.xlu0 %v1654, 32
  %v1812 = vpop.permute.xlu0 %1811
  %1813 = vrot.lane.b32.xlu0 %v1655, 32
  %v1814 = vpop.permute.xlu0 %1813
  %1815 = vrot.lane.b32.xlu0 %v1656, 32
  %v1816 = vpop.permute.xlu0 %1815
  %1817 = vrot.lane.b32.xlu0 %v1657, 32
  %v1818 = vpop.permute.xlu0 %1817
  %1819 = vrot.lane.b32.xlu0 %v1658, 32
  %v1820 = vpop.permute.xlu0 %1819
  %1821 = vrot.lane.b32.xlu0 %v1659, 32
  %v1822 = vpop.permute.xlu0 %1821
  %1855 = vrot.lane.b32.xlu0 %v1660, 48
  %v1856 = vpop.permute.xlu0 %1855
  %1857 = vrot.lane.b32.xlu0 %v1661, 48
  %v1858 = vpop.permute.xlu0 %1857
  %1859 = vrot.lane.b32.xlu0 %v1662, 48
  %v1860 = vpop.permute.xlu0 %1859
  %1861 = vrot.lane.b32.xlu0 %v1663, 48
  %v1862 = vpop.permute.xlu0 %1861
  %1863 = vrot.lane.b32.xlu0 %v1664, 48
  %v1864 = vpop.permute.xlu0 %1863
  %1865 = vrot.lane.b32.xlu0 %v1665, 48
  %v1866 = vpop.permute.xlu0 %1865
  %1867 = vrot.lane.b32.xlu0 %v1666, 48
  %v1868 = vpop.permute.xlu0 %1867
  %1869 = vrot.lane.b32.xlu0 %v1667, 48
  %v1870 = vpop.permute.xlu0 %1869
  %1871 = vrot.lane.b32.xlu0 %v1668, 48
  %v1872 = vpop.permute.xlu0 %1871
  %1873 = vrot.lane.b32.xlu0 %v1669, 48
  %v1874 = vpop.permute.xlu0 %1873
  %1875 = vrot.lane.b32.xlu0 %v1670, 48
  %v1876 = vpop.permute.xlu0 %1875
  %1877 = vrot.lane.b32.xlu0 %v1671, 48
  %v1878 = vpop.permute.xlu0 %1877
  %1879 = vrot.lane.b32.xlu0 %v1672, 48
  %v1880 = vpop.permute.xlu0 %1879
  %1881 = vrot.lane.b32.xlu0 %v1673, 48
  %v1882 = vpop.permute.xlu0 %1881
  %1883 = vrot.lane.b32.xlu0 %v1674, 48
  %v1884 = vpop.permute.xlu0 %1883
  %1885 = vrot.lane.b32.xlu0 %v1675, 48
  %v1886 = vpop.permute.xlu0 %1885
  %1919 = vrot.lane.b32.xlu0 %v1676, 64
  %v1920 = vpop.permute.xlu0 %1919
  %1921 = vrot.lane.b32.xlu0 %v1677, 64
  %v1922 = vpop.permute.xlu0 %1921
  %1923 = vrot.lane.b32.xlu0 %v1678, 64
  %v1924 = vpop.permute.xlu0 %1923
  %1925 = vrot.lane.b32.xlu0 %v1679, 64
  %v1926 = vpop.permute.xlu0 %1925
  %1927 = vrot.lane.b32.xlu0 %v1680, 64
  %v1928 = vpop.permute.xlu0 %1927
  %1929 = vrot.lane.b32.xlu0 %v1681, 64
  %v1930 = vpop.permute.xlu0 %1929
  %1931 = vrot.lane.b32.xlu0 %v1682, 64
  %v1932 = vpop.permute.xlu0 %1931
  %1933 = vrot.lane.b32.xlu0 %v1683, 64
  %v1934 = vpop.permute.xlu0 %1933
  %1935 = vrot.lane.b32.xlu0 %v1684, 64
  %v1936 = vpop.permute.xlu0 %1935
  %1937 = vrot.lane.b32.xlu0 %v1685, 64
  %v1938 = vpop.permute.xlu0 %1937
  %1939 = vrot.lane.b32.xlu0 %v1686, 64
  %v1940 = vpop.permute.xlu0 %1939
  %1941 = vrot.lane.b32.xlu0 %v1687, 64
  %v1942 = vpop.permute.xlu0 %1941
  %1943 = vrot.lane.b32.xlu0 %v1688, 64
  %v1944 = vpop.permute.xlu0 %1943
  %1945 = vrot.lane.b32.xlu0 %v1689, 64
  %v1946 = vpop.permute.xlu0 %1945
  %1947 = vrot.lane.b32.xlu0 %v1690, 64
  %v1948 = vpop.permute.xlu0 %1947
  %1949 = vrot.lane.b32.xlu0 %v1691, 64
  %v1950 = vpop.permute.xlu0 %1949
  %1983 = vrot.lane.b32.xlu0 %v1692, 80
  %v1984 = vpop.permute.xlu0 %1983
  %1985 = vrot.lane.b32.xlu0 %v1693, 80
  %v1986 = vpop.permute.xlu0 %1985
  %1987 = vrot.lane.b32.xlu0 %v1694, 80
  %v1988 = vpop.permute.xlu0 %1987
  %1989 = vrot.lane.b32.xlu0 %v1695, 80
  %v1990 = vpop.permute.xlu0 %1989
  %1991 = vrot.lane.b32.xlu0 %v1696, 80
  %v1992 = vpop.permute.xlu0 %1991
  %1993 = vrot.lane.b32.xlu0 %v1697, 80
  %v1994 = vpop.permute.xlu0 %1993
  %1995 = vrot.lane.b32.xlu0 %v1698, 80
  %v1996 = vpop.permute.xlu0 %1995
  %1997 = vrot.lane.b32.xlu0 %v1699, 80
  %v1998 = vpop.permute.xlu0 %1997
  %1999 = vrot.lane.b32.xlu0 %v1700, 80
  %v2000 = vpop.permute.xlu0 %1999
  %2001 = vrot.lane.b32.xlu0 %v1701, 80
  %v2002 = vpop.permute.xlu0 %2001
  %2003 = vrot.lane.b32.xlu0 %v1702, 80
  %v2004 = vpop.permute.xlu0 %2003
  %2005 = vrot.lane.b32.xlu0 %v1703, 80
  %v2006 = vpop.permute.xlu0 %2005
  %2007 = vrot.lane.b32.xlu0 %v1704, 80
  %v2008 = vpop.permute.xlu0 %2007
  %2009 = vrot.lane.b32.xlu0 %v1705, 80
  %v2010 = vpop.permute.xlu0 %2009
  %2011 = vrot.lane.b32.xlu0 %v1706, 80
  %v2012 = vpop.permute.xlu0 %2011
  %2013 = vrot.lane.b32.xlu0 %v1707, 80
  %v2014 = vpop.permute.xlu0 %2013
  %2047 = vrot.lane.b32.xlu0 %v1613, 96
  %v2048 = vpop.permute.xlu0 %2047
  %2049 = vrot.lane.b32.xlu0 %v1614, 96
  %v2050 = vpop.permute.xlu0 %2049
  %2051 = vrot.lane.b32.xlu0 %v1615, 96
  %v2052 = vpop.permute.xlu0 %2051
  %2053 = vrot.lane.b32.xlu0 %v1616, 96
  %v2054 = vpop.permute.xlu0 %2053
  %2055 = vrot.lane.b32.xlu0 %v1617, 96
  %v2056 = vpop.permute.xlu0 %2055
  %2057 = vrot.lane.b32.xlu0 %v1618, 96
  %v2058 = vpop.permute.xlu0 %2057
  %2059 = vrot.lane.b32.xlu0 %v1619, 96
  %v2060 = vpop.permute.xlu0 %2059
  %2061 = vrot.lane.b32.xlu0 %v1620, 96
  %v2062 = vpop.permute.xlu0 %2061
  %2063 = vrot.lane.b32.xlu0 %v1621, 96
  %v2064 = vpop.permute.xlu0 %2063
  %2065 = vrot.lane.b32.xlu0 %v1622, 96
  %v2066 = vpop.permute.xlu0 %2065
  %2067 = vrot.lane.b32.xlu0 %v1623, 96
  %v2068 = vpop.permute.xlu0 %2067
  %2069 = vrot.lane.b32.xlu0 %v1624, 96
  %v2070 = vpop.permute.xlu0 %2069
  %2071 = vrot.lane.b32.xlu0 %v1625, 96
  %v2072 = vpop.permute.xlu0 %2071
  %2073 = vrot.lane.b32.xlu0 %v1626, 96
  %v2074 = vpop.permute.xlu0 %2073
  %2075 = vrot.lane.b32.xlu0 %v1627, 96
  %v2076 = vpop.permute.xlu0 %2075
  %2077 = vrot.lane.b32.xlu0 %v1708, 96
  %v2078 = vpop.permute.xlu0 %2077
  %2096 = vrot.lane.b32.xlu0 %v1629, 112
  %v2097 = vpop.permute.xlu0 %2096
  %2098 = vrot.lane.b32.xlu0 %v1630, 112
  %v2099 = vpop.permute.xlu0 %2098
  %2100 = vrot.lane.b32.xlu0 %v1631, 112
  %v2101 = vpop.permute.xlu0 %2100
  %2102 = vrot.lane.b32.xlu0 %v1632, 112
  %v2103 = vpop.permute.xlu0 %2102
  %2104 = vrot.lane.b32.xlu0 %v1633, 112
  %v2105 = vpop.permute.xlu0 %2104
  %2106 = vrot.lane.b32.xlu0 %v1634, 112
  %v2107 = vpop.permute.xlu0 %2106
  %2108 = vrot.lane.b32.xlu0 %v1635, 112
  %v2109 = vpop.permute.xlu0 %2108
  %2110 = vrot.lane.b32.xlu0 %v1636, 112
  %v2111 = vpop.permute.xlu0 %2110
  %2112 = vrot.lane.b32.xlu0 %v1637, 112
  %v2113 = vpop.permute.xlu0 %2112
  %2114 = vrot.lane.b32.xlu0 %v1638, 112
  %v2115 = vpop.permute.xlu0 %2114
  %2116 = vrot.lane.b32.xlu0 %v1639, 112
  %v2117 = vpop.permute.xlu0 %2116
  %2118 = vrot.lane.b32.xlu0 %v1640, 112
  %v2119 = vpop.permute.xlu0 %2118
  %2120 = vrot.lane.b32.xlu0 %v1641, 112
  %v2121 = vpop.permute.xlu0 %2120
  %2122 = vrot.lane.b32.xlu0 %v1642, 112
  %v2123 = vpop.permute.xlu0 %2122
  %2124 = vrot.lane.b32.xlu0 %v1643, 112
  %v2125 = vpop.permute.xlu0 %2124
  %2126 = vrot.lane.b32.xlu0 %v1709, 112
  %v2127 = vpop.permute.xlu0 %2126
  %v2144 = vsel %vm18, %v1612, %v1728
  %v2145 = vsel %vm18, %v1613, %v1730
  %v2146 = vsel %vm18, %v1614, %v1732
  %v2147 = vsel %vm18, %v1615, %v1734
  %v2148 = vsel %vm18, %v1616, %v1736
  %v2149 = vsel %vm18, %v1617, %v1738
  %v2150 = vsel %vm18, %v1618, %v1740
  %v2151 = vsel %vm18, %v1619, %v1742
  %v2152 = vsel %vm18, %v1620, %v1744
  %v2153 = vsel %vm18, %v1621, %v1746
  %v2154 = vsel %vm18, %v1622, %v1748
  %v2155 = vsel %vm18, %v1623, %v1750
  %v2156 = vsel %vm18, %v1624, %v1752
  %v2157 = vsel %vm18, %v1625, %v1754
  %v2158 = vsel %vm18, %v1626, %v1756
  %v2159 = vsel %vm18, %v1627, %v1758
  %v2160 = vsel %vm93, %v2144, %v1792
  %v2161 = vsel %vm93, %v2145, %v1794
  %v2162 = vsel %vm93, %v2146, %v1796
  %v2163 = vsel %vm93, %v2147, %v1798
  %v2164 = vsel %vm93, %v2148, %v1800
  %v2165 = vsel %vm93, %v2149, %v1802
  %v2166 = vsel %vm93, %v2150, %v1804
  %v2167 = vsel %vm93, %v2151, %v1806
  %v2168 = vsel %vm93, %v2152, %v1808
  %v2169 = vsel %vm93, %v2153, %v1810
  %v2170 = vsel %vm93, %v2154, %v1812
  %v2171 = vsel %vm93, %v2155, %v1814
  %v2172 = vsel %vm93, %v2156, %v1816
  %v2173 = vsel %vm93, %v2157, %v1818
  %v2174 = vsel %vm93, %v2158, %v1820
  %v2175 = vsel %vm93, %v2159, %v1822
  %v2176 = vsel %vm799, %v2160, %v1856
  %v2177 = vsel %vm799, %v2161, %v1858
  %v2178 = vsel %vm799, %v2162, %v1860
  %v2179 = vsel %vm799, %v2163, %v1862
  %v2180 = vsel %vm799, %v2164, %v1864
  %v2181 = vsel %vm799, %v2165, %v1866
  %v2182 = vsel %vm799, %v2166, %v1868
  %v2183 = vsel %vm799, %v2167, %v1870
  %v2184 = vsel %vm799, %v2168, %v1872
  %v2185 = vsel %vm799, %v2169, %v1874
  %v2186 = vsel %vm799, %v2170, %v1876
  %v2187 = vsel %vm799, %v2171, %v1878
  %v2188 = vsel %vm799, %v2172, %v1880
  %v2189 = vsel %vm799, %v2173, %v1882
  %v2190 = vsel %vm799, %v2174, %v1884
  %v2191 = vsel %vm799, %v2175, %v1886
  %v2192 = vsel %vm816, %v2176, %v1920
  %v2193 = vsel %vm816, %v2177, %v1922
  %v2194 = vsel %vm816, %v2178, %v1924
  %v2195 = vsel %vm816, %v2179, %v1926
  %v2196 = vsel %vm816, %v2180, %v1928
  %v2197 = vsel %vm816, %v2181, %v1930
  %v2198 = vsel %vm816, %v2182, %v1932
  %v2199 = vsel %vm816, %v2183, %v1934
  %v2200 = vsel %vm816, %v2184, %v1936
  %v2201 = vsel %vm816, %v2185, %v1938
  %v2202 = vsel %vm816, %v2186, %v1940
  %v2203 = vsel %vm816, %v2187, %v1942
  %v2204 = vsel %vm816, %v2188, %v1944
  %v2205 = vsel %vm816, %v2189, %v1946
  %v2206 = vsel %vm816, %v2190, %v1948
  %v2207 = vsel %vm816, %v2191, %v1950
  %v2208 = vsel %vm833, %v2192, %v1984
  %v2209 = vsel %vm833, %v2193, %v1986
  %v2210 = vsel %vm833, %v2194, %v1988
  %v2211 = vsel %vm833, %v2195, %v1990
  %v2212 = vsel %vm833, %v2196, %v1992
  %v2213 = vsel %vm833, %v2197, %v1994
  %v2214 = vsel %vm833, %v2198, %v1996
  %v2215 = vsel %vm833, %v2199, %v1998
  %v2216 = vsel %vm833, %v2200, %v2000
  %v2217 = vsel %vm833, %v2201, %v2002
  %v2218 = vsel %vm833, %v2202, %v2004
  %v2219 = vsel %vm833, %v2203, %v2006
  %v2220 = vsel %vm833, %v2204, %v2008
  %v2221 = vsel %vm833, %v2205, %v2010
  %v2222 = vsel %vm833, %v2206, %v2012
  %v2223 = vsel %vm833, %v2207, %v2014
  %v2224 = vsel %vm850, %v2208, %v2048
  %v2225 = vsel %vm850, %v2209, %v2050
  %v2226 = vsel %vm850, %v2210, %v2052
  %v2227 = vsel %vm850, %v2211, %v2054
  %v2228 = vsel %vm850, %v2212, %v2056
  %v2229 = vsel %vm850, %v2213, %v2058
  %v2230 = vsel %vm850, %v2214, %v2060
  %v2231 = vsel %vm850, %v2215, %v2062
  %v2232 = vsel %vm850, %v2216, %v2064
  %v2233 = vsel %vm850, %v2217, %v2066
  %v2234 = vsel %vm850, %v2218, %v2068
  %v2235 = vsel %vm850, %v2219, %v2070
  %v2236 = vsel %vm850, %v2220, %v2072
  %v2237 = vsel %vm850, %v2221, %v2074
  %v2238 = vsel %vm850, %v2222, %v2076
  %v2239 = vsel %vm850, %v2223, %v2078
  %v2240 = vsel %vm867, %v2224, %v2097
  %v2241 = vsel %vm867, %v2225, %v2099
  %v2242 = vsel %vm867, %v2226, %v2101
  %v2243 = vsel %vm867, %v2227, %v2103
  %v2244 = vsel %vm867, %v2228, %v2105
  %v2245 = vsel %vm867, %v2229, %v2107
  %v2246 = vsel %vm867, %v2230, %v2109
  %v2247 = vsel %vm867, %v2231, %v2111
  %v2248 = vsel %vm867, %v2232, %v2113
  %v2249 = vsel %vm867, %v2233, %v2115
  %v2250 = vsel %vm867, %v2234, %v2117
  %v2251 = vsel %vm867, %v2235, %v2119
  %v2252 = vsel %vm867, %v2236, %v2121
  %v2253 = vsel %vm867, %v2237, %v2123
  %v2254 = vsel %vm867, %v2238, %v2125
  %v2255 = vsel %vm867, %v2239, %v2127
  %v2256 = vld [vmem:[%s1] sm:$0xff]
  %v2257 = vld [vmem:[%s1 + $0x8] sm:$0xff]
  %v2258 = vld [vmem:[%s1 + $0x10] sm:$0xff]
  %v2259 = vld [vmem:[%s1 + $0x18] sm:$0xff]
  %v2260 = vld [vmem:[%s1 + $0x20] sm:$0xff]
  %v2261 = vld [vmem:[%s1 + $0x28] sm:$0xff]
  %v2262 = vld [vmem:[%s1 + $0x30] sm:$0xff]
  %v2263 = vld [vmem:[%s1 + $0x38] sm:$0xff]
  %v2264 = vld [vmem:[%s1 + $0x40] sm:$0xff]
  %v2265 = vld [vmem:[%s1 + $0x48] sm:$0xff]
  %v2266 = vld [vmem:[%s1 + $0x50] sm:$0xff]
  %v2267 = vld [vmem:[%s1 + $0x58] sm:$0xff]
  %v2268 = vld [vmem:[%s1 + $0x60] sm:$0xff]
  %v2269 = vld [vmem:[%s1 + $0x68] sm:$0xff]
  %v2270 = vld [vmem:[%s1 + $0x70] sm:$0xff]
  %v2271 = vld [vmem:[%s1 + $0x78] sm:$0xff]
  %v2272 = vld [vmem:[%s1 + $0x80] sm:$0xff]
  %v2273 = vld [vmem:[%s1 + $0x88] sm:$0xff]
  %v2274 = vld [vmem:[%s1 + $0x90] sm:$0xff]
  %v2275 = vld [vmem:[%s1 + $0x98] sm:$0xff]
  %v2276 = vld [vmem:[%s1 + $0xa0] sm:$0xff]
  %v2277 = vld [vmem:[%s1 + $0xa8] sm:$0xff]
  %v2278 = vld [vmem:[%s1 + $0xb0] sm:$0xff]
  %v2279 = vld [vmem:[%s1 + $0xb8] sm:$0xff]
  %v2280 = vld [vmem:[%s1 + $0xc0] sm:$0xff]
  %v2281 = vld [vmem:[%s1 + $0xc8] sm:$0xff]
  %v2282 = vld [vmem:[%s1 + $0xd0] sm:$0xff]
  %v2283 = vld [vmem:[%s1 + $0xd8] sm:$0xff]
  %v2284 = vld [vmem:[%s1 + $0xe0] sm:$0xff]
  %v2285 = vld [vmem:[%s1 + $0xe8] sm:$0xff]
  %v2286 = vld [vmem:[%s1 + $0xf0] sm:$0xff]
  %v2287 = vld [vmem:[%s1 + $0xf8] sm:$0xff]
  %v2288 = vmul.f32 %v2240, %v2256
  %v2289 = vmul.f32 %v1645, %v2257
  %v2290 = vmul.f32 %v2241, %v2258
  %v2291 = vmul.f32 %v1646, %v2259
  %v2292 = vmul.f32 %v2242, %v2260
  %v2293 = vmul.f32 %v1647, %v2261
  %v2294 = vmul.f32 %v2243, %v2262
  %v2295 = vmul.f32 %v1648, %v2263
  %v2296 = vmul.f32 %v2244, %v2264
  %v2297 = vmul.f32 %v1649, %v2265
  %v2298 = vmul.f32 %v2245, %v2266
  %v2299 = vmul.f32 %v1650, %v2267
  %v2300 = vmul.f32 %v2246, %v2268
  %v2301 = vmul.f32 %v1651, %v2269
  %v2302 = vmul.f32 %v2247, %v2270
  %v2303 = vmul.f32 %v1652, %v2271
  %v2304 = vmul.f32 %v2248, %v2272
  %v2305 = vmul.f32 %v1653, %v2273
  %v2306 = vmul.f32 %v2249, %v2274
  %v2307 = vmul.f32 %v1654, %v2275
  %v2308 = vmul.f32 %v2250, %v2276
  %v2309 = vmul.f32 %v1655, %v2277
  %v2310 = vmul.f32 %v2251, %v2278
  %v2311 = vmul.f32 %v1656, %v2279
  %v2312 = vmul.f32 %v2252, %v2280
  %v2313 = vmul.f32 %v1657, %v2281
  %v2314 = vmul.f32 %v2253, %v2282
  %v2315 = vmul.f32 %v1658, %v2283
  %v2316 = vmul.f32 %v2254, %v2284
  %v2317 = vmul.f32 %v1659, %v2285
  %v2318 = vmul.f32 %v2255, %v2286
  %v2319 = vmul.f32 %v1710, %v2287
  %v2320 = vpack.c.bf16 %v2290, %v2288
  %v2321 = vpack.c.bf16 %v2291, %v2289
  %v2322 = vpack.c.bf16 %v2294, %v2292
  %v2323 = vpack.c.bf16 %v2295, %v2293
  %v2324 = vpack.c.bf16 %v2298, %v2296
  %v2325 = vpack.c.bf16 %v2299, %v2297
  %v2326 = vpack.c.bf16 %v2302, %v2300
  %v2327 = vpack.c.bf16 %v2303, %v2301
  %v2328 = vpack.c.bf16 %v2306, %v2304
  %v2329 = vpack.c.bf16 %v2307, %v2305
  %v2330 = vpack.c.bf16 %v2310, %v2308
  %v2331 = vpack.c.bf16 %v2311, %v2309
  %v2332 = vpack.c.bf16 %v2314, %v2312
  %v2333 = vpack.c.bf16 %v2315, %v2313
  %v2334 = vpack.c.bf16 %v2318, %v2316
  %v2335 = vpack.c.bf16 %v2319, %v2317
  %v2336 = vld [vmem:[%s2 + $0x80] sm:$0xf]
  %v2337 = vld [vmem:[%s2 + $0x84] sm:$0xf]
  %v2338 = vld [vmem:[%s2 + $0x88] sm:$0xf]
  %v2339 = vld [vmem:[%s2 + $0x8c] sm:$0xf]
  %v2340 = vld [vmem:[%s2 + $0x90] sm:$0xf]
  %v2341 = vld [vmem:[%s2 + $0x94] sm:$0xf]
  %v2342 = vld [vmem:[%s2 + $0x98] sm:$0xf]
  %v2343 = vld [vmem:[%s2 + $0x9c] sm:$0xf]
  %v2344 = vld [vmem:[%s2 + $0xa0] sm:$0xf]
  %v2345 = vld [vmem:[%s2 + $0xa4] sm:$0xf]
  %v2346 = vld [vmem:[%s2 + $0xa8] sm:$0xf]
  %v2347 = vld [vmem:[%s2 + $0xac] sm:$0xf]
  %v2348 = vld [vmem:[%s2 + $0xb0] sm:$0xf]
  %v2349 = vld [vmem:[%s2 + $0xb4] sm:$0xf]
  %v2350 = vld [vmem:[%s2 + $0xb8] sm:$0xf]
  %v2351 = vld [vmem:[%s2 + $0xbc] sm:$0xf]
  %v2352 = vld [vmem:[%s2 + $0xc0] sm:$0xf]
  %v2353 = vld [vmem:[%s2 + $0xc4] sm:$0xf]
  %v2372 = vunpack.c.l.b16 %v2336
  %v2373 = vunpack.c.l.b16 %v2337
  %v2374 = vunpack.c.l.b16 %v2338
  %v2375 = vunpack.c.l.b16 %v2339
  %v2376 = vunpack.c.l.b16 %v2340
  %v2377 = vunpack.c.l.b16 %v2341
  %v2378 = vunpack.c.l.b16 %v2342
  %v2379 = vunpack.c.l.b16 %v2343
  %v2380 = vunpack.c.l.b16 %v2344
  %v2381 = vunpack.c.l.b16 %v2345
  %v2382 = vunpack.c.l.b16 %v2346
  %v2383 = vunpack.c.l.b16 %v2347
  %v2384 = vunpack.c.l.b16 %v2348
  %v2385 = vunpack.c.l.b16 %v2349
  %v2386 = vunpack.c.l.b16 %v2350
  %v2387 = vunpack.c.l.b16 %v2351
  %v2388 = vunpack.c.l.b16 %v2352
  %v2389 = vunpack.c.l.b16 %v2353
  %v2390 = vpack.c.b16 %v2373, %v2372
  %v2391 = vpack.c.b16 %v2375, %v2374
  %v2392 = vpack.c.b16 %v2377, %v2376
  %v2393 = vpack.c.b16 %v2379, %v2378
  %v2394 = vpack.c.b16 %v2381, %v2380
  %v2395 = vpack.c.b16 %v2383, %v2382
  %v2396 = vpack.c.b16 %v2385, %v2384
  %v2397 = vpack.c.b16 %v2387, %v2386
  %v2398 = vpack.c.b16 %v2389, %v2388
  %v2409 = vsel %vm18, %v2321, 0
  %v2412 = vsel %vm18, %v2323, 0
  %v2415 = vsel %vm18, %v2325, 0
  %v2418 = vsel %vm18, %v2327, 0
  %v2421 = vsel %vm18, %v2329, 0
  %v2424 = vsel %vm18, %v2331, 0
  %v2427 = vsel %vm18, %v2333, 0
  %v2430 = vsel %vm18, %v2335, 0
  %2432 = vmatpush.bf16.msra.mxu0 %v2397
  %2433 = vmatpush.bf16.msra.mxu0 %v2396
  %2434 = vmatpush.bf16.msra.mxu0 %v2395
  %2435 = vmatpush.bf16.msra.mxu0 %v2394
  %2436 = vmatpush.bf16.msra.mxu0 %v2393
  %2437 = vmatpush.bf16.msra.mxu0 %v2392
  %2438 = vmatpush.bf16.msra.mxu0 %v2391
  %2439 = vmatpush.bf16.msra.mxu0 %v2390
  %2440 = vmatmul.bf16.gmra.mxu0 %v2320
  %v2441 = vpop.f32.mrf.mxu0
  %v2442 = vadd.f32 0.0, %v2441
  %v2443 = vpop.f32.mrf.mxu0
  %v2444 = vadd.f32 0.0, %v2443
  %2445 = vmatmul.bf16.gmra.mxu0 %v2322
  %v2446 = vpop.f32.mrf.mxu0
  %v2447 = vadd.f32 0.0, %v2446
  %v2448 = vpop.f32.mrf.mxu0
  %v2449 = vadd.f32 0.0, %v2448
  %2450 = vmatmul.bf16.gmra.mxu0 %v2324
  %v2451 = vpop.f32.mrf.mxu0
  %v2452 = vadd.f32 0.0, %v2451
  %v2453 = vpop.f32.mrf.mxu0
  %v2454 = vadd.f32 0.0, %v2453
  %2455 = vmatmul.bf16.gmra.mxu0 %v2326
  %v2456 = vpop.f32.mrf.mxu0
  %v2457 = vadd.f32 0.0, %v2456
  %v2458 = vpop.f32.mrf.mxu0
  %v2459 = vadd.f32 0.0, %v2458
  %2460 = vmatmul.bf16.gmra.mxu0 %v2328
  %v2461 = vpop.f32.mrf.mxu0
  %v2462 = vadd.f32 0.0, %v2461
  %v2463 = vpop.f32.mrf.mxu0
  %v2464 = vadd.f32 0.0, %v2463
  %2465 = vmatmul.bf16.gmra.mxu0 %v2330
  %v2466 = vpop.f32.mrf.mxu0
  %v2467 = vadd.f32 0.0, %v2466
  %v2468 = vpop.f32.mrf.mxu0
  %v2469 = vadd.f32 0.0, %v2468
  %2470 = vmatmul.bf16.gmra.mxu0 %v2332
  %v2471 = vpop.f32.mrf.mxu0
  %v2472 = vadd.f32 0.0, %v2471
  %v2473 = vpop.f32.mrf.mxu0
  %v2474 = vadd.f32 0.0, %v2473
  %2475 = vmatmul.bf16.gmra.mxu0 %v2334
  %v2476 = vpop.f32.mrf.mxu0
  %v2477 = vadd.f32 0.0, %v2476
  %v2478 = vpop.f32.mrf.mxu0
  %v2479 = vadd.f32 0.0, %v2478
  %2480 = vdwg.mxu0
  %2481 = vmatpush.bf16.msra.mxu0 0
  %2482 = vmatpush.bf16.msra.mxu0 0
  %2483 = vmatpush.bf16.msra.mxu0 0
  %2484 = vmatpush.bf16.msra.mxu0 0
  %2485 = vmatpush.bf16.msra.mxu0 0
  %2486 = vmatpush.bf16.msra.mxu0 0
  %2487 = vmatpush.bf16.msra.mxu0 0
  %2488 = vmatpush.bf16.msra.mxu0 %v2398
  %2489 = vmatmul.bf16.gmra.mxu0 %v2409
  %v2490 = vpop.f32.mrf.mxu0
  %v2491 = vadd.f32 %v2442, %v2490
  %v2492 = vpop.f32.mrf.mxu0
  %v2493 = vadd.f32 %v2444, %v2492
  %2494 = vmatmul.bf16.gmra.mxu0 %v2412
  %v2495 = vpop.f32.mrf.mxu0
  %v2496 = vadd.f32 %v2447, %v2495
  %v2497 = vpop.f32.mrf.mxu0
  %v2498 = vadd.f32 %v2449, %v2497
  %2499 = vmatmul.bf16.gmra.mxu0 %v2415
  %v2500 = vpop.f32.mrf.mxu0
  %v2501 = vadd.f32 %v2452, %v2500
  %v2502 = vpop.f32.mrf.mxu0
  %v2503 = vadd.f32 %v2454, %v2502
  %2504 = vmatmul.bf16.gmra.mxu0 %v2418
  %v2505 = vpop.f32.mrf.mxu0
  %v2506 = vadd.f32 %v2457, %v2505
  %v2507 = vpop.f32.mrf.mxu0
  %v2508 = vadd.f32 %v2459, %v2507
  %2509 = vmatmul.bf16.gmra.mxu0 %v2421
  %v2510 = vpop.f32.mrf.mxu0
  %v2511 = vadd.f32 %v2462, %v2510
  %v2512 = vpop.f32.mrf.mxu0
  %v2513 = vadd.f32 %v2464, %v2512
  %2514 = vmatmul.bf16.gmra.mxu0 %v2424
  %v2515 = vpop.f32.mrf.mxu0
  %v2516 = vadd.f32 %v2467, %v2515
  %v2517 = vpop.f32.mrf.mxu0
  %v2518 = vadd.f32 %v2469, %v2517
  %2519 = vmatmul.bf16.gmra.mxu0 %v2427
  %v2520 = vpop.f32.mrf.mxu0
  %v2521 = vadd.f32 %v2472, %v2520
  %v2522 = vpop.f32.mrf.mxu0
  %v2523 = vadd.f32 %v2474, %v2522
  %2524 = vmatmul.bf16.gmra.mxu0 %v2430
  %v2525 = vpop.f32.mrf.mxu0
  %v2526 = vadd.f32 %v2477, %v2525
  %v2527 = vpop.f32.mrf.mxu0
  %v2528 = vadd.f32 %v2479, %v2527
  %2529 = vdwg.mxu0
  %v2530 = vld [vmem:[%s3 + $0x8] sm:$0x1]
  %v2531 = vperm.slane %v2530, 0
  %v2532 = vmul.f32 %v2491, %v2531
  %v2533 = vmul.f32 %v2493, %v2531
  %v2534 = vmul.f32 %v2496, %v2531
  %v2535 = vmul.f32 %v2498, %v2531
  %v2536 = vmul.f32 %v2501, %v2531
  %v2537 = vmul.f32 %v2503, %v2531
  %v2538 = vmul.f32 %v2506, %v2531
  %v2539 = vmul.f32 %v2508, %v2531
  %v2540 = vmul.f32 %v2511, %v2531
  %v2541 = vmul.f32 %v2513, %v2531
  %v2542 = vmul.f32 %v2516, %v2531
  %v2543 = vmul.f32 %v2518, %v2531
  %v2544 = vmul.f32 %v2521, %v2531
  %v2545 = vmul.f32 %v2523, %v2531
  %v2546 = vmul.f32 %v2526, %v2531
  %v2547 = vmul.f32 %v2528, %v2531
  %v2548 = vld [vmem:[%s3 + $0x9] sm:$0x1]
  %v2549 = vperm.slane %v2548, 0
  %v2550 = vadd.f32 %v2532, %v2549
  %v2551 = vadd.f32 %v2533, %v2549
  %v2552 = vadd.f32 %v2534, %v2549
  %v2553 = vadd.f32 %v2535, %v2549
  %v2554 = vadd.f32 %v2536, %v2549
  %v2555 = vadd.f32 %v2537, %v2549
  %v2556 = vadd.f32 %v2538, %v2549
  %v2557 = vadd.f32 %v2539, %v2549
  %v2558 = vadd.f32 %v2540, %v2549
  %v2559 = vadd.f32 %v2541, %v2549
  %v2560 = vadd.f32 %v2542, %v2549
  %v2561 = vadd.f32 %v2543, %v2549
  %v2562 = vadd.f32 %v2544, %v2549
  %v2563 = vadd.f32 %v2545, %v2549
  %v2564 = vadd.f32 %v2546, %v2549
  %v2565 = vadd.f32 %v2547, %v2549
  %v2566 = vmax.f32 %v2550, 0.0
  %v2567 = vmax.f32 %v2551, 0.0
  %v2568 = vmax.f32 %v2552, 0.0
  %v2569 = vmax.f32 %v2553, 0.0
  %v2570 = vmax.f32 %v2554, 0.0
  %v2571 = vmax.f32 %v2555, 0.0
  %v2572 = vmax.f32 %v2556, 0.0
  %v2573 = vmax.f32 %v2557, 0.0
  %v2574 = vmax.f32 %v2558, 0.0
  %v2575 = vmax.f32 %v2559, 0.0
  %v2576 = vmax.f32 %v2560, 0.0
  %v2577 = vmax.f32 %v2561, 0.0
  %v2578 = vmax.f32 %v2562, 0.0
  %v2579 = vmax.f32 %v2563, 0.0
  %v2580 = vmax.f32 %v2564, 0.0
  %v2581 = vmax.f32 %v2565, 0.0
  %v2582 = vpack.c.bf16 %v2567, %v2566
  %v2583 = vpack.c.bf16 %v2569, %v2568
  %v2584 = vpack.c.bf16 %v2571, %v2570
  %v2585 = vpack.c.bf16 %v2573, %v2572
  %v2586 = vpack.c.bf16 %v2575, %v2574
  %v2587 = vpack.c.bf16 %v2577, %v2576
  %v2588 = vpack.c.bf16 %v2579, %v2578
  %v2589 = vpack.c.bf16 %v2581, %v2580
  %v2590 = vld [vmem:[%s2 + $0xc8] sm:$0xf]
  %v2591 = vld [vmem:[%s2 + $0xcc] sm:$0xf]
  %v2594 = vunpack.c.l.b16 %v2590
  %v2595 = vunpack.c.l.b16 %v2591
  %v2596 = vpack.c.b16 %v2595, %v2594
  %v2599 = vsel %vm18, %v2582, 0
  %v2602 = vsel %vm18, %v2583, 0
  %v2605 = vsel %vm18, %v2584, 0
  %v2608 = vsel %vm18, %v2585, 0
  %v2611 = vsel %vm18, %v2586, 0
  %v2614 = vsel %vm18, %v2587, 0
  %v2617 = vsel %vm18, %v2588, 0
  %v2620 = vsel %vm18, %v2589, 0
  %2622 = vmatpush.bf16.msra.mxu0 0
  %2623 = vmatpush.bf16.msra.mxu0 0
  %2624 = vmatpush.bf16.msra.mxu0 0
  %2625 = vmatpush.bf16.msra.mxu0 0
  %2626 = vmatpush.bf16.msra.mxu0 0
  %2627 = vmatpush.bf16.msra.mxu0 0
  %2628 = vmatpush.bf16.msra.mxu0 0
  %2629 = vmatpush.bf16.msra.mxu0 %v2596
  %2630 = vmatmul.bf16.gmra.mxu0 %v2599
  %v2631 = vpop.f32.mrf.mxu0
  %v2632 = vadd.f32 0.0, %v2631
  %v2633 = vpop.f32.mrf.mxu0
  %v2634 = vadd.f32 0.0, %v2633
  %2635 = vmatmul.bf16.gmra.mxu0 %v2602
  %v2636 = vpop.f32.mrf.mxu0
  %v2637 = vadd.f32 0.0, %v2636
  %v2638 = vpop.f32.mrf.mxu0
  %v2639 = vadd.f32 0.0, %v2638
  %2640 = vmatmul.bf16.gmra.mxu0 %v2605
  %v2641 = vpop.f32.mrf.mxu0
  %v2642 = vadd.f32 0.0, %v2641
  %v2643 = vpop.f32.mrf.mxu0
  %v2644 = vadd.f32 0.0, %v2643
  %2645 = vmatmul.bf16.gmra.mxu0 %v2608
  %v2646 = vpop.f32.mrf.mxu0
  %v2647 = vadd.f32 0.0, %v2646
  %v2648 = vpop.f32.mrf.mxu0
  %v2649 = vadd.f32 0.0, %v2648
  %2650 = vmatmul.bf16.gmra.mxu0 %v2611
  %v2651 = vpop.f32.mrf.mxu0
  %v2652 = vadd.f32 0.0, %v2651
  %v2653 = vpop.f32.mrf.mxu0
  %v2654 = vadd.f32 0.0, %v2653
  %2655 = vmatmul.bf16.gmra.mxu0 %v2614
  %v2656 = vpop.f32.mrf.mxu0
  %v2657 = vadd.f32 0.0, %v2656
  %v2658 = vpop.f32.mrf.mxu0
  %v2659 = vadd.f32 0.0, %v2658
  %2660 = vmatmul.bf16.gmra.mxu0 %v2617
  %v2661 = vpop.f32.mrf.mxu0
  %v2662 = vadd.f32 0.0, %v2661
  %v2663 = vpop.f32.mrf.mxu0
  %v2664 = vadd.f32 0.0, %v2663
  %2665 = vmatmul.bf16.gmra.mxu0 %v2620
  %v2666 = vpop.f32.mrf.mxu0
  %v2667 = vadd.f32 0.0, %v2666
  %v2668 = vpop.f32.mrf.mxu0
  %v2669 = vadd.f32 0.0, %v2668
  %2670 = vdwg.mxu0
  %v2671 = vld [vmem:[%s3 + $0xa] sm:$0x1]
  %v2672 = vperm.slane %v2671, 0
  %v2673 = vmul.f32 %v2632, %v2672
  %v2674 = vmul.f32 %v2634, %v2672
  %v2675 = vmul.f32 %v2637, %v2672
  %v2676 = vmul.f32 %v2639, %v2672
  %v2677 = vmul.f32 %v2642, %v2672
  %v2678 = vmul.f32 %v2644, %v2672
  %v2679 = vmul.f32 %v2647, %v2672
  %v2680 = vmul.f32 %v2649, %v2672
  %v2681 = vmul.f32 %v2652, %v2672
  %v2682 = vmul.f32 %v2654, %v2672
  %v2683 = vmul.f32 %v2657, %v2672
  %v2684 = vmul.f32 %v2659, %v2672
  %v2685 = vmul.f32 %v2662, %v2672
  %v2686 = vmul.f32 %v2664, %v2672
  %v2687 = vmul.f32 %v2667, %v2672
  %v2688 = vmul.f32 %v2669, %v2672
  %v2689 = vld [vmem:[%s3 + $0xb] sm:$0x1]
  %v2690 = vperm.slane %v2689, 0
  %v2691 = vadd.f32 %v2673, %v2690
  %v2692 = vadd.f32 %v2674, %v2690
  %v2693 = vadd.f32 %v2675, %v2690
  %v2694 = vadd.f32 %v2676, %v2690
  %v2695 = vadd.f32 %v2677, %v2690
  %v2696 = vadd.f32 %v2678, %v2690
  %v2697 = vadd.f32 %v2679, %v2690
  %v2698 = vadd.f32 %v2680, %v2690
  %v2699 = vadd.f32 %v2681, %v2690
  %v2700 = vadd.f32 %v2682, %v2690
  %v2701 = vadd.f32 %v2683, %v2690
  %v2702 = vadd.f32 %v2684, %v2690
  %v2703 = vadd.f32 %v2685, %v2690
  %v2704 = vadd.f32 %v2686, %v2690
  %v2705 = vadd.f32 %v2687, %v2690
  %v2706 = vadd.f32 %v2688, %v2690
  %v2707 = vadd.f32 %v2691, %v1415
  %v2708 = vadd.f32 %v2692, %v1416
  %v2709 = vadd.f32 %v2693, %v1417
  %v2710 = vadd.f32 %v2694, %v1418
  %v2711 = vadd.f32 %v2695, %v1419
  %v2712 = vadd.f32 %v2696, %v1420
  %v2713 = vadd.f32 %v2697, %v1421
  %v2714 = vadd.f32 %v2698, %v1422
  %v2715 = vadd.f32 %v2699, %v1423
  %v2716 = vadd.f32 %v2700, %v1424
  %v2717 = vadd.f32 %v2701, %v1425
  %v2718 = vadd.f32 %v2702, %v1426
  %v2719 = vadd.f32 %v2703, %v1427
  %v2720 = vadd.f32 %v2704, %v1428
  %v2721 = vadd.f32 %v2705, %v1429
  %v2722 = vadd.f32 %v2706, %v1430
  %v2723 = vmax.f32 %v2707, 0.0
  %v2724 = vmax.f32 %v2708, 0.0
  %v2725 = vmax.f32 %v2709, 0.0
  %v2726 = vmax.f32 %v2710, 0.0
  %v2727 = vmax.f32 %v2711, 0.0
  %v2728 = vmax.f32 %v2712, 0.0
  %v2729 = vmax.f32 %v2713, 0.0
  %v2730 = vmax.f32 %v2714, 0.0
  %v2731 = vmax.f32 %v2715, 0.0
  %v2732 = vmax.f32 %v2716, 0.0
  %v2733 = vmax.f32 %v2717, 0.0
  %v2734 = vmax.f32 %v2718, 0.0
  %v2735 = vmax.f32 %v2719, 0.0
  %v2736 = vmax.f32 %v2720, 0.0
  %v2737 = vmax.f32 %v2721, 0.0
  %v2738 = vmax.f32 %v2722, 0.0
  %v2739 = vpack.c.bf16 %v2724, %v2723
  %v2740 = vpack.c.bf16 %v2726, %v2725
  %v2741 = vpack.c.bf16 %v2728, %v2727
  %v2742 = vpack.c.bf16 %v2730, %v2729
  %v2743 = vpack.c.bf16 %v2732, %v2731
  %v2744 = vpack.c.bf16 %v2734, %v2733
  %v2745 = vpack.c.bf16 %v2736, %v2735
  %v2746 = vpack.c.bf16 %v2738, %v2737
  %v2747 = vld [vmem:[%s2 + $0xd0] sm:$0xf]
  %v2748 = vld [vmem:[%s2 + $0xd4] sm:$0xf]
  %v2749 = vld [vmem:[%s2 + $0xd8] sm:$0xf]
  %v2750 = vld [vmem:[%s2 + $0xdc] sm:$0xf]
  %v2751 = vld [vmem:[%s2 + $0xe0] sm:$0xf]
  %v2752 = vld [vmem:[%s2 + $0xe4] sm:$0xf]
  %v2753 = vld [vmem:[%s2 + $0xe8] sm:$0xf]
  %v2754 = vld [vmem:[%s2 + $0xec] sm:$0xf]
  %v2763 = vunpack.c.l.b16 %v2747
  %v2764 = vunpack.c.l.b16 %v2748
  %v2765 = vunpack.c.l.b16 %v2749
  %v2766 = vunpack.c.l.b16 %v2750
  %v2767 = vunpack.c.l.b16 %v2751
  %v2768 = vunpack.c.l.b16 %v2752
  %v2769 = vunpack.c.l.b16 %v2753
  %v2770 = vunpack.c.l.b16 %v2754
  %v2771 = vpack.c.b16 %v2764, %v2763
  %v2772 = vpack.c.b16 %v2766, %v2765
  %v2773 = vpack.c.b16 %v2768, %v2767
  %v2774 = vpack.c.b16 %v2770, %v2769
  %v2780 = vsel %vm816, %v2739, 0
  %v2783 = vsel %vm816, %v2740, 0
  %v2786 = vsel %vm816, %v2741, 0
  %v2789 = vsel %vm816, %v2742, 0
  %v2792 = vsel %vm816, %v2743, 0
  %v2795 = vsel %vm816, %v2744, 0
  %v2798 = vsel %vm816, %v2745, 0
  %v2801 = vsel %vm816, %v2746, 0
  %2803 = vmatpush.bf16.msra.mxu0 0
  %2804 = vmatpush.bf16.msra.mxu0 0
  %2805 = vmatpush.bf16.msra.mxu0 0
  %2806 = vmatpush.bf16.msra.mxu0 0
  %2807 = vmatpush.bf16.msra.mxu0 %v2774
  %2808 = vmatpush.bf16.msra.mxu0 %v2773
  %2809 = vmatpush.bf16.msra.mxu0 %v2772
  %2810 = vmatpush.bf16.msra.mxu0 %v2771
  %2811 = vmatmul.bf16.gmra.mxu0 %v2780
  %v2812 = vpop.f32.mrf.mxu0
  %v2813 = vadd.f32 0.0, %v2812
  %v2814 = vpop.f32.mrf.mxu0
  %v2815 = vadd.f32 0.0, %v2814
  %2816 = vmatmul.bf16.gmra.mxu0 %v2783
  %v2817 = vpop.f32.mrf.mxu0
  %v2818 = vadd.f32 0.0, %v2817
  %v2819 = vpop.f32.mrf.mxu0
  %v2820 = vadd.f32 0.0, %v2819
  %2821 = vmatmul.bf16.gmra.mxu0 %v2786
  %v2822 = vpop.f32.mrf.mxu0
  %v2823 = vadd.f32 0.0, %v2822
  %v2824 = vpop.f32.mrf.mxu0
  %v2825 = vadd.f32 0.0, %v2824
  %2826 = vmatmul.bf16.gmra.mxu0 %v2789
  %v2827 = vpop.f32.mrf.mxu0
  %v2828 = vadd.f32 0.0, %v2827
  %v2829 = vpop.f32.mrf.mxu0
  %v2830 = vadd.f32 0.0, %v2829
  %2831 = vmatmul.bf16.gmra.mxu0 %v2792
  %v2832 = vpop.f32.mrf.mxu0
  %v2833 = vadd.f32 0.0, %v2832
  %v2834 = vpop.f32.mrf.mxu0
  %v2835 = vadd.f32 0.0, %v2834
  %2836 = vmatmul.bf16.gmra.mxu0 %v2795
  %v2837 = vpop.f32.mrf.mxu0
  %v2838 = vadd.f32 0.0, %v2837
  %v2839 = vpop.f32.mrf.mxu0
  %v2840 = vadd.f32 0.0, %v2839
  %2841 = vmatmul.bf16.gmra.mxu0 %v2798
  %v2842 = vpop.f32.mrf.mxu0
  %v2843 = vadd.f32 0.0, %v2842
  %v2844 = vpop.f32.mrf.mxu0
  %v2845 = vadd.f32 0.0, %v2844
  %2846 = vmatmul.bf16.gmra.mxu0 %v2801
  %v2847 = vpop.f32.mrf.mxu0
  %v2848 = vadd.f32 0.0, %v2847
  %v2849 = vpop.f32.mrf.mxu0
  %v2850 = vadd.f32 0.0, %v2849
  %2851 = vdwg.mxu0
  %v2852 = vld [vmem:[%s3 + $0xc] sm:$0x1]
  %v2853 = vperm.slane %v2852, 0
  %v2854 = vmul.f32 %v2813, %v2853
  %v2855 = vmul.f32 %v2815, %v2853
  %v2856 = vmul.f32 %v2818, %v2853
  %v2857 = vmul.f32 %v2820, %v2853
  %v2858 = vmul.f32 %v2823, %v2853
  %v2859 = vmul.f32 %v2825, %v2853
  %v2860 = vmul.f32 %v2828, %v2853
  %v2861 = vmul.f32 %v2830, %v2853
  %v2862 = vmul.f32 %v2833, %v2853
  %v2863 = vmul.f32 %v2835, %v2853
  %v2864 = vmul.f32 %v2838, %v2853
  %v2865 = vmul.f32 %v2840, %v2853
  %v2866 = vmul.f32 %v2843, %v2853
  %v2867 = vmul.f32 %v2845, %v2853
  %v2868 = vmul.f32 %v2848, %v2853
  %v2869 = vmul.f32 %v2850, %v2853
  %v2870 = vld [vmem:[%s3 + $0xd] sm:$0x1]
  %v2871 = vperm.slane %v2870, 0
  %v2872 = vadd.f32 %v2854, %v2871
  %v2873 = vadd.f32 %v2855, %v2871
  %v2874 = vadd.f32 %v2856, %v2871
  %v2875 = vadd.f32 %v2857, %v2871
  %v2876 = vadd.f32 %v2858, %v2871
  %v2877 = vadd.f32 %v2859, %v2871
  %v2878 = vadd.f32 %v2860, %v2871
  %v2879 = vadd.f32 %v2861, %v2871
  %v2880 = vadd.f32 %v2862, %v2871
  %v2881 = vadd.f32 %v2863, %v2871
  %v2882 = vadd.f32 %v2864, %v2871
  %v2883 = vadd.f32 %v2865, %v2871
  %v2884 = vadd.f32 %v2866, %v2871
  %v2885 = vadd.f32 %v2867, %v2871
  %v2886 = vadd.f32 %v2868, %v2871
  %v2887 = vadd.f32 %v2869, %v2871
  %v2888 = vmax.f32 %v2872, 0.0
  %v2889 = vmax.f32 %v2873, 0.0
  %v2890 = vmax.f32 %v2874, 0.0
  %v2891 = vmax.f32 %v2875, 0.0
  %v2892 = vmax.f32 %v2876, 0.0
  %v2893 = vmax.f32 %v2877, 0.0
  %v2894 = vmax.f32 %v2878, 0.0
  %v2895 = vmax.f32 %v2879, 0.0
  %v2896 = vmax.f32 %v2880, 0.0
  %v2897 = vmax.f32 %v2881, 0.0
  %v2898 = vmax.f32 %v2882, 0.0
  %v2899 = vmax.f32 %v2883, 0.0
  %v2900 = vmax.f32 %v2884, 0.0
  %v2901 = vmax.f32 %v2885, 0.0
  %v2902 = vmax.f32 %v2886, 0.0
  %v2903 = vmax.f32 %v2887, 0.0
  %2904 = vst.msk [vmem:[#allocation2 + $0x8] sm:$0xff] %vm18, %v2888
  %2905 = vst.msk [vmem:[#allocation2 + $0x10] sm:$0xff] %vm18, %v2889
  %2906 = vst.msk [vmem:[#allocation2 + $0x18] sm:$0xff] %vm18, %v2890
  %2907 = vst.msk [vmem:[#allocation2 + $0x20] sm:$0xff] %vm18, %v2891
  %2908 = vst.msk [vmem:[#allocation2 + $0x28] sm:$0xff] %vm18, %v2892
  %2909 = vst.msk [vmem:[#allocation2 + $0x30] sm:$0xff] %vm18, %v2893
  %2910 = vst.msk [vmem:[#allocation2 + $0x38] sm:$0xff] %vm18, %v2894
  %2911 = vst.msk [vmem:[#allocation2 + $0x40] sm:$0xff] %vm18, %v2895
  %2912 = vst.msk [vmem:[#allocation2 + $0x48] sm:$0xff] %vm18, %v2896
  %2913 = vst.msk [vmem:[#allocation2 + $0x50] sm:$0xff] %vm18, %v2897
  %2914 = vst.msk [vmem:[#allocation2 + $0x58] sm:$0xff] %vm18, %v2898
  %2915 = vst.msk [vmem:[#allocation2 + $0x60] sm:$0xff] %vm18, %v2899
  %2916 = vst.msk [vmem:[#allocation2 + $0x68] sm:$0xff] %vm18, %v2900
  %2917 = vst.msk [vmem:[#allocation2 + $0x70] sm:$0xff] %vm18, %v2901
  %2918 = vst.msk [vmem:[#allocation2 + $0x78] sm:$0xff] %vm18, %v2902
  %2919 = vst.msk [vmem:[#allocation2 + $0x80] sm:$0xff] %vm18, %v2903
  %v2920 = vld [vmem:[#allocation2 + $0x3] sm:$0xff]
  %v2921 = vld [vmem:[#allocation2 + $0xb] sm:$0xff]
  %v2922 = vld [vmem:[#allocation2 + $0x13] sm:$0xff]
  %v2923 = vld [vmem:[#allocation2 + $0x1b] sm:$0xff]
  %v2924 = vld [vmem:[#allocation2 + $0x23] sm:$0xff]
  %v2925 = vld [vmem:[#allocation2 + $0x2b] sm:$0xff]
  %v2926 = vld [vmem:[#allocation2 + $0x33] sm:$0xff]
  %v2927 = vld [vmem:[#allocation2 + $0x3b] sm:$0xff]
  %v2928 = vld [vmem:[#allocation2 + $0x43] sm:$0xff]
  %v2929 = vld [vmem:[#allocation2 + $0x4b] sm:$0xff]
  %v2930 = vld [vmem:[#allocation2 + $0x53] sm:$0xff]
  %v2931 = vld [vmem:[#allocation2 + $0x5b] sm:$0xff]
  %v2932 = vld [vmem:[#allocation2 + $0x63] sm:$0xff]
  %v2933 = vld [vmem:[#allocation2 + $0x6b] sm:$0xff]
  %v2934 = vld [vmem:[#allocation2 + $0x73] sm:$0xff]
  %v2935 = vld [vmem:[#allocation2 + $0x7b] sm:$0xff]
  %v2936 = vld [vmem:[#allocation2 + $0x4] sm:$0xff]
  %v2937 = vld [vmem:[#allocation2 + $0xc] sm:$0xff]
  %v2938 = vld [vmem:[#allocation2 + $0x14] sm:$0xff]
  %v2939 = vld [vmem:[#allocation2 + $0x1c] sm:$0xff]
  %v2940 = vld [vmem:[#allocation2 + $0x24] sm:$0xff]
  %v2941 = vld [vmem:[#allocation2 + $0x2c] sm:$0xff]
  %v2942 = vld [vmem:[#allocation2 + $0x34] sm:$0xff]
  %v2943 = vld [vmem:[#allocation2 + $0x3c] sm:$0xff]
  %v2944 = vld [vmem:[#allocation2 + $0x44] sm:$0xff]
  %v2945 = vld [vmem:[#allocation2 + $0x4c] sm:$0xff]
  %v2946 = vld [vmem:[#allocation2 + $0x54] sm:$0xff]
  %v2947 = vld [vmem:[#allocation2 + $0x5c] sm:$0xff]
  %v2948 = vld [vmem:[#allocation2 + $0x64] sm:$0xff]
  %v2949 = vld [vmem:[#allocation2 + $0x6c] sm:$0xff]
  %v2950 = vld [vmem:[#allocation2 + $0x74] sm:$0xff]
  %v2951 = vld [vmem:[#allocation2 + $0x7c] sm:$0xff]
  %v2952 = vld [vmem:[#allocation2 + $0x5] sm:$0xff]
  %v2953 = vld [vmem:[#allocation2 + $0xd] sm:$0xff]
  %v2954 = vld [vmem:[#allocation2 + $0x15] sm:$0xff]
  %v2955 = vld [vmem:[#allocation2 + $0x1d] sm:$0xff]
  %v2956 = vld [vmem:[#allocation2 + $0x25] sm:$0xff]
  %v2957 = vld [vmem:[#allocation2 + $0x2d] sm:$0xff]
  %v2958 = vld [vmem:[#allocation2 + $0x35] sm:$0xff]
  %v2959 = vld [vmem:[#allocation2 + $0x3d] sm:$0xff]
  %v2960 = vld [vmem:[#allocation2 + $0x45] sm:$0xff]
  %v2961 = vld [vmem:[#allocation2 + $0x4d] sm:$0xff]
  %v2962 = vld [vmem:[#allocation2 + $0x55] sm:$0xff]
  %v2963 = vld [vmem:[#allocation2 + $0x5d] sm:$0xff]
  %v2964 = vld [vmem:[#allocation2 + $0x65] sm:$0xff]
  %v2965 = vld [vmem:[#allocation2 + $0x6d] sm:$0xff]
  %v2966 = vld [vmem:[#allocation2 + $0x75] sm:$0xff]
  %v2967 = vld [vmem:[#allocation2 + $0x7d] sm:$0xff]
  %v2968 = vld [vmem:[#allocation2 + $0x7] sm:$0xff]
  %v2969 = vld [vmem:[#allocation2 + $0xf] sm:$0xff]
  %v2970 = vld [vmem:[#allocation2 + $0x17] sm:$0xff]
  %v2971 = vld [vmem:[#allocation2 + $0x1f] sm:$0xff]
  %v2972 = vld [vmem:[#allocation2 + $0x27] sm:$0xff]
  %v2973 = vld [vmem:[#allocation2 + $0x2f] sm:$0xff]
  %v2974 = vld [vmem:[#allocation2 + $0x37] sm:$0xff]
  %v2975 = vld [vmem:[#allocation2 + $0x3f] sm:$0xff]
  %v2976 = vld [vmem:[#allocation2 + $0x47] sm:$0xff]
  %v2977 = vld [vmem:[#allocation2 + $0x4f] sm:$0xff]
  %v2978 = vld [vmem:[#allocation2 + $0x57] sm:$0xff]
  %v2979 = vld [vmem:[#allocation2 + $0x5f] sm:$0xff]
  %v2980 = vld [vmem:[#allocation2 + $0x67] sm:$0xff]
  %v2981 = vld [vmem:[#allocation2 + $0x6f] sm:$0xff]
  %v2982 = vld [vmem:[#allocation2 + $0x77] sm:$0xff]
  %v2983 = vld [vmem:[#allocation2 + $0x7f] sm:$0xff]
  %v2984 = vld [vmem:[#allocation2 + $0x8] sm:$0xff]
  %v2985 = vld [vmem:[#allocation2 + $0x10] sm:$0xff]
  %v2986 = vld [vmem:[#allocation2 + $0x18] sm:$0xff]
  %v2987 = vld [vmem:[#allocation2 + $0x20] sm:$0xff]
  %v2988 = vld [vmem:[#allocation2 + $0x28] sm:$0xff]
  %v2989 = vld [vmem:[#allocation2 + $0x30] sm:$0xff]
  %v2990 = vld [vmem:[#allocation2 + $0x38] sm:$0xff]
  %v2991 = vld [vmem:[#allocation2 + $0x40] sm:$0xff]
  %v2992 = vld [vmem:[#allocation2 + $0x48] sm:$0xff]
  %v2993 = vld [vmem:[#allocation2 + $0x50] sm:$0xff]
  %v2994 = vld [vmem:[#allocation2 + $0x58] sm:$0xff]
  %v2995 = vld [vmem:[#allocation2 + $0x60] sm:$0xff]
  %v2996 = vld [vmem:[#allocation2 + $0x68] sm:$0xff]
  %v2997 = vld [vmem:[#allocation2 + $0x70] sm:$0xff]
  %v2998 = vld [vmem:[#allocation2 + $0x78] sm:$0xff]
  %v2999 = vld [vmem:[#allocation2 + $0x80] sm:$0xff]
  %v3000 = vld [vmem:[#allocation2 + $0x9] sm:$0xff]
  %v3001 = vld [vmem:[#allocation2 + $0x11] sm:$0xff]
  %v3002 = vld [vmem:[#allocation2 + $0x19] sm:$0xff]
  %v3003 = vld [vmem:[#allocation2 + $0x21] sm:$0xff]
  %v3004 = vld [vmem:[#allocation2 + $0x29] sm:$0xff]
  %v3005 = vld [vmem:[#allocation2 + $0x31] sm:$0xff]
  %v3006 = vld [vmem:[#allocation2 + $0x39] sm:$0xff]
  %v3007 = vld [vmem:[#allocation2 + $0x41] sm:$0xff]
  %v3008 = vld [vmem:[#allocation2 + $0x49] sm:$0xff]
  %v3009 = vld [vmem:[#allocation2 + $0x51] sm:$0xff]
  %v3010 = vld [vmem:[#allocation2 + $0x59] sm:$0xff]
  %v3011 = vld [vmem:[#allocation2 + $0x61] sm:$0xff]
  %v3012 = vld [vmem:[#allocation2 + $0x69] sm:$0xff]
  %v3013 = vld [vmem:[#allocation2 + $0x71] sm:$0xff]
  %v3014 = vld [vmem:[#allocation2 + $0x79] sm:$0xff]
  %v3015 = vld [vmem:[#allocation2 + $0x81] sm:$0xff]
  %v3016 = vld [vmem:[#allocation2 + $0x83] sm:$0xff]
  %v3017 = vld [vmem:[#allocation2 + $0x84] sm:$0xff]
  %v3018 = vld [vmem:[#allocation2 + $0x85] sm:$0xff]
  %3035 = vrot.lane.b32.xlu0 %v2936, 16
  %v3036 = vpop.permute.xlu0 %3035
  %3037 = vrot.lane.b32.xlu0 %v2937, 16
  %v3038 = vpop.permute.xlu0 %3037
  %3039 = vrot.lane.b32.xlu0 %v2938, 16
  %v3040 = vpop.permute.xlu0 %3039
  %3041 = vrot.lane.b32.xlu0 %v2939, 16
  %v3042 = vpop.permute.xlu0 %3041
  %3043 = vrot.lane.b32.xlu0 %v2940, 16
  %v3044 = vpop.permute.xlu0 %3043
  %3045 = vrot.lane.b32.xlu0 %v2941, 16
  %v3046 = vpop.permute.xlu0 %3045
  %3047 = vrot.lane.b32.xlu0 %v2942, 16
  %v3048 = vpop.permute.xlu0 %3047
  %3049 = vrot.lane.b32.xlu0 %v2943, 16
  %v3050 = vpop.permute.xlu0 %3049
  %3051 = vrot.lane.b32.xlu0 %v2944, 16
  %v3052 = vpop.permute.xlu0 %3051
  %3053 = vrot.lane.b32.xlu0 %v2945, 16
  %v3054 = vpop.permute.xlu0 %3053
  %3055 = vrot.lane.b32.xlu0 %v2946, 16
  %v3056 = vpop.permute.xlu0 %3055
  %3057 = vrot.lane.b32.xlu0 %v2947, 16
  %v3058 = vpop.permute.xlu0 %3057
  %3059 = vrot.lane.b32.xlu0 %v2948, 16
  %v3060 = vpop.permute.xlu0 %3059
  %3061 = vrot.lane.b32.xlu0 %v2949, 16
  %v3062 = vpop.permute.xlu0 %3061
  %3063 = vrot.lane.b32.xlu0 %v2950, 16
  %v3064 = vpop.permute.xlu0 %3063
  %3065 = vrot.lane.b32.xlu0 %v2951, 16
  %v3066 = vpop.permute.xlu0 %3065
  %3099 = vrot.lane.b32.xlu0 %v2952, 32
  %v3100 = vpop.permute.xlu0 %3099
  %3101 = vrot.lane.b32.xlu0 %v2953, 32
  %v3102 = vpop.permute.xlu0 %3101
  %3103 = vrot.lane.b32.xlu0 %v2954, 32
  %v3104 = vpop.permute.xlu0 %3103
  %3105 = vrot.lane.b32.xlu0 %v2955, 32
  %v3106 = vpop.permute.xlu0 %3105
  %3107 = vrot.lane.b32.xlu0 %v2956, 32
  %v3108 = vpop.permute.xlu0 %3107
  %3109 = vrot.lane.b32.xlu0 %v2957, 32
  %v3110 = vpop.permute.xlu0 %3109
  %3111 = vrot.lane.b32.xlu0 %v2958, 32
  %v3112 = vpop.permute.xlu0 %3111
  %3113 = vrot.lane.b32.xlu0 %v2959, 32
  %v3114 = vpop.permute.xlu0 %3113
  %3115 = vrot.lane.b32.xlu0 %v2960, 32
  %v3116 = vpop.permute.xlu0 %3115
  %3117 = vrot.lane.b32.xlu0 %v2961, 32
  %v3118 = vpop.permute.xlu0 %3117
  %3119 = vrot.lane.b32.xlu0 %v2962, 32
  %v3120 = vpop.permute.xlu0 %3119
  %3121 = vrot.lane.b32.xlu0 %v2963, 32
  %v3122 = vpop.permute.xlu0 %3121
  %3123 = vrot.lane.b32.xlu0 %v2964, 32
  %v3124 = vpop.permute.xlu0 %3123
  %3125 = vrot.lane.b32.xlu0 %v2965, 32
  %v3126 = vpop.permute.xlu0 %3125
  %3127 = vrot.lane.b32.xlu0 %v2966, 32
  %v3128 = vpop.permute.xlu0 %3127
  %3129 = vrot.lane.b32.xlu0 %v2967, 32
  %v3130 = vpop.permute.xlu0 %3129
  %3163 = vrot.lane.b32.xlu0 %v2968, 48
  %v3164 = vpop.permute.xlu0 %3163
  %3165 = vrot.lane.b32.xlu0 %v2969, 48
  %v3166 = vpop.permute.xlu0 %3165
  %3167 = vrot.lane.b32.xlu0 %v2970, 48
  %v3168 = vpop.permute.xlu0 %3167
  %3169 = vrot.lane.b32.xlu0 %v2971, 48
  %v3170 = vpop.permute.xlu0 %3169
  %3171 = vrot.lane.b32.xlu0 %v2972, 48
  %v3172 = vpop.permute.xlu0 %3171
  %3173 = vrot.lane.b32.xlu0 %v2973, 48
  %v3174 = vpop.permute.xlu0 %3173
  %3175 = vrot.lane.b32.xlu0 %v2974, 48
  %v3176 = vpop.permute.xlu0 %3175
  %3177 = vrot.lane.b32.xlu0 %v2975, 48
  %v3178 = vpop.permute.xlu0 %3177
  %3179 = vrot.lane.b32.xlu0 %v2976, 48
  %v3180 = vpop.permute.xlu0 %3179
  %3181 = vrot.lane.b32.xlu0 %v2977, 48
  %v3182 = vpop.permute.xlu0 %3181
  %3183 = vrot.lane.b32.xlu0 %v2978, 48
  %v3184 = vpop.permute.xlu0 %3183
  %3185 = vrot.lane.b32.xlu0 %v2979, 48
  %v3186 = vpop.permute.xlu0 %3185
  %3187 = vrot.lane.b32.xlu0 %v2980, 48
  %v3188 = vpop.permute.xlu0 %3187
  %3189 = vrot.lane.b32.xlu0 %v2981, 48
  %v3190 = vpop.permute.xlu0 %3189
  %3191 = vrot.lane.b32.xlu0 %v2982, 48
  %v3192 = vpop.permute.xlu0 %3191
  %3193 = vrot.lane.b32.xlu0 %v2983, 48
  %v3194 = vpop.permute.xlu0 %3193
  %3227 = vrot.lane.b32.xlu0 %v2984, 64
  %v3228 = vpop.permute.xlu0 %3227
  %3229 = vrot.lane.b32.xlu0 %v2985, 64
  %v3230 = vpop.permute.xlu0 %3229
  %3231 = vrot.lane.b32.xlu0 %v2986, 64
  %v3232 = vpop.permute.xlu0 %3231
  %3233 = vrot.lane.b32.xlu0 %v2987, 64
  %v3234 = vpop.permute.xlu0 %3233
  %3235 = vrot.lane.b32.xlu0 %v2988, 64
  %v3236 = vpop.permute.xlu0 %3235
  %3237 = vrot.lane.b32.xlu0 %v2989, 64
  %v3238 = vpop.permute.xlu0 %3237
  %3239 = vrot.lane.b32.xlu0 %v2990, 64
  %v3240 = vpop.permute.xlu0 %3239
  %3241 = vrot.lane.b32.xlu0 %v2991, 64
  %v3242 = vpop.permute.xlu0 %3241
  %3243 = vrot.lane.b32.xlu0 %v2992, 64
  %v3244 = vpop.permute.xlu0 %3243
  %3245 = vrot.lane.b32.xlu0 %v2993, 64
  %v3246 = vpop.permute.xlu0 %3245
  %3247 = vrot.lane.b32.xlu0 %v2994, 64
  %v3248 = vpop.permute.xlu0 %3247
  %3249 = vrot.lane.b32.xlu0 %v2995, 64
  %v3250 = vpop.permute.xlu0 %3249
  %3251 = vrot.lane.b32.xlu0 %v2996, 64
  %v3252 = vpop.permute.xlu0 %3251
  %3253 = vrot.lane.b32.xlu0 %v2997, 64
  %v3254 = vpop.permute.xlu0 %3253
  %3255 = vrot.lane.b32.xlu0 %v2998, 64
  %v3256 = vpop.permute.xlu0 %3255
  %3257 = vrot.lane.b32.xlu0 %v2999, 64
  %v3258 = vpop.permute.xlu0 %3257
  %3291 = vrot.lane.b32.xlu0 %v3000, 80
  %v3292 = vpop.permute.xlu0 %3291
  %3293 = vrot.lane.b32.xlu0 %v3001, 80
  %v3294 = vpop.permute.xlu0 %3293
  %3295 = vrot.lane.b32.xlu0 %v3002, 80
  %v3296 = vpop.permute.xlu0 %3295
  %3297 = vrot.lane.b32.xlu0 %v3003, 80
  %v3298 = vpop.permute.xlu0 %3297
  %3299 = vrot.lane.b32.xlu0 %v3004, 80
  %v3300 = vpop.permute.xlu0 %3299
  %3301 = vrot.lane.b32.xlu0 %v3005, 80
  %v3302 = vpop.permute.xlu0 %3301
  %3303 = vrot.lane.b32.xlu0 %v3006, 80
  %v3304 = vpop.permute.xlu0 %3303
  %3305 = vrot.lane.b32.xlu0 %v3007, 80
  %v3306 = vpop.permute.xlu0 %3305
  %3307 = vrot.lane.b32.xlu0 %v3008, 80
  %v3308 = vpop.permute.xlu0 %3307
  %3309 = vrot.lane.b32.xlu0 %v3009, 80
  %v3310 = vpop.permute.xlu0 %3309
  %3311 = vrot.lane.b32.xlu0 %v3010, 80
  %v3312 = vpop.permute.xlu0 %3311
  %3313 = vrot.lane.b32.xlu0 %v3011, 80
  %v3314 = vpop.permute.xlu0 %3313
  %3315 = vrot.lane.b32.xlu0 %v3012, 80
  %v3316 = vpop.permute.xlu0 %3315
  %3317 = vrot.lane.b32.xlu0 %v3013, 80
  %v3318 = vpop.permute.xlu0 %3317
  %3319 = vrot.lane.b32.xlu0 %v3014, 80
  %v3320 = vpop.permute.xlu0 %3319
  %3321 = vrot.lane.b32.xlu0 %v3015, 80
  %v3322 = vpop.permute.xlu0 %3321
  %3355 = vrot.lane.b32.xlu0 %v2921, 96
  %v3356 = vpop.permute.xlu0 %3355
  %3357 = vrot.lane.b32.xlu0 %v2922, 96
  %v3358 = vpop.permute.xlu0 %3357
  %3359 = vrot.lane.b32.xlu0 %v2923, 96
  %v3360 = vpop.permute.xlu0 %3359
  %3361 = vrot.lane.b32.xlu0 %v2924, 96
  %v3362 = vpop.permute.xlu0 %3361
  %3363 = vrot.lane.b32.xlu0 %v2925, 96
  %v3364 = vpop.permute.xlu0 %3363
  %3365 = vrot.lane.b32.xlu0 %v2926, 96
  %v3366 = vpop.permute.xlu0 %3365
  %3367 = vrot.lane.b32.xlu0 %v2927, 96
  %v3368 = vpop.permute.xlu0 %3367
  %3369 = vrot.lane.b32.xlu0 %v2928, 96
  %v3370 = vpop.permute.xlu0 %3369
  %3371 = vrot.lane.b32.xlu0 %v2929, 96
  %v3372 = vpop.permute.xlu0 %3371
  %3373 = vrot.lane.b32.xlu0 %v2930, 96
  %v3374 = vpop.permute.xlu0 %3373
  %3375 = vrot.lane.b32.xlu0 %v2931, 96
  %v3376 = vpop.permute.xlu0 %3375
  %3377 = vrot.lane.b32.xlu0 %v2932, 96
  %v3378 = vpop.permute.xlu0 %3377
  %3379 = vrot.lane.b32.xlu0 %v2933, 96
  %v3380 = vpop.permute.xlu0 %3379
  %3381 = vrot.lane.b32.xlu0 %v2934, 96
  %v3382 = vpop.permute.xlu0 %3381
  %3383 = vrot.lane.b32.xlu0 %v2935, 96
  %v3384 = vpop.permute.xlu0 %3383
  %3385 = vrot.lane.b32.xlu0 %v3016, 96
  %v3386 = vpop.permute.xlu0 %3385
  %3404 = vrot.lane.b32.xlu0 %v2937, 112
  %v3405 = vpop.permute.xlu0 %3404
  %3406 = vrot.lane.b32.xlu0 %v2938, 112
  %v3407 = vpop.permute.xlu0 %3406
  %3408 = vrot.lane.b32.xlu0 %v2939, 112
  %v3409 = vpop.permute.xlu0 %3408
  %3410 = vrot.lane.b32.xlu0 %v2940, 112
  %v3411 = vpop.permute.xlu0 %3410
  %3412 = vrot.lane.b32.xlu0 %v2941, 112
  %v3413 = vpop.permute.xlu0 %3412
  %3414 = vrot.lane.b32.xlu0 %v2942, 112
  %v3415 = vpop.permute.xlu0 %3414
  %3416 = vrot.lane.b32.xlu0 %v2943, 112
  %v3417 = vpop.permute.xlu0 %3416
  %3418 = vrot.lane.b32.xlu0 %v2944, 112
  %v3419 = vpop.permute.xlu0 %3418
  %3420 = vrot.lane.b32.xlu0 %v2945, 112
  %v3421 = vpop.permute.xlu0 %3420
  %3422 = vrot.lane.b32.xlu0 %v2946, 112
  %v3423 = vpop.permute.xlu0 %3422
  %3424 = vrot.lane.b32.xlu0 %v2947, 112
  %v3425 = vpop.permute.xlu0 %3424
  %3426 = vrot.lane.b32.xlu0 %v2948, 112
  %v3427 = vpop.permute.xlu0 %3426
  %3428 = vrot.lane.b32.xlu0 %v2949, 112
  %v3429 = vpop.permute.xlu0 %3428
  %3430 = vrot.lane.b32.xlu0 %v2950, 112
  %v3431 = vpop.permute.xlu0 %3430
  %3432 = vrot.lane.b32.xlu0 %v2951, 112
  %v3433 = vpop.permute.xlu0 %3432
  %3434 = vrot.lane.b32.xlu0 %v3017, 112
  %v3435 = vpop.permute.xlu0 %3434
  %v3452 = vsel %vm18, %v2920, %v3036
  %v3453 = vsel %vm18, %v2921, %v3038
  %v3454 = vsel %vm18, %v2922, %v3040
  %v3455 = vsel %vm18, %v2923, %v3042
  %v3456 = vsel %vm18, %v2924, %v3044
  %v3457 = vsel %vm18, %v2925, %v3046
  %v3458 = vsel %vm18, %v2926, %v3048
  %v3459 = vsel %vm18, %v2927, %v3050
  %v3460 = vsel %vm18, %v2928, %v3052
  %v3461 = vsel %vm18, %v2929, %v3054
  %v3462 = vsel %vm18, %v2930, %v3056
  %v3463 = vsel %vm18, %v2931, %v3058
  %v3464 = vsel %vm18, %v2932, %v3060
  %v3465 = vsel %vm18, %v2933, %v3062
  %v3466 = vsel %vm18, %v2934, %v3064
  %v3467 = vsel %vm18, %v2935, %v3066
  %v3468 = vsel %vm93, %v3452, %v3100
  %v3469 = vsel %vm93, %v3453, %v3102
  %v3470 = vsel %vm93, %v3454, %v3104
  %v3471 = vsel %vm93, %v3455, %v3106
  %v3472 = vsel %vm93, %v3456, %v3108
  %v3473 = vsel %vm93, %v3457, %v3110
  %v3474 = vsel %vm93, %v3458, %v3112
  %v3475 = vsel %vm93, %v3459, %v3114
  %v3476 = vsel %vm93, %v3460, %v3116
  %v3477 = vsel %vm93, %v3461, %v3118
  %v3478 = vsel %vm93, %v3462, %v3120
  %v3479 = vsel %vm93, %v3463, %v3122
  %v3480 = vsel %vm93, %v3464, %v3124
  %v3481 = vsel %vm93, %v3465, %v3126
  %v3482 = vsel %vm93, %v3466, %v3128
  %v3483 = vsel %vm93, %v3467, %v3130
  %v3484 = vsel %vm799, %v3468, %v3164
  %v3485 = vsel %vm799, %v3469, %v3166
  %v3486 = vsel %vm799, %v3470, %v3168
  %v3487 = vsel %vm799, %v3471, %v3170
  %v3488 = vsel %vm799, %v3472, %v3172
  %v3489 = vsel %vm799, %v3473, %v3174
  %v3490 = vsel %vm799, %v3474, %v3176
  %v3491 = vsel %vm799, %v3475, %v3178
  %v3492 = vsel %vm799, %v3476, %v3180
  %v3493 = vsel %vm799, %v3477, %v3182
  %v3494 = vsel %vm799, %v3478, %v3184
  %v3495 = vsel %vm799, %v3479, %v3186
  %v3496 = vsel %vm799, %v3480, %v3188
  %v3497 = vsel %vm799, %v3481, %v3190
  %v3498 = vsel %vm799, %v3482, %v3192
  %v3499 = vsel %vm799, %v3483, %v3194
  %v3500 = vsel %vm816, %v3484, %v3228
  %v3501 = vsel %vm816, %v3485, %v3230
  %v3502 = vsel %vm816, %v3486, %v3232
  %v3503 = vsel %vm816, %v3487, %v3234
  %v3504 = vsel %vm816, %v3488, %v3236
  %v3505 = vsel %vm816, %v3489, %v3238
  %v3506 = vsel %vm816, %v3490, %v3240
  %v3507 = vsel %vm816, %v3491, %v3242
  %v3508 = vsel %vm816, %v3492, %v3244
  %v3509 = vsel %vm816, %v3493, %v3246
  %v3510 = vsel %vm816, %v3494, %v3248
  %v3511 = vsel %vm816, %v3495, %v3250
  %v3512 = vsel %vm816, %v3496, %v3252
  %v3513 = vsel %vm816, %v3497, %v3254
  %v3514 = vsel %vm816, %v3498, %v3256
  %v3515 = vsel %vm816, %v3499, %v3258
  %v3516 = vsel %vm833, %v3500, %v3292
  %v3517 = vsel %vm833, %v3501, %v3294
  %v3518 = vsel %vm833, %v3502, %v3296
  %v3519 = vsel %vm833, %v3503, %v3298
  %v3520 = vsel %vm833, %v3504, %v3300
  %v3521 = vsel %vm833, %v3505, %v3302
  %v3522 = vsel %vm833, %v3506, %v3304
  %v3523 = vsel %vm833, %v3507, %v3306
  %v3524 = vsel %vm833, %v3508, %v3308
  %v3525 = vsel %vm833, %v3509, %v3310
  %v3526 = vsel %vm833, %v3510, %v3312
  %v3527 = vsel %vm833, %v3511, %v3314
  %v3528 = vsel %vm833, %v3512, %v3316
  %v3529 = vsel %vm833, %v3513, %v3318
  %v3530 = vsel %vm833, %v3514, %v3320
  %v3531 = vsel %vm833, %v3515, %v3322
  %v3532 = vsel %vm850, %v3516, %v3356
  %v3533 = vsel %vm850, %v3517, %v3358
  %v3534 = vsel %vm850, %v3518, %v3360
  %v3535 = vsel %vm850, %v3519, %v3362
  %v3536 = vsel %vm850, %v3520, %v3364
  %v3537 = vsel %vm850, %v3521, %v3366
  %v3538 = vsel %vm850, %v3522, %v3368
  %v3539 = vsel %vm850, %v3523, %v3370
  %v3540 = vsel %vm850, %v3524, %v3372
  %v3541 = vsel %vm850, %v3525, %v3374
  %v3542 = vsel %vm850, %v3526, %v3376
  %v3543 = vsel %vm850, %v3527, %v3378
  %v3544 = vsel %vm850, %v3528, %v3380
  %v3545 = vsel %vm850, %v3529, %v3382
  %v3546 = vsel %vm850, %v3530, %v3384
  %v3547 = vsel %vm850, %v3531, %v3386
  %v3548 = vsel %vm867, %v3532, %v3405
  %v3549 = vsel %vm867, %v3533, %v3407
  %v3550 = vsel %vm867, %v3534, %v3409
  %v3551 = vsel %vm867, %v3535, %v3411
  %v3552 = vsel %vm867, %v3536, %v3413
  %v3553 = vsel %vm867, %v3537, %v3415
  %v3554 = vsel %vm867, %v3538, %v3417
  %v3555 = vsel %vm867, %v3539, %v3419
  %v3556 = vsel %vm867, %v3540, %v3421
  %v3557 = vsel %vm867, %v3541, %v3423
  %v3558 = vsel %vm867, %v3542, %v3425
  %v3559 = vsel %vm867, %v3543, %v3427
  %v3560 = vsel %vm867, %v3544, %v3429
  %v3561 = vsel %vm867, %v3545, %v3431
  %v3562 = vsel %vm867, %v3546, %v3433
  %v3563 = vsel %vm867, %v3547, %v3435
  %v3564 = vld [vmem:[%s1] sm:$0xff]
  %v3565 = vld [vmem:[%s1 + $0x8] sm:$0xff]
  %v3566 = vld [vmem:[%s1 + $0x10] sm:$0xff]
  %v3567 = vld [vmem:[%s1 + $0x18] sm:$0xff]
  %v3568 = vld [vmem:[%s1 + $0x20] sm:$0xff]
  %v3569 = vld [vmem:[%s1 + $0x28] sm:$0xff]
  %v3570 = vld [vmem:[%s1 + $0x30] sm:$0xff]
  %v3571 = vld [vmem:[%s1 + $0x38] sm:$0xff]
  %v3572 = vld [vmem:[%s1 + $0x40] sm:$0xff]
  %v3573 = vld [vmem:[%s1 + $0x48] sm:$0xff]
  %v3574 = vld [vmem:[%s1 + $0x50] sm:$0xff]
  %v3575 = vld [vmem:[%s1 + $0x58] sm:$0xff]
  %v3576 = vld [vmem:[%s1 + $0x60] sm:$0xff]
  %v3577 = vld [vmem:[%s1 + $0x68] sm:$0xff]
  %v3578 = vld [vmem:[%s1 + $0x70] sm:$0xff]
  %v3579 = vld [vmem:[%s1 + $0x78] sm:$0xff]
  %v3580 = vld [vmem:[%s1 + $0x80] sm:$0xff]
  %v3581 = vld [vmem:[%s1 + $0x88] sm:$0xff]
  %v3582 = vld [vmem:[%s1 + $0x90] sm:$0xff]
  %v3583 = vld [vmem:[%s1 + $0x98] sm:$0xff]
  %v3584 = vld [vmem:[%s1 + $0xa0] sm:$0xff]
  %v3585 = vld [vmem:[%s1 + $0xa8] sm:$0xff]
  %v3586 = vld [vmem:[%s1 + $0xb0] sm:$0xff]
  %v3587 = vld [vmem:[%s1 + $0xb8] sm:$0xff]
  %v3588 = vld [vmem:[%s1 + $0xc0] sm:$0xff]
  %v3589 = vld [vmem:[%s1 + $0xc8] sm:$0xff]
  %v3590 = vld [vmem:[%s1 + $0xd0] sm:$0xff]
  %v3591 = vld [vmem:[%s1 + $0xd8] sm:$0xff]
  %v3592 = vld [vmem:[%s1 + $0xe0] sm:$0xff]
  %v3593 = vld [vmem:[%s1 + $0xe8] sm:$0xff]
  %v3594 = vld [vmem:[%s1 + $0xf0] sm:$0xff]
  %v3595 = vld [vmem:[%s1 + $0xf8] sm:$0xff]
  %v3596 = vmul.f32 %v3548, %v3564
  %v3597 = vmul.f32 %v2953, %v3565
  %v3598 = vmul.f32 %v3549, %v3566
  %v3599 = vmul.f32 %v2954, %v3567
  %v3600 = vmul.f32 %v3550, %v3568
  %v3601 = vmul.f32 %v2955, %v3569
  %v3602 = vmul.f32 %v3551, %v3570
  %v3603 = vmul.f32 %v2956, %v3571
  %v3604 = vmul.f32 %v3552, %v3572
  %v3605 = vmul.f32 %v2957, %v3573
  %v3606 = vmul.f32 %v3553, %v3574
  %v3607 = vmul.f32 %v2958, %v3575
  %v3608 = vmul.f32 %v3554, %v3576
  %v3609 = vmul.f32 %v2959, %v3577
  %v3610 = vmul.f32 %v3555, %v3578
  %v3611 = vmul.f32 %v2960, %v3579
  %v3612 = vmul.f32 %v3556, %v3580
  %v3613 = vmul.f32 %v2961, %v3581
  %v3614 = vmul.f32 %v3557, %v3582
  %v3615 = vmul.f32 %v2962, %v3583
  %v3616 = vmul.f32 %v3558, %v3584
  %v3617 = vmul.f32 %v2963, %v3585
  %v3618 = vmul.f32 %v3559, %v3586
  %v3619 = vmul.f32 %v2964, %v3587
  %v3620 = vmul.f32 %v3560, %v3588
  %v3621 = vmul.f32 %v2965, %v3589
  %v3622 = vmul.f32 %v3561, %v3590
  %v3623 = vmul.f32 %v2966, %v3591
  %v3624 = vmul.f32 %v3562, %v3592
  %v3625 = vmul.f32 %v2967, %v3593
  %v3626 = vmul.f32 %v3563, %v3594
  %v3627 = vmul.f32 %v3018, %v3595
  %v3628 = vpack.c.bf16 %v3598, %v3596
  %v3629 = vpack.c.bf16 %v3599, %v3597
  %v3630 = vpack.c.bf16 %v3602, %v3600
  %v3631 = vpack.c.bf16 %v3603, %v3601
  %v3632 = vpack.c.bf16 %v3606, %v3604
  %v3633 = vpack.c.bf16 %v3607, %v3605
  %v3634 = vpack.c.bf16 %v3610, %v3608
  %v3635 = vpack.c.bf16 %v3611, %v3609
  %v3636 = vpack.c.bf16 %v3614, %v3612
  %v3637 = vpack.c.bf16 %v3615, %v3613
  %v3638 = vpack.c.bf16 %v3618, %v3616
  %v3639 = vpack.c.bf16 %v3619, %v3617
  %v3640 = vpack.c.bf16 %v3622, %v3620
  %v3641 = vpack.c.bf16 %v3623, %v3621
  %v3642 = vpack.c.bf16 %v3626, %v3624
  %v3643 = vpack.c.bf16 %v3627, %v3625
  %v3644 = vld [vmem:[%s2 + $0xf0] sm:$0xf]
  %v3645 = vld [vmem:[%s2 + $0xf4] sm:$0xf]
  %v3646 = vld [vmem:[%s2 + $0xf8] sm:$0xf]
  %v3647 = vld [vmem:[%s2 + $0xfc] sm:$0xf]
  %v3648 = vld [vmem:[%s2 + $0x100] sm:$0xf]
  %v3649 = vld [vmem:[%s2 + $0x104] sm:$0xf]
  %v3650 = vld [vmem:[%s2 + $0x108] sm:$0xf]
  %v3651 = vld [vmem:[%s2 + $0x10c] sm:$0xf]
  %v3652 = vld [vmem:[%s2 + $0x110] sm:$0xf]
  %v3653 = vld [vmem:[%s2 + $0x114] sm:$0xf]
  %v3654 = vld [vmem:[%s2 + $0x118] sm:$0xf]
  %v3655 = vld [vmem:[%s2 + $0x11c] sm:$0xf]
  %v3656 = vld [vmem:[%s2 + $0x120] sm:$0xf]
  %v3657 = vld [vmem:[%s2 + $0x124] sm:$0xf]
  %v3658 = vld [vmem:[%s2 + $0x128] sm:$0xf]
  %v3659 = vld [vmem:[%s2 + $0x12c] sm:$0xf]
  %v3660 = vld [vmem:[%s2 + $0x130] sm:$0xf]
  %v3661 = vld [vmem:[%s2 + $0x134] sm:$0xf]
  %v3680 = vunpack.c.l.b16 %v3644
  %v3681 = vunpack.c.l.b16 %v3645
  %v3682 = vunpack.c.l.b16 %v3646
  %v3683 = vunpack.c.l.b16 %v3647
  %v3684 = vunpack.c.l.b16 %v3648
  %v3685 = vunpack.c.l.b16 %v3649
  %v3686 = vunpack.c.l.b16 %v3650
  %v3687 = vunpack.c.l.b16 %v3651
  %v3688 = vunpack.c.l.b16 %v3652
  %v3689 = vunpack.c.l.b16 %v3653
  %v3690 = vunpack.c.l.b16 %v3654
  %v3691 = vunpack.c.l.b16 %v3655
  %v3692 = vunpack.c.l.b16 %v3656
  %v3693 = vunpack.c.l.b16 %v3657
  %v3694 = vunpack.c.l.b16 %v3658
  %v3695 = vunpack.c.l.b16 %v3659
  %v3696 = vunpack.c.l.b16 %v3660
  %v3697 = vunpack.c.l.b16 %v3661
  %v3698 = vpack.c.b16 %v3681, %v3680
  %v3699 = vpack.c.b16 %v3683, %v3682
  %v3700 = vpack.c.b16 %v3685, %v3684
  %v3701 = vpack.c.b16 %v3687, %v3686
  %v3702 = vpack.c.b16 %v3689, %v3688
  %v3703 = vpack.c.b16 %v3691, %v3690
  %v3704 = vpack.c.b16 %v3693, %v3692
  %v3705 = vpack.c.b16 %v3695, %v3694
  %v3706 = vpack.c.b16 %v3697, %v3696
  %v3717 = vsel %vm18, %v3629, 0
  %v3720 = vsel %vm18, %v3631, 0
  %v3723 = vsel %vm18, %v3633, 0
  %v3726 = vsel %vm18, %v3635, 0
  %v3729 = vsel %vm18, %v3637, 0
  %v3732 = vsel %vm18, %v3639, 0
  %v3735 = vsel %vm18, %v3641, 0
  %v3738 = vsel %vm18, %v3643, 0
  %3740 = vmatpush.bf16.msra.mxu0 %v3705
  %3741 = vmatpush.bf16.msra.mxu0 %v3704
  %3742 = vmatpush.bf16.msra.mxu0 %v3703
  %3743 = vmatpush.bf16.msra.mxu0 %v3702
  %3744 = vmatpush.bf16.msra.mxu0 %v3701
  %3745 = vmatpush.bf16.msra.mxu0 %v3700
  %3746 = vmatpush.bf16.msra.mxu0 %v3699
  %3747 = vmatpush.bf16.msra.mxu0 %v3698
  %3748 = vmatmul.bf16.gmra.mxu0 %v3628
  %v3749 = vpop.f32.mrf.mxu0
  %v3750 = vadd.f32 0.0, %v3749
  %v3751 = vpop.f32.mrf.mxu0
  %v3752 = vadd.f32 0.0, %v3751
  %3753 = vmatmul.bf16.gmra.mxu0 %v3630
  %v3754 = vpop.f32.mrf.mxu0
  %v3755 = vadd.f32 0.0, %v3754
  %v3756 = vpop.f32.mrf.mxu0
  %v3757 = vadd.f32 0.0, %v3756
  %3758 = vmatmul.bf16.gmra.mxu0 %v3632
  %v3759 = vpop.f32.mrf.mxu0
  %v3760 = vadd.f32 0.0, %v3759
  %v3761 = vpop.f32.mrf.mxu0
  %v3762 = vadd.f32 0.0, %v3761
  %3763 = vmatmul.bf16.gmra.mxu0 %v3634
  %v3764 = vpop.f32.mrf.mxu0
  %v3765 = vadd.f32 0.0, %v3764
  %v3766 = vpop.f32.mrf.mxu0
  %v3767 = vadd.f32 0.0, %v3766
  %3768 = vmatmul.bf16.gmra.mxu0 %v3636
  %v3769 = vpop.f32.mrf.mxu0
  %v3770 = vadd.f32 0.0, %v3769
  %v3771 = vpop.f32.mrf.mxu0
  %v3772 = vadd.f32 0.0, %v3771
  %3773 = vmatmul.bf16.gmra.mxu0 %v3638
  %v3774 = vpop.f32.mrf.mxu0
  %v3775 = vadd.f32 0.0, %v3774
  %v3776 = vpop.f32.mrf.mxu0
  %v3777 = vadd.f32 0.0, %v3776
  %3778 = vmatmul.bf16.gmra.mxu0 %v3640
  %v3779 = vpop.f32.mrf.mxu0
  %v3780 = vadd.f32 0.0, %v3779
  %v3781 = vpop.f32.mrf.mxu0
  %v3782 = vadd.f32 0.0, %v3781
  %3783 = vmatmul.bf16.gmra.mxu0 %v3642
  %v3784 = vpop.f32.mrf.mxu0
  %v3785 = vadd.f32 0.0, %v3784
  %v3786 = vpop.f32.mrf.mxu0
  %v3787 = vadd.f32 0.0, %v3786
  %3788 = vdwg.mxu0
  %3789 = vmatpush.bf16.msra.mxu0 0
  %3790 = vmatpush.bf16.msra.mxu0 0
  %3791 = vmatpush.bf16.msra.mxu0 0
  %3792 = vmatpush.bf16.msra.mxu0 0
  %3793 = vmatpush.bf16.msra.mxu0 0
  %3794 = vmatpush.bf16.msra.mxu0 0
  %3795 = vmatpush.bf16.msra.mxu0 0
  %3796 = vmatpush.bf16.msra.mxu0 %v3706
  %3797 = vmatmul.bf16.gmra.mxu0 %v3717
  %v3798 = vpop.f32.mrf.mxu0
  %v3799 = vadd.f32 %v3750, %v3798
  %v3800 = vpop.f32.mrf.mxu0
  %v3801 = vadd.f32 %v3752, %v3800
  %3802 = vmatmul.bf16.gmra.mxu0 %v3720
  %v3803 = vpop.f32.mrf.mxu0
  %v3804 = vadd.f32 %v3755, %v3803
  %v3805 = vpop.f32.mrf.mxu0
  %v3806 = vadd.f32 %v3757, %v3805
  %3807 = vmatmul.bf16.gmra.mxu0 %v3723
  %v3808 = vpop.f32.mrf.mxu0
  %v3809 = vadd.f32 %v3760, %v3808
  %v3810 = vpop.f32.mrf.mxu0
  %v3811 = vadd.f32 %v3762, %v3810
  %3812 = vmatmul.bf16.gmra.mxu0 %v3726
  %v3813 = vpop.f32.mrf.mxu0
  %v3814 = vadd.f32 %v3765, %v3813
  %v3815 = vpop.f32.mrf.mxu0
  %v3816 = vadd.f32 %v3767, %v3815
  %3817 = vmatmul.bf16.gmra.mxu0 %v3729
  %v3818 = vpop.f32.mrf.mxu0
  %v3819 = vadd.f32 %v3770, %v3818
  %v3820 = vpop.f32.mrf.mxu0
  %v3821 = vadd.f32 %v3772, %v3820
  %3822 = vmatmul.bf16.gmra.mxu0 %v3732
  %v3823 = vpop.f32.mrf.mxu0
  %v3824 = vadd.f32 %v3775, %v3823
  %v3825 = vpop.f32.mrf.mxu0
  %v3826 = vadd.f32 %v3777, %v3825
  %3827 = vmatmul.bf16.gmra.mxu0 %v3735
  %v3828 = vpop.f32.mrf.mxu0
  %v3829 = vadd.f32 %v3780, %v3828
  %v3830 = vpop.f32.mrf.mxu0
  %v3831 = vadd.f32 %v3782, %v3830
  %3832 = vmatmul.bf16.gmra.mxu0 %v3738
  %v3833 = vpop.f32.mrf.mxu0
  %v3834 = vadd.f32 %v3785, %v3833
  %v3835 = vpop.f32.mrf.mxu0
  %v3836 = vadd.f32 %v3787, %v3835
  %3837 = vdwg.mxu0
  %v3838 = vld [vmem:[%s3 + $0xe] sm:$0x1]
  %v3839 = vperm.slane %v3838, 0
  %v3840 = vmul.f32 %v3799, %v3839
  %v3841 = vmul.f32 %v3801, %v3839
  %v3842 = vmul.f32 %v3804, %v3839
  %v3843 = vmul.f32 %v3806, %v3839
  %v3844 = vmul.f32 %v3809, %v3839
  %v3845 = vmul.f32 %v3811, %v3839
  %v3846 = vmul.f32 %v3814, %v3839
  %v3847 = vmul.f32 %v3816, %v3839
  %v3848 = vmul.f32 %v3819, %v3839
  %v3849 = vmul.f32 %v3821, %v3839
  %v3850 = vmul.f32 %v3824, %v3839
  %v3851 = vmul.f32 %v3826, %v3839
  %v3852 = vmul.f32 %v3829, %v3839
  %v3853 = vmul.f32 %v3831, %v3839
  %v3854 = vmul.f32 %v3834, %v3839
  %v3855 = vmul.f32 %v3836, %v3839
  %v3856 = vld [vmem:[%s3 + $0xf] sm:$0x1]
  %v3857 = vperm.slane %v3856, 0
  %v3858 = vadd.f32 %v3840, %v3857
  %v3859 = vadd.f32 %v3841, %v3857
  %v3860 = vadd.f32 %v3842, %v3857
  %v3861 = vadd.f32 %v3843, %v3857
  %v3862 = vadd.f32 %v3844, %v3857
  %v3863 = vadd.f32 %v3845, %v3857
  %v3864 = vadd.f32 %v3846, %v3857
  %v3865 = vadd.f32 %v3847, %v3857
  %v3866 = vadd.f32 %v3848, %v3857
  %v3867 = vadd.f32 %v3849, %v3857
  %v3868 = vadd.f32 %v3850, %v3857
  %v3869 = vadd.f32 %v3851, %v3857
  %v3870 = vadd.f32 %v3852, %v3857
  %v3871 = vadd.f32 %v3853, %v3857
  %v3872 = vadd.f32 %v3854, %v3857
  %v3873 = vadd.f32 %v3855, %v3857
  %v3874 = vmax.f32 %v3858, 0.0
  %v3875 = vmax.f32 %v3859, 0.0
  %v3876 = vmax.f32 %v3860, 0.0
  %v3877 = vmax.f32 %v3861, 0.0
  %v3878 = vmax.f32 %v3862, 0.0
  %v3879 = vmax.f32 %v3863, 0.0
  %v3880 = vmax.f32 %v3864, 0.0
  %v3881 = vmax.f32 %v3865, 0.0
  %v3882 = vmax.f32 %v3866, 0.0
  %v3883 = vmax.f32 %v3867, 0.0
  %v3884 = vmax.f32 %v3868, 0.0
  %v3885 = vmax.f32 %v3869, 0.0
  %v3886 = vmax.f32 %v3870, 0.0
  %v3887 = vmax.f32 %v3871, 0.0
  %v3888 = vmax.f32 %v3872, 0.0
  %v3889 = vmax.f32 %v3873, 0.0
  %v3890 = vpack.c.bf16 %v3875, %v3874
  %v3891 = vpack.c.bf16 %v3877, %v3876
  %v3892 = vpack.c.bf16 %v3879, %v3878
  %v3893 = vpack.c.bf16 %v3881, %v3880
  %v3894 = vpack.c.bf16 %v3883, %v3882
  %v3895 = vpack.c.bf16 %v3885, %v3884
  %v3896 = vpack.c.bf16 %v3887, %v3886
  %v3897 = vpack.c.bf16 %v3889, %v3888
  %v3898 = vld [vmem:[%s2 + $0x138] sm:$0xf]
  %v3899 = vld [vmem:[%s2 + $0x13c] sm:$0xf]
  %v3902 = vunpack.c.l.b16 %v3898
  %v3903 = vunpack.c.l.b16 %v3899
  %v3904 = vpack.c.b16 %v3903, %v3902
  %v3907 = vsel %vm18, %v3890, 0
  %v3910 = vsel %vm18, %v3891, 0
  %v3913 = vsel %vm18, %v3892, 0
  %v3916 = vsel %vm18, %v3893, 0
  %v3919 = vsel %vm18, %v3894, 0
  %v3922 = vsel %vm18, %v3895, 0
  %v3925 = vsel %vm18, %v3896, 0
  %v3928 = vsel %vm18, %v3897, 0
  %3930 = vmatpush.bf16.msra.mxu0 0
  %3931 = vmatpush.bf16.msra.mxu0 0
  %3932 = vmatpush.bf16.msra.mxu0 0
  %3933 = vmatpush.bf16.msra.mxu0 0
  %3934 = vmatpush.bf16.msra.mxu0 0
  %3935 = vmatpush.bf16.msra.mxu0 0
  %3936 = vmatpush.bf16.msra.mxu0 0
  %3937 = vmatpush.bf16.msra.mxu0 %v3904
  %3938 = vmatmul.bf16.gmra.mxu0 %v3907
  %v3939 = vpop.f32.mrf.mxu0
  %v3940 = vadd.f32 0.0, %v3939
  %v3941 = vpop.f32.mrf.mxu0
  %v3942 = vadd.f32 0.0, %v3941
  %3943 = vmatmul.bf16.gmra.mxu0 %v3910
  %v3944 = vpop.f32.mrf.mxu0
  %v3945 = vadd.f32 0.0, %v3944
  %v3946 = vpop.f32.mrf.mxu0
  %v3947 = vadd.f32 0.0, %v3946
  %3948 = vmatmul.bf16.gmra.mxu0 %v3913
  %v3949 = vpop.f32.mrf.mxu0
  %v3950 = vadd.f32 0.0, %v3949
  %v3951 = vpop.f32.mrf.mxu0
  %v3952 = vadd.f32 0.0, %v3951
  %3953 = vmatmul.bf16.gmra.mxu0 %v3916
  %v3954 = vpop.f32.mrf.mxu0
  %v3955 = vadd.f32 0.0, %v3954
  %v3956 = vpop.f32.mrf.mxu0
  %v3957 = vadd.f32 0.0, %v3956
  %3958 = vmatmul.bf16.gmra.mxu0 %v3919
  %v3959 = vpop.f32.mrf.mxu0
  %v3960 = vadd.f32 0.0, %v3959
  %v3961 = vpop.f32.mrf.mxu0
  %v3962 = vadd.f32 0.0, %v3961
  %3963 = vmatmul.bf16.gmra.mxu0 %v3922
  %v3964 = vpop.f32.mrf.mxu0
  %v3965 = vadd.f32 0.0, %v3964
  %v3966 = vpop.f32.mrf.mxu0
  %v3967 = vadd.f32 0.0, %v3966
  %3968 = vmatmul.bf16.gmra.mxu0 %v3925
  %v3969 = vpop.f32.mrf.mxu0
  %v3970 = vadd.f32 0.0, %v3969
  %v3971 = vpop.f32.mrf.mxu0
  %v3972 = vadd.f32 0.0, %v3971
  %3973 = vmatmul.bf16.gmra.mxu0 %v3928
  %v3974 = vpop.f32.mrf.mxu0
  %v3975 = vadd.f32 0.0, %v3974
  %v3976 = vpop.f32.mrf.mxu0
  %v3977 = vadd.f32 0.0, %v3976
  %3978 = vdwg.mxu0
  %v3979 = vld [vmem:[%s3 + $0x10] sm:$0x1]
  %v3980 = vperm.slane %v3979, 0
  %v3981 = vmul.f32 %v3940, %v3980
  %v3982 = vmul.f32 %v3942, %v3980
  %v3983 = vmul.f32 %v3945, %v3980
  %v3984 = vmul.f32 %v3947, %v3980
  %v3985 = vmul.f32 %v3950, %v3980
  %v3986 = vmul.f32 %v3952, %v3980
  %v3987 = vmul.f32 %v3955, %v3980
  %v3988 = vmul.f32 %v3957, %v3980
  %v3989 = vmul.f32 %v3960, %v3980
  %v3990 = vmul.f32 %v3962, %v3980
  %v3991 = vmul.f32 %v3965, %v3980
  %v3992 = vmul.f32 %v3967, %v3980
  %v3993 = vmul.f32 %v3970, %v3980
  %v3994 = vmul.f32 %v3972, %v3980
  %v3995 = vmul.f32 %v3975, %v3980
  %v3996 = vmul.f32 %v3977, %v3980
  %v3997 = vld [vmem:[%s3 + $0x11] sm:$0x1]
  %v3998 = vperm.slane %v3997, 0
  %v3999 = vadd.f32 %v3981, %v3998
  %v4000 = vadd.f32 %v3982, %v3998
  %v4001 = vadd.f32 %v3983, %v3998
  %v4002 = vadd.f32 %v3984, %v3998
  %v4003 = vadd.f32 %v3985, %v3998
  %v4004 = vadd.f32 %v3986, %v3998
  %v4005 = vadd.f32 %v3987, %v3998
  %v4006 = vadd.f32 %v3988, %v3998
  %v4007 = vadd.f32 %v3989, %v3998
  %v4008 = vadd.f32 %v3990, %v3998
  %v4009 = vadd.f32 %v3991, %v3998
  %v4010 = vadd.f32 %v3992, %v3998
  %v4011 = vadd.f32 %v3993, %v3998
  %v4012 = vadd.f32 %v3994, %v3998
  %v4013 = vadd.f32 %v3995, %v3998
  %v4014 = vadd.f32 %v3996, %v3998
  %v4015 = vadd.f32 %v3999, %v2723
  %v4016 = vadd.f32 %v4000, %v2724
  %v4017 = vadd.f32 %v4001, %v2725
  %v4018 = vadd.f32 %v4002, %v2726
  %v4019 = vadd.f32 %v4003, %v2727
  %v4020 = vadd.f32 %v4004, %v2728
  %v4021 = vadd.f32 %v4005, %v2729
  %v4022 = vadd.f32 %v4006, %v2730
  %v4023 = vadd.f32 %v4007, %v2731
  %v4024 = vadd.f32 %v4008, %v2732
  %v4025 = vadd.f32 %v4009, %v2733
  %v4026 = vadd.f32 %v4010, %v2734
  %v4027 = vadd.f32 %v4011, %v2735
  %v4028 = vadd.f32 %v4012, %v2736
  %v4029 = vadd.f32 %v4013, %v2737
  %v4030 = vadd.f32 %v4014, %v2738
  %v4031 = vmax.f32 %v4015, 0.0
  %v4032 = vmax.f32 %v4016, 0.0
  %v4033 = vmax.f32 %v4017, 0.0
  %v4034 = vmax.f32 %v4018, 0.0
  %v4035 = vmax.f32 %v4019, 0.0
  %v4036 = vmax.f32 %v4020, 0.0
  %v4037 = vmax.f32 %v4021, 0.0
  %v4038 = vmax.f32 %v4022, 0.0
  %v4039 = vmax.f32 %v4023, 0.0
  %v4040 = vmax.f32 %v4024, 0.0
  %v4041 = vmax.f32 %v4025, 0.0
  %v4042 = vmax.f32 %v4026, 0.0
  %v4043 = vmax.f32 %v4027, 0.0
  %v4044 = vmax.f32 %v4028, 0.0
  %v4045 = vmax.f32 %v4029, 0.0
  %v4046 = vmax.f32 %v4030, 0.0
  %v4047 = vpack.c.bf16 %v4032, %v4031
  %v4048 = vpack.c.bf16 %v4034, %v4033
  %v4049 = vpack.c.bf16 %v4036, %v4035
  %v4050 = vpack.c.bf16 %v4038, %v4037
  %v4051 = vpack.c.bf16 %v4040, %v4039
  %v4052 = vpack.c.bf16 %v4042, %v4041
  %v4053 = vpack.c.bf16 %v4044, %v4043
  %v4054 = vpack.c.bf16 %v4046, %v4045
  %v4055 = vld [vmem:[%s2 + $0x140] sm:$0xf]
  %v4056 = vld [vmem:[%s2 + $0x144] sm:$0xf]
  %v4057 = vld [vmem:[%s2 + $0x148] sm:$0xf]
  %v4058 = vld [vmem:[%s2 + $0x14c] sm:$0xf]
  %v4059 = vld [vmem:[%s2 + $0x150] sm:$0xf]
  %v4060 = vld [vmem:[%s2 + $0x154] sm:$0xf]
  %v4061 = vld [vmem:[%s2 + $0x158] sm:$0xf]
  %v4062 = vld [vmem:[%s2 + $0x15c] sm:$0xf]
  %v4071 = vunpack.c.l.b16 %v4055
  %v4072 = vunpack.c.l.b16 %v4056
  %v4073 = vunpack.c.l.b16 %v4057
  %v4074 = vunpack.c.l.b16 %v4058
  %v4075 = vunpack.c.l.b16 %v4059
  %v4076 = vunpack.c.l.b16 %v4060
  %v4077 = vunpack.c.l.b16 %v4061
  %v4078 = vunpack.c.l.b16 %v4062
  %v4079 = vpack.c.b16 %v4072, %v4071
  %v4080 = vpack.c.b16 %v4074, %v4073
  %v4081 = vpack.c.b16 %v4076, %v4075
  %v4082 = vpack.c.b16 %v4078, %v4077
  %v4088 = vsel %vm816, %v4047, 0
  %v4091 = vsel %vm816, %v4048, 0
  %v4094 = vsel %vm816, %v4049, 0
  %v4097 = vsel %vm816, %v4050, 0
  %v4100 = vsel %vm816, %v4051, 0
  %v4103 = vsel %vm816, %v4052, 0
  %v4106 = vsel %vm816, %v4053, 0
  %v4109 = vsel %vm816, %v4054, 0
  %4111 = vmatpush.bf16.msra.mxu0 0
  %4112 = vmatpush.bf16.msra.mxu0 0
  %4113 = vmatpush.bf16.msra.mxu0 0
  %4114 = vmatpush.bf16.msra.mxu0 0
  %4115 = vmatpush.bf16.msra.mxu0 %v4082
  %4116 = vmatpush.bf16.msra.mxu0 %v4081
  %4117 = vmatpush.bf16.msra.mxu0 %v4080
  %4118 = vmatpush.bf16.msra.mxu0 %v4079
  %4119 = vmatmul.bf16.gmra.mxu0 %v4088
  %v4120 = vpop.f32.mrf.mxu0
  %v4121 = vadd.f32 0.0, %v4120
  %v4122 = vpop.f32.mrf.mxu0
  %v4123 = vadd.f32 0.0, %v4122
  %4124 = vmatmul.bf16.gmra.mxu0 %v4091
  %v4125 = vpop.f32.mrf.mxu0
  %v4126 = vadd.f32 0.0, %v4125
  %v4127 = vpop.f32.mrf.mxu0
  %v4128 = vadd.f32 0.0, %v4127
  %4129 = vmatmul.bf16.gmra.mxu0 %v4094
  %v4130 = vpop.f32.mrf.mxu0
  %v4131 = vadd.f32 0.0, %v4130
  %v4132 = vpop.f32.mrf.mxu0
  %v4133 = vadd.f32 0.0, %v4132
  %4134 = vmatmul.bf16.gmra.mxu0 %v4097
  %v4135 = vpop.f32.mrf.mxu0
  %v4136 = vadd.f32 0.0, %v4135
  %v4137 = vpop.f32.mrf.mxu0
  %v4138 = vadd.f32 0.0, %v4137
  %4139 = vmatmul.bf16.gmra.mxu0 %v4100
  %v4140 = vpop.f32.mrf.mxu0
  %v4141 = vadd.f32 0.0, %v4140
  %v4142 = vpop.f32.mrf.mxu0
  %v4143 = vadd.f32 0.0, %v4142
  %4144 = vmatmul.bf16.gmra.mxu0 %v4103
  %v4145 = vpop.f32.mrf.mxu0
  %v4146 = vadd.f32 0.0, %v4145
  %v4147 = vpop.f32.mrf.mxu0
  %v4148 = vadd.f32 0.0, %v4147
  %4149 = vmatmul.bf16.gmra.mxu0 %v4106
  %v4150 = vpop.f32.mrf.mxu0
  %v4151 = vadd.f32 0.0, %v4150
  %v4152 = vpop.f32.mrf.mxu0
  %v4153 = vadd.f32 0.0, %v4152
  %4154 = vmatmul.bf16.gmra.mxu0 %v4109
  %v4155 = vpop.f32.mrf.mxu0
  %v4156 = vadd.f32 0.0, %v4155
  %v4157 = vpop.f32.mrf.mxu0
  %v4158 = vadd.f32 0.0, %v4157
  %4159 = vdwg.mxu0
  %v4160 = vadd.f32 %v4121, %v4123
  %v4161 = vrot.slane %v4160, 4
  %v4162 = vadd.f32 %v4160, %v4161
  %v4163 = vrot.slane %v4162, 2
  %v4164 = vadd.f32 %v4162, %v4163
  %v4165 = vrot.slane %v4164, 1
  %v4166 = vadd.f32 %v4164, %v4165
  %v4167 = vadd.f32 %v4126, %v4128
  %v4168 = vrot.slane %v4167, 4
  %v4169 = vadd.f32 %v4167, %v4168
  %v4170 = vrot.slane %v4169, 2
  %v4171 = vadd.f32 %v4169, %v4170
  %v4172 = vrot.slane %v4171, 1
  %v4173 = vadd.f32 %v4171, %v4172
  %v4174 = vadd.f32 %v4131, %v4133
  %v4175 = vrot.slane %v4174, 4
  %v4176 = vadd.f32 %v4174, %v4175
  %v4177 = vrot.slane %v4176, 2
  %v4178 = vadd.f32 %v4176, %v4177
  %v4179 = vrot.slane %v4178, 1
  %v4180 = vadd.f32 %v4178, %v4179
  %v4181 = vadd.f32 %v4136, %v4138
  %v4182 = vrot.slane %v4181, 4
  %v4183 = vadd.f32 %v4181, %v4182
  %v4184 = vrot.slane %v4183, 2
  %v4185 = vadd.f32 %v4183, %v4184
  %v4186 = vrot.slane %v4185, 1
  %v4187 = vadd.f32 %v4185, %v4186
  %v4188 = vadd.f32 %v4141, %v4143
  %v4189 = vrot.slane %v4188, 4
  %v4190 = vadd.f32 %v4188, %v4189
  %v4191 = vrot.slane %v4190, 2
  %v4192 = vadd.f32 %v4190, %v4191
  %v4193 = vrot.slane %v4192, 1
  %v4194 = vadd.f32 %v4192, %v4193
  %v4195 = vadd.f32 %v4146, %v4148
  %v4196 = vrot.slane %v4195, 4
  %v4197 = vadd.f32 %v4195, %v4196
  %v4198 = vrot.slane %v4197, 2
  %v4199 = vadd.f32 %v4197, %v4198
  %v4200 = vrot.slane %v4199, 1
  %v4201 = vadd.f32 %v4199, %v4200
  %v4202 = vadd.f32 %v4151, %v4153
  %v4203 = vrot.slane %v4202, 4
  %v4204 = vadd.f32 %v4202, %v4203
  %v4205 = vrot.slane %v4204, 2
  %v4206 = vadd.f32 %v4204, %v4205
  %v4207 = vrot.slane %v4206, 1
  %v4208 = vadd.f32 %v4206, %v4207
  %v4209 = vadd.f32 %v4156, %v4158
  %v4210 = vrot.slane %v4209, 4
  %v4211 = vadd.f32 %v4209, %v4210
  %v4212 = vrot.slane %v4211, 2
  %v4213 = vadd.f32 %v4211, %v4212
  %v4214 = vrot.slane %v4213, 1
  %v4215 = vadd.f32 %v4213, %v4214
  %v4216 = vld [vmem:[%s3 + $0x12] sm:$0x1]
  %v4217 = vperm.slane %v4216, 0
  %v4218 = vadd.f32 %v4166, %v4217
  %v4219 = vadd.f32 %v4173, %v4217
  %v4220 = vadd.f32 %v4180, %v4217
  %v4221 = vadd.f32 %v4187, %v4217
  %v4222 = vadd.f32 %v4194, %v4217
  %v4223 = vadd.f32 %v4201, %v4217
  %v4224 = vadd.f32 %v4208, %v4217
  %v4225 = vadd.f32 %v4215, %v4217
  %v4234 = vrot.slane %v4219, 7
  %vm4235 = vcmask 1041409
  %v4236 = vsel %vm4235, %v4234, %v4218
  %v4237 = vrot.slane %v4220, 6
  %vm4238 = vcmask 1042434
  %v4239 = vsel %vm4238, %v4237, %v4236
  %v4240 = vrot.slane %v4221, 5
  %vm4241 = vcmask 1043459
  %v4242 = vsel %vm4241, %v4240, %v4239
  %v4243 = vrot.slane %v4222, 4
  %vm4244 = vcmask 1044484
  %v4245 = vsel %vm4244, %v4243, %v4242
  %v4246 = vrot.slane %v4223, 3
  %vm4247 = vcmask 1045509
  %v4248 = vsel %vm4247, %v4246, %v4245
  %v4249 = vrot.slane %v4224, 2
  %vm4250 = vcmask 1046534
  %v4251 = vsel %vm4250, %v4249, %v4248
  %v4252 = vrot.slane %v4225, 1
  %vm4253 = vcmask 1047559
  %v4254 = vsel %vm4253, %v4252, %v4251
  %4256 = vst [vmem:[%s4] sm:$0xff] %v4254
  // Predicated region
  $region18: #{res5_roi_heads_forward.1} parent=0 // pred_check
    _
  $region19: #{res5_roi_heads_forward.1} parent=0 // pred_check_branch
    %4258 = sbr.rel (0) target = $region21
  $region20: #{res5_roi_heads_forward.1} parent=0 // pred_region
    _
  $region21: #{res5_roi_heads_forward.1} parent=0 // pred_fallthru
    _
  // Predicated region
  $region22: #{res5_roi_heads_forward.1} parent=0 // pred_check
    _
  $region23: #{res5_roi_heads_forward.1} parent=0 // pred_check_branch
    %4260 = sbr.rel (0) target = $region25
  $region24: #{res5_roi_heads_forward.1} parent=0 // pred_region
    _
  $region25: #{res5_roi_heads_forward.1} parent=0 // pred_fallthru
    _

</llo_original>
